<compile_context>
chip_gen: v5e
topology: v5e:2x2
jax: 0.10.0
libtpu: 0.0.40
codegen_flags: <defaults>
</compile_context>

<pallas_src>
import functools
import math

import jax
import jax.numpy as jnp
from jax.experimental import pallas as pl
from jax.experimental.pallas import tpu as pltpu


# --------------------------------------------------------------------------
# generation-aware VMEM budget / tile targets
# --------------------------------------------------------------------------

def _query_vmem_bytes():
    try:
        return int(pltpu.get_tpu_info().vmem_capacity_bytes)
    except Exception:
        return 64 * 1024 * 1024           # conservative (v7x-sized) fallback


_VMEM_CAP = _query_vmem_bytes()
_VMEM_LIMIT = min((_VMEM_CAP * 3) // 4, 96 * 1024 * 1024)   # 48 MiB on v7x,
                                                            # 96 MiB on v5e/v6e
_BIG_VMEM = _VMEM_CAP >= 100 * 1024 * 1024
_TM_TARGET = 256
_TN_TARGET = 512 if _BIG_VMEM else 256
_TK_TARGET = 1024 if _BIG_VMEM else 512


def _round_up(x, m):
    return ((x + m - 1) // m) * m


def _pick_tile(dim, target, mult=128):
    """Largest lane-aligned tile <= target that divides dim; full dim if the
    dim is already small (<= target)."""
    if dim <= target:
        return dim
    t = (target // mult) * mult
    while t >= mult:
        if dim % t == 0:
            return t
        t -= mult
    return dim


def _pad_token_count(S, B, row_tile=_TM_TARGET):
    """Token-axis padding so (a) S_pad is a multiple of 8 and (b) for
    non-tiny problems S_pad*B is a multiple of the row tile -> no full-dim
    tile fallback and no per-call padding copies inside the blocks."""
    if S * B <= row_tile:
        return _round_up(S, 8)
    step = row_tile // math.gcd(row_tile, B)
    step = step * 8 // math.gcd(step, 8)        # lcm(step, 8)
    return _round_up(S, step)


# --------------------------------------------------------------------------
# fused (prologue) + matmul + bias (+ residual) (+ stats epilogue) kernel
# --------------------------------------------------------------------------

def _write_stats(out_f32, stats_ref, valid_rows):
    """Masked per-tile partial sum / sum-of-squares -> (8, 128) stats block
    (lane 0 = sum, lane 1 = sum of squares)."""
    tm, tn = out_f32.shape
    row0 = pl.program_id(0) * tm
    rows = jax.lax.broadcasted_iota(jnp.int32, (tm, tn), 0) + row0
    xm = jnp.where(rows < valid_rows, out_f32, 0.0)
    s1 = jnp.sum(xm)
    s2 = jnp.sum(xm * xm)
    lane = jax.lax.broadcasted_iota(jnp.int32, (8, 128), 1)
    stats_ref[...] = (jnp.where(lane == 0, s1, 0.0)
                      + jnp.where(lane == 1, s2, 0.0))


def _matmul_kernel(*refs, prologue, has_residual, emit_stats, valid_rows,
                   single_k, use_cache):
    it = iter(refs)
    x_ref = next(it)
    g_ref = bln_ref = p_ref = s_ref = None
    if prologue == "ln":
        g_ref, bln_ref = next(it), next(it)
    elif prologue == "aeg":
        p_ref, s_ref = next(it), next(it)
    w_ref = next(it)
    bias_ref = next(it)
    res_ref = next(it) if has_residual else None
    o_ref = next(it)
    stats_ref = next(it) if emit_stats else None
    acc_ref = None if single_k else next(it)
    cache_ref = next(it) if use_cache else None

    def transform(x):
        if prologue == "none":
            return x.astype(jnp.bfloat16)
        x = x.astype(jnp.float32)
        if prologue == "ln":
            # PyTorch LayerNorm: biased variance, eps = 1e-5, affine.
            mean = jnp.mean(x, axis=-1, keepdims=True)
            var = jnp.mean((x - mean) ** 2, axis=-1, keepdims=True)
            x = ((x - mean) * jax.lax.rsqrt(var + 1e-5)
                 * g_ref[...].astype(jnp.float32)
                 + bln_ref[...].astype(jnp.float32))
        else:  # "aeg": OptAEGV3 elementwise apply with precomputed stats
            mean = s_ref[0]
            inv_std = s_ref[1]
            vx, vy = p_ref[0], p_ref[1]
            wx, wy = p_ref[2], p_ref[3]
            af, mf = p_ref[4], p_ref[5]
            d = (x - mean) * inv_std
            v = d * (1.0 + vy) + vx
            wg = d * (1.0 + wy) + wx
            sig = 1.0 / (1.0 + jnp.exp(-wg))
            dx = af * (v * sig)           # sum over trailing size-1 dim == id
            dy = mf * jnp.tanh(d)
            x = d * (1.0 + dy) + dx
        return x.astype(jnp.bfloat16)

    k_idx = pl.program_id(2)

    if use_cache:
        # prologue runs only on the first output-N tile; later j's reuse it.
        @pl.when(pl.program_id(1) == 0)
        def _():
            cache_ref[k_idx] = transform(x_ref[...])
        x_bf = cache_ref[k_idx]
    else:
        x_bf = transform(x_ref[...])

    w_bf = w_ref[...]
    if w_bf.dtype != jnp.bfloat16:
        w_bf = w_bf.astype(jnp.bfloat16)

    partial_dot = jnp.dot(x_bf, w_bf, preferred_element_type=jnp.float32)

    def finalize(acc):
        out = acc + bias_ref[...].astype(jnp.float32)
        if has_residual:
            out = out + res_ref[...].astype(jnp.float32)
        o_ref[...] = out.astype(o_ref.dtype)
        if emit_stats:
            _write_stats(out, stats_ref, valid_rows)

    if single_k:
        # opt: no f32 accumulator round trip when the K grid has one step.
        finalize(partial_dot)
    else:
        @pl.when(k_idx == 0)
        def _():
            acc_ref[...] = jnp.zeros_like(acc_ref)

        acc_ref[...] += partial_dot

        @pl.when(k_idx == pl.num_programs(2) - 1)
        def _():
            finalize(acc_ref[...])


def fused_linear(x, w, b, *, gamma=None, beta=None, residual=None,
                 aeg_params=None, aeg_stats=None, out_dtype=jnp.float32,
                 emit_stats=False, stats_valid_rows=None):
    """y = prologue(x) @ w + b (+ residual); optional masked partial-stats
    epilogue (returns (y, (sum, sumsq)))."""
    M, K = x.shape
    Kw, N = w.shape
    assert Kw == K

    prologue = "none"
    if gamma is not None:
        prologue = "ln"
    if aeg_params is not None:
        prologue = "aeg"
    has_residual = residual is not None
    if stats_valid_rows is None:
        stats_valid_rows = M

    # ---- tiling (row axis padded, never full-dim fallback) ----------------
    tm = min(_TM_TARGET, _round_up(M, 8))
    M_pad = _round_up(M, tm)
    tn = _pick_tile(N, _TN_TARGET)
    tk = K if prologue == "ln" else _pick_tile(K, _TK_TARGET)
    gm, gn, gk = M_pad // tm, N // tn, K // tk
    single_k = (gk == 1)
    use_cache = (prologue != "none") and (gn > 1)

    if M_pad > M:
        x = jnp.pad(x, ((0, M_pad - M), (0, 0)))
        if has_residual:
            residual = jnp.pad(residual, ((0, M_pad - M), (0, 0)))

    # ---- specs -------------------------------------------------------------
    in_specs = [pl.BlockSpec((tm, tk), lambda i, j, k: (i, k))]
    inputs = [x]
    if prologue == "ln":
        in_specs += [pl.BlockSpec((1, tk), lambda i, j, k: (0, k))] * 2
        inputs += [gamma.reshape(1, K).astype(jnp.float32),
                   beta.reshape(1, K).astype(jnp.float32)]
    elif prologue == "aeg":
        in_specs += [pl.BlockSpec(memory_space=pltpu.MemorySpace.SMEM)] * 2
        inputs += [aeg_params.astype(jnp.float32),
                   aeg_stats.astype(jnp.float32)]
    in_specs += [pl.BlockSpec((tk, tn), lambda i, j, k: (k, j)),
                 pl.BlockSpec((1, tn), lambda i, j, k: (0, j))]
    inputs += [w, b.reshape(1, N).astype(jnp.float32)]
    if has_residual:
        in_specs.append(pl.BlockSpec((tm, tn), lambda i, j, k: (i, j)))
        inputs.append(residual)

    out_shapes = [jax.ShapeDtypeStruct((M_pad, N), out_dtype)]
    out_specs = [pl.BlockSpec((tm, tn), lambda i, j, k: (i, j))]
    if emit_stats:
        out_shapes.append(jax.ShapeDtypeStruct((gm * 8, gn * 128), jnp.float32))
        out_specs.append(pl.BlockSpec((8, 128), lambda i, j, k: (i, j)))

    scratch_shapes = []
    if not single_k:
        scratch_shapes.append(pltpu.VMEM((tm, tn), jnp.float32))
    if use_cache:
        scratch_shapes.append(pltpu.VMEM((gk, tm, tk), jnp.bfloat16))

    # j must be sequential (not split across cores) when the prologue cache
    # keyed on j == 0 is active.
    dims = ("parallel", "arbitrary" if use_cache else "parallel", "arbitrary")

    flops = 2 * M_pad * N * K
    transc = 0
    if prologue == "aeg":
        transc = 2 * M_pad * K * (1 if use_cache else gn)
    bytes_accessed = (x.size * x.dtype.itemsize
                      + w.size * w.dtype.itemsize
                      + M_pad * N * jnp.dtype(out_dtype).itemsize
                      + (residual.size * residual.dtype.itemsize
                         if has_residual else 0))

    kernel = functools.partial(
        _matmul_kernel, prologue=prologue, has_residual=has_residual,
        emit_stats=emit_stats, valid_rows=int(stats_valid_rows),
        single_k=single_k, use_cache=use_cache)

    outs = pl.pallas_call(
        kernel,
        out_shape=tuple(out_shapes) if emit_stats else out_shapes[0],
        grid=(gm, gn, gk),
        in_specs=in_specs,
        out_specs=tuple(out_specs) if emit_stats else out_specs[0],
        scratch_shapes=scratch_shapes,
        compiler_params=pltpu.CompilerParams(
            dimension_semantics=dims, vmem_limit_bytes=_VMEM_LIMIT),
        cost_estimate=pl.CostEstimate(flops=int(flops),
                                      transcendentals=int(transc),
                                      bytes_accessed=int(bytes_accessed)),
    )(*inputs)

    if emit_stats:
        y, raw = outs
        raw = raw.reshape(gm, 8, gn, 128)
        s1 = jnp.sum(raw[:, 0, :, 0])
        s2 = jnp.sum(raw[:, 0, :, 1])
        if M_pad > M:
            y = y[:M]
        return y, (s1, s2)
    y = outs
    return y[:M] if M_pad > M else y


# --------------------------------------------------------------------------
# attention core: all heads, bf16 in/out, direct per-head stores
# --------------------------------------------------------------------------
# Faithful to nn.MultiheadAttention(batch_first=False) fed a (B, S, E) tensor:
# attention runs over the ViT *batch* axis, batched per (token, head).

def _attention_kernel(qkv_ref, o_ref, *, num_heads, head_dim):
    E = num_heads * head_dim
    scale = 1.0 / (float(head_dim) ** 0.5)
    qkv = qkv_ref[...]                      # (tn, L, 3E) bf16 — one block load
    for h in range(num_heads):              # static unroll over heads
        lo = h * head_dim
        q = qkv[:, :, lo:lo + head_dim]
        k = qkv[:, :, E + lo:E + lo + head_dim]
        v = qkv[:, :, 2 * E + lo:2 * E + lo + head_dim]
        s = jnp.einsum("nqd,nkd->nqk", q, k,
                       preferred_element_type=jnp.float32) * scale
        m = jnp.max(s, axis=-1, keepdims=True)
        p = jnp.exp(s - m)
        l = jnp.sum(p, axis=-1, keepdims=True)
        p = (p * pl.reciprocal(l, approx=True)).astype(jnp.bfloat16)
        o = jnp.einsum("nqk,nkd->nqd", p, v,
                       preferred_element_type=jnp.float32)
        o_ref[:, :, lo:lo + head_dim] = o.astype(o_ref.dtype)


def attention_core(qkv, num_heads, token_target=64):
    # qkv: (S_pad, B, 3E) bf16 (token-major; S_pad is the padded token count).
    S, B, E3 = qkv.shape
    E = E3 // 3
    head_dim = E // num_heads
    # token tile: any divisor of S (no (8,128) constraint on this axis),
    # capped by a VMEM budget so the block stays pipelineable everywhere.
    budget = max(_VMEM_LIMIT // 4, 2 * 1024 * 1024)
    per_tok = B * (E3 + E) * 2              # bf16 in + out bytes per token
    cap = max(1, budget // per_tok)
    tn = 1
    for d in range(1, S + 1):
        if S % d == 0 and d <= min(token_target, cap):
            tn = d
    grid = (S // tn,)
    return pl.pallas_call(
        functools.partial(_attention_kernel, num_heads=num_heads,
                          head_dim=head_dim),
        out_shape=jax.ShapeDtypeStruct((S, B, E), jnp.bfloat16),
        grid=grid,
        in_specs=[pl.BlockSpec((tn, B, E3), lambda n: (n, 0, 0))],
        out_specs=pl.BlockSpec((tn, B, E), lambda n: (n, 0, 0)),
        compiler_params=pltpu.CompilerParams(
            dimension_semantics=("parallel",),
            vmem_limit_bytes=_VMEM_LIMIT),
        cost_estimate=pl.CostEstimate(
            flops=int(4 * S * B * B * E),
            transcendentals=int(S * B * B * num_heads),
            bytes_accessed=int(qkv.size * 2 + S * B * E * 2)),
    )(qkv)


# --------------------------------------------------------------------------
# small standalone LayerNorm (final LN on the cls token only)
# --------------------------------------------------------------------------

def _layernorm_kernel(x_ref, g_ref, b_ref, o_ref):
    x = x_ref[...].astype(jnp.float32)
    mean = jnp.mean(x, axis=-1, keepdims=True)
    var = jnp.mean((x - mean) ** 2, axis=-1, keepdims=True)
    o_ref[...] = ((x - mean) * jax.lax.rsqrt(var + 1e-5)
                  * g_ref[...] + b_ref[...]).astype(o_ref.dtype)


def layernorm(x2d, gamma, beta):
    M, E = x2d.shape
    return pl.pallas_call(
        _layernorm_kernel,
        out_shape=jax.ShapeDtypeStruct((M, E), jnp.float32),
        in_specs=[pl.BlockSpec(memory_space=pltpu.MemorySpace.VMEM)] * 3,
        out_specs=pl.BlockSpec(memory_space=pltpu.MemorySpace.VMEM),
    )(x2d, gamma.reshape(1, E), beta.reshape(1, E))


# --------------------------------------------------------------------------
# model glue (reshapes / parameter plumbing in plain JAX)
# --------------------------------------------------------------------------

def vit_block(p, x, num_heads, valid_rows):
    # x: (S_pad, B, E) token-major, f32 residual stream.
    S, B, E = x.shape
    M = S * B
    x2 = x.reshape(M, E)

    # 1) fused LN1 + QKV projection (bf16 activation out)
    qkv = fused_linear(x2, p["in_w"], p["in_b"],
                       gamma=p["ln1_g"], beta=p["ln1_b"],
                       out_dtype=jnp.bfloat16)
    # 2) attention (all heads, per-token attention over the batch axis)
    attn = attention_core(qkv.reshape(S, B, 3 * E), num_heads)
    # 3) out-projection + residual add
    x2 = fused_linear(attn.reshape(M, E), p["out_w"], p["out_b"],
                      residual=x2)
    # 4) fused LN2 + MLP first linear, with OptAEGV3 partial stats emitted
    #    from the epilogue (no extra HBM pass over h).
    h, (s1, s2) = fused_linear(x2, p["mlp_w1"], p["mlp_b1"],
                               gamma=p["ln2_g"], beta=p["ln2_b"],
                               out_dtype=jnp.bfloat16,
                               emit_stats=True, stats_valid_rows=valid_rows)
    n = valid_rows * p["mlp_w1"].shape[1]
    mean = s1 / n
    # torch.std(): unbiased estimator (divide by n - 1).
    var = jnp.maximum(s2 - n * mean * mean, 0.0) / (n - 1.0)
    # TODO(synk): like the PyTorch source, no epsilon -> zero-variance input
    # would produce inf; kept faithful.
    inv_std = jax.lax.rsqrt(var)
    stats = jnp.stack([mean, inv_std])
    # 5) fused OptAEGV3 apply + MLP second linear + residual add
    #    TODO(synk): nn.Dropout layers are identity (inference semantics).
    x2 = fused_linear(h, p["mlp_w2"], p["mlp_b2"], residual=x2,
                      aeg_params=p["aeg"], aeg_stats=stats)
    return x2.reshape(S, B, E)


def vit_forward(params, x, *, patch_size, num_heads):
    B, C, H, W = x.shape
    P = patch_size
    x = x.reshape(B, C, H // P, P, W // P, P)
    x = jnp.transpose(x, (0, 2, 4, 1, 3, 5)).reshape(B, -1, P * P * C)
    n_patch = x.shape[1]
    E = params["patch_embed_w"].shape[1]
    x = fused_linear(x.reshape(B * n_patch, P * P * C),
                     params["patch_embed_w"],
                     params["patch_embed_b"]).reshape(B, n_patch, E)
    cls = jnp.broadcast_to(params["cls_token"], (B, 1, E)).astype(x.dtype)
    x = jnp.concatenate([cls, x], axis=1)
    x = x + params["pos_embed"]
    # TODO(synk): embedding dropout is identity (inference semantics).

    S = n_patch + 1
    # token-major (S, B, E); token axis padded once so every block tiles
    # cleanly.  Padded tokens never mix with real ones (attention is batched
    # per token) and are masked out of the OptAEGV3 statistics.
    x = jnp.transpose(x, (1, 0, 2))
    S_pad = _pad_token_count(S, B)
    if S_pad > S:
        x = jnp.pad(x, ((0, S_pad - S), (0, 0), (0, 0)))
    valid_rows = S * B

    for blk in params["blocks"]:
        x = vit_block(blk, x, num_heads, valid_rows)
    cls_out = x[0]                                   # (B, E), token 0 = cls
    return layernorm(cls_out, params["ln_g"], params["ln_b"])


# --------------------------------------------------------------------------
# deterministic parameter init (shapes per the PyTorch __init__)
# --------------------------------------------------------------------------

def init_params(key, image_size, patch_size, num_layers, num_heads,
                embed_dim, mlp_dim):
    num_patches = (image_size // patch_size) ** 2
    patch_dim = patch_size * patch_size * 3
    keys = jax.random.split(key, 3 + num_layers)

    def dense(k, fan_in, fan_out):
        kw, kb = jax.random.split(k)
        # weights stored bf16 (MXU-native, halves HBM weight traffic);
        # biases / accumulation stay f32.
        w = (jax.random.normal(kw, (fan_in, fan_out), jnp.float32) * 0.02
             ).astype(jnp.bfloat16)
        b = jax.random.normal(kb, (fan_out,), jnp.float32) * 0.02
        return w, b

    pw, pb = dense(keys[0], patch_dim, embed_dim)
    params = {
        "patch_embed_w": pw,
        "patch_embed_b": pb,
        "cls_token": jax.random.normal(keys[1], (1, 1, embed_dim), jnp.float32),
        "pos_embed": jax.random.normal(keys[2], (1, num_patches + 1, embed_dim),
                                       jnp.float32),
        "ln_g": jnp.ones((embed_dim,), jnp.float32),
        "ln_b": jnp.zeros((embed_dim,), jnp.float32),
        "blocks": [],
    }
    for i in range(num_layers):
        k1, k2, k3, k4, k5 = jax.random.split(keys[3 + i], 5)
        in_w, in_b = dense(k1, embed_dim, 3 * embed_dim)
        out_w, out_b = dense(k2, embed_dim, embed_dim)
        w1, b1 = dense(k3, embed_dim, mlp_dim)
        w2, b2 = dense(k4, mlp_dim, embed_dim)
        # [vx, vy, wx, wy, afactor, mfactor]: module defaults (0,1,0,1,0,1)
        # perturbed deterministically so every OptAEGV3 term is exercised.
        aeg = (jnp.array([0.0, 1.0, 0.0, 1.0, 0.0, 1.0], jnp.float32)
               + jax.random.normal(k5, (6,), jnp.float32) * 0.05)
        params["blocks"].append(dict(
            ln1_g=jnp.ones((embed_dim,), jnp.float32),
            ln1_b=jnp.zeros((embed_dim,), jnp.float32),
            ln2_g=jnp.ones((embed_dim,), jnp.float32),
            ln2_b=jnp.zeros((embed_dim,), jnp.float32),
            in_w=in_w, in_b=in_b, out_w=out_w, out_b=out_b,
            mlp_w1=w1, mlp_b1=b1, mlp_w2=w2, mlp_b2=b2,
            aeg=aeg,
        ))
    return params


# --------------------------------------------------------------------------

if __name__ == "__main__":
    image_size, patch_size = 16, 8
    num_layers, num_heads, embed_dim, mlp_dim = 2, 4, 32, 64
    B, C = 2, 3

    key = jax.random.PRNGKey(0)
    kp, kx = jax.random.split(key)
    params = init_params(kp, image_size, patch_size, num_layers, num_heads,
                         embed_dim, mlp_dim)
    x = jax.random.normal(kx, (B, C, image_size, image_size), jnp.float32)

    fwd = jax.jit(functools.partial(vit_forward, patch_size=patch_size,
                                    num_heads=num_heads))
    out = fwd(params, x)
    jax.block_until_ready(out)
    assert out.shape == (B, embed_dim) and out.dtype == jnp.float32
    assert bool(jnp.all(jnp.isfinite(out)))
    print("KERNEL_OK")
</pallas_src>

<mosaic_0001>
module attributes {stable_mosaic.version = 11 : i64} {
  func.func @_matmul_kernel(%arg0: i32, %arg1: i32, %arg2: i32, %arg3: memref<16x32xf32, #tpu.memory_space<vmem>>, %arg4: memref<1x32xf32, #tpu.memory_space<vmem>>, %arg5: memref<1x32xf32, #tpu.memory_space<vmem>>, %arg6: memref<32x96xbf16, #tpu.memory_space<vmem>>, %arg7: memref<1x96xf32, #tpu.memory_space<vmem>>, %arg8: memref<16x96xbf16, #tpu.memory_space<vmem>>) attributes {dimension_semantics = [#tpu.dimension_semantics<parallel>, #tpu.dimension_semantics<parallel>, #tpu.dimension_semantics<arbitrary>], iteration_bounds = array<i64: 1, 1, 1>, scalar_prefetch = 0 : i64, scratch_operands = 0 : i64, tpu.core_type = #tpu.core_type<tc>, window_params = [{transform_indices = @transform_0, window_bounds = array<i64: 16, 32>}, {transform_indices = @transform_1, window_bounds = array<i64: 1, 32>}, {transform_indices = @transform_2, window_bounds = array<i64: 1, 32>}, {transform_indices = @transform_3, window_bounds = array<i64: 32, 96>}, {transform_indices = @transform_4, window_bounds = array<i64: 1, 96>}, {transform_indices = @transform_5, window_bounds = array<i64: 16, 96>}]} {
    %c0 = arith.constant 0 : index
    %c0_0 = arith.constant 0 : index
    %0 = vector.load %arg3[%c0, %c0_0] : memref<16x32xf32, #tpu.memory_space<vmem>>, vector<16x32xf32>
    %cst = arith.constant dense<0.000000e+00> : vector<16xf32>
    %1 = vector.multi_reduction <add>, %0, %cst [1] : vector<16x32xf32> to vector<16xf32>
    %2 = vector.shape_cast %1 : vector<16xf32> to vector<16x1xf32>
    %cst_1 = arith.constant 3.200000e+01 : f32
    %3 = vector.broadcast %cst_1 : f32 to vector<16x1xf32>
    %4 = arith.divf %2, %3 : vector<16x1xf32>
    %5 = vector.broadcast %4 : vector<16x1xf32> to vector<16x32xf32>
    %6 = arith.subf %0, %5 : vector<16x32xf32>
    %7 = arith.mulf %6, %6 : vector<16x32xf32>
    %cst_2 = arith.constant dense<0.000000e+00> : vector<16xf32>
    %8 = vector.multi_reduction <add>, %7, %cst_2 [1] : vector<16x32xf32> to vector<16xf32>
    %9 = vector.shape_cast %8 : vector<16xf32> to vector<16x1xf32>
    %cst_3 = arith.constant 3.200000e+01 : f32
    %10 = vector.broadcast %cst_3 : f32 to vector<16x1xf32>
    %11 = arith.divf %9, %10 : vector<16x1xf32>
    %12 = vector.broadcast %4 : vector<16x1xf32> to vector<16x32xf32>
    %13 = arith.subf %0, %12 : vector<16x32xf32>
    %cst_4 = arith.constant 9.99999974E-6 : f32
    %14 = vector.broadcast %cst_4 : f32 to vector<16x1xf32>
    %15 = arith.addf %11, %14 : vector<16x1xf32>
    %16 = math.rsqrt %15 : vector<16x1xf32>
    %17 = vector.broadcast %16 : vector<16x1xf32> to vector<16x32xf32>
    %18 = arith.mulf %13, %17 : vector<16x32xf32>
    %c0_5 = arith.constant 0 : index
    %c0_6 = arith.constant 0 : index
    %19 = vector.load %arg4[%c0_5, %c0_6] : memref<1x32xf32, #tpu.memory_space<vmem>>, vector<1x32xf32>
    %20 = vector.broadcast %19 : vector<1x32xf32> to vector<16x32xf32>
    %21 = arith.mulf %18, %20 : vector<16x32xf32>
    %c0_7 = arith.constant 0 : index
    %c0_8 = arith.constant 0 : index
    %22 = vector.load %arg5[%c0_7, %c0_8] : memref<1x32xf32, #tpu.memory_space<vmem>>, vector<1x32xf32>
    %23 = vector.broadcast %22 : vector<1x32xf32> to vector<16x32xf32>
    %24 = arith.addf %21, %23 : vector<16x32xf32>
    %25 = arith.truncf %24 : vector<16x32xf32> to vector<16x32xbf16>
    %c0_9 = arith.constant 0 : index
    %c0_10 = arith.constant 0 : index
    %26 = vector.load %arg6[%c0_9, %c0_10] : memref<32x96xbf16, #tpu.memory_space<vmem>>, vector<32x96xbf16>
    %cst_11 = arith.constant dense<0.000000e+00> : vector<16x96xf32>
    %27 = tpu.matmul %25, %26, %cst_11 {dimension_numbers = #tpu.dot_dimension_numbers<[1], [0], [0], [1], [0, 0, 1, 1], [], []>} : vector<16x32xbf16>, vector<32x96xbf16>, vector<16x96xf32> -> vector<16x96xf32>
    %c0_12 = arith.constant 0 : index
    %c0_13 = arith.constant 0 : index
    %28 = vector.load %arg7[%c0_12, %c0_13] : memref<1x96xf32, #tpu.memory_space<vmem>>, vector<1x96xf32>
    %29 = vector.broadcast %28 : vector<1x96xf32> to vector<16x96xf32>
    %30 = arith.addf %27, %29 : vector<16x96xf32>
    %31 = arith.truncf %30 : vector<16x96xf32> to vector<16x96xbf16>
    %c0_14 = arith.constant 0 : index
    %c0_15 = arith.constant 0 : index
    %32 = vector.load %arg8[%c0_14, %c0_15] : memref<16x96xbf16, #tpu.memory_space<vmem>>, vector<16x96xbf16>
    tpu.vector_store %arg8[%c0_14, %c0_15], %31 {strides = array<i32>} : memref<16x96xbf16, #tpu.memory_space<vmem>>, vector<16x96xbf16>,
    return
  }
  func.func @transform_0(%arg0: i32, %arg1: i32, %arg2: i32) -> (i32, i32) {
    %c0_i32 = arith.constant 0 : i32
    return %arg0, %arg2 : i32, i32
  }
  func.func @transform_1(%arg0: i32, %arg1: i32, %arg2: i32) -> (i32, i32) {
    %c0_i32 = arith.constant 0 : i32
    %c0_i32_0 = arith.constant 0 : i32
    return %c0_i32, %arg2 : i32, i32
  }
  func.func @transform_2(%arg0: i32, %arg1: i32, %arg2: i32) -> (i32, i32) {
    %c0_i32 = arith.constant 0 : i32
    %c0_i32_0 = arith.constant 0 : i32
    return %c0_i32, %arg2 : i32, i32
  }
  func.func @transform_3(%arg0: i32, %arg1: i32, %arg2: i32) -> (i32, i32) {
    %c0_i32 = arith.constant 0 : i32
    return %arg2, %arg1 : i32, i32
  }
  func.func @transform_4(%arg0: i32, %arg1: i32, %arg2: i32) -> (i32, i32) {
    %c0_i32 = arith.constant 0 : i32
    %c0_i32_0 = arith.constant 0 : i32
    return %c0_i32, %arg1 : i32, i32
  }
  func.func @transform_5(%arg0: i32, %arg1: i32, %arg2: i32) -> (i32, i32) {
    %c0_i32 = arith.constant 0 : i32
    return %arg0, %arg1 : i32, i32
  }
}

module attributes {stable_mosaic.version = 11 : i64} {
  func.func @_matmul_kernel(%arg0: i32, %arg1: i32, %arg2: i32, %arg3: memref<8x192xf32, #tpu.memory_space<vmem>>, %arg4: memref<192x32xbf16, #tpu.memory_space<vmem>>, %arg5: memref<1x32xf32, #tpu.memory_space<vmem>>, %arg6: memref<8x32xf32, #tpu.memory_space<vmem>>) attributes {dimension_semantics = [#tpu.dimension_semantics<parallel>, #tpu.dimension_semantics<parallel>, #tpu.dimension_semantics<arbitrary>], iteration_bounds = array<i64: 1, 1, 1>, scalar_prefetch = 0 : i64, scratch_operands = 0 : i64, tpu.core_type = #tpu.core_type<tc>, window_params = [{transform_indices = @transform_0, window_bounds = array<i64: 8, 192>}, {transform_indices = @transform_1, window_bounds = array<i64: 192, 32>}, {transform_indices = @transform_2, window_bounds = array<i64: 1, 32>}, {transform_indices = @transform_3, window_bounds = array<i64: 8, 32>}]} {
    %c0 = arith.constant 0 : index
    %c0_0 = arith.constant 0 : index
    %0 = vector.load %arg3[%c0, %c0_0] : memref<8x192xf32, #tpu.memory_space<vmem>>, vector<8x192xf32>
    %1 = arith.truncf %0 : vector<8x192xf32> to vector<8x192xbf16>
    %c0_1 = arith.constant 0 : index
    %c0_2 = arith.constant 0 : index
    %2 = vector.load %arg4[%c0_1, %c0_2] : memref<192x32xbf16, #tpu.memory_space<vmem>>, vector<192x32xbf16>
    %cst = arith.constant dense<0.000000e+00> : vector<8x32xf32>
    %3 = tpu.matmul %1, %2, %cst {dimension_numbers = #tpu.dot_dimension_numbers<[1], [0], [0], [1], [0, 0, 1, 1], [], []>} : vector<8x192xbf16>, vector<192x32xbf16>, vector<8x32xf32> -> vector<8x32xf32>
    %c0_3 = arith.constant 0 : index
    %c0_4 = arith.constant 0 : index
    %4 = vector.load %arg5[%c0_3, %c0_4] : memref<1x32xf32, #tpu.memory_space<vmem>>, vector<1x32xf32>
    %5 = vector.broadcast %4 : vector<1x32xf32> to vector<8x32xf32>
    %6 = arith.addf %3, %5 : vector<8x32xf32>
    %c0_5 = arith.constant 0 : index
    %c0_6 = arith.constant 0 : index
    %7 = vector.load %arg6[%c0_5, %c0_6] : memref<8x32xf32, #tpu.memory_space<vmem>>, vector<8x32xf32>
    tpu.vector_store %arg6[%c0_5, %c0_6], %6 {strides = array<i32>} : memref<8x32xf32, #tpu.memory_space<vmem>>, vector<8x32xf32>,
    return
  }
  func.func @transform_0(%arg0: i32, %arg1: i32, %arg2: i32) -> (i32, i32) {
    %c0_i32 = arith.constant 0 : i32
    return %arg0, %arg2 : i32, i32
  }
  func.func @transform_1(%arg0: i32, %arg1: i32, %arg2: i32) -> (i32, i32) {
    %c0_i32 = arith.constant 0 : i32
    return %arg2, %arg1 : i32, i32
  }
  func.func @transform_2(%arg0: i32, %arg1: i32, %arg2: i32) -> (i32, i32) {
    %c0_i32 = arith.constant 0 : i32
    %c0_i32_0 = arith.constant 0 : i32
    return %c0_i32, %arg1 : i32, i32
  }
  func.func @transform_3(%arg0: i32, %arg1: i32, %arg2: i32) -> (i32, i32) {
    %c0_i32 = arith.constant 0 : i32
    return %arg0, %arg1 : i32, i32
  }
}

module attributes {stable_mosaic.version = 11 : i64} {
  func.func @_matmul_kernel(%arg0: i32, %arg1: i32, %arg2: i32, %arg3: memref<16x32xbf16, #tpu.memory_space<vmem>>, %arg4: memref<32x32xbf16, #tpu.memory_space<vmem>>, %arg5: memref<1x32xf32, #tpu.memory_space<vmem>>, %arg6: memref<16x32xf32, #tpu.memory_space<vmem>>, %arg7: memref<16x32xf32, #tpu.memory_space<vmem>>) attributes {dimension_semantics = [#tpu.dimension_semantics<parallel>, #tpu.dimension_semantics<parallel>, #tpu.dimension_semantics<arbitrary>], iteration_bounds = array<i64: 1, 1, 1>, scalar_prefetch = 0 : i64, scratch_operands = 0 : i64, tpu.core_type = #tpu.core_type<tc>, window_params = [{transform_indices = @transform_0, window_bounds = array<i64: 16, 32>}, {transform_indices = @transform_1, window_bounds = array<i64: 32, 32>}, {transform_indices = @transform_2, window_bounds = array<i64: 1, 32>}, {transform_indices = @transform_3, window_bounds = array<i64: 16, 32>}, {transform_indices = @transform_4, window_bounds = array<i64: 16, 32>}]} {
    %c0 = arith.constant 0 : index
    %c0_0 = arith.constant 0 : index
    %0 = vector.load %arg3[%c0, %c0_0] : memref<16x32xbf16, #tpu.memory_space<vmem>>, vector<16x32xbf16>
    %c0_1 = arith.constant 0 : index
    %c0_2 = arith.constant 0 : index
    %1 = vector.load %arg4[%c0_1, %c0_2] : memref<32x32xbf16, #tpu.memory_space<vmem>>, vector<32x32xbf16>
    %cst = arith.constant dense<0.000000e+00> : vector<16x32xf32>
    %2 = tpu.matmul %0, %1, %cst {dimension_numbers = #tpu.dot_dimension_numbers<[1], [0], [0], [1], [0, 0, 1, 1], [], []>} : vector<16x32xbf16>, vector<32x32xbf16>, vector<16x32xf32> -> vector<16x32xf32>
    %c0_3 = arith.constant 0 : index
    %c0_4 = arith.constant 0 : index
    %3 = vector.load %arg5[%c0_3, %c0_4] : memref<1x32xf32, #tpu.memory_space<vmem>>, vector<1x32xf32>
    %4 = vector.broadcast %3 : vector<1x32xf32> to vector<16x32xf32>
    %5 = arith.addf %2, %4 : vector<16x32xf32>
    %c0_5 = arith.constant 0 : index
    %c0_6 = arith.constant 0 : index
    %6 = vector.load %arg6[%c0_5, %c0_6] : memref<16x32xf32, #tpu.memory_space<vmem>>, vector<16x32xf32>
    %7 = arith.addf %5, %6 : vector<16x32xf32>
    %c0_7 = arith.constant 0 : index
    %c0_8 = arith.constant 0 : index
    %8 = vector.load %arg7[%c0_7, %c0_8] : memref<16x32xf32, #tpu.memory_space<vmem>>, vector<16x32xf32>
    tpu.vector_store %arg7[%c0_7, %c0_8], %7 {strides = array<i32>} : memref<16x32xf32, #tpu.memory_space<vmem>>, vector<16x32xf32>,
    return
  }
  func.func @transform_0(%arg0: i32, %arg1: i32, %arg2: i32) -> (i32, i32) {
    %c0_i32 = arith.constant 0 : i32
    return %arg0, %arg2 : i32, i32
  }
  func.func @transform_1(%arg0: i32, %arg1: i32, %arg2: i32) -> (i32, i32) {
    %c0_i32 = arith.constant 0 : i32
    return %arg2, %arg1 : i32, i32
  }
  func.func @transform_2(%arg0: i32, %arg1: i32, %arg2: i32) -> (i32, i32) {
    %c0_i32 = arith.constant 0 : i32
    %c0_i32_0 = arith.constant 0 : i32
    return %c0_i32, %arg1 : i32, i32
  }
  func.func @transform_3(%arg0: i32, %arg1: i32, %arg2: i32) -> (i32, i32) {
    %c0_i32 = arith.constant 0 : i32
    return %arg0, %arg1 : i32, i32
  }
  func.func @transform_4(%arg0: i32, %arg1: i32, %arg2: i32) -> (i32, i32) {
    %c0_i32 = arith.constant 0 : i32
    return %arg0, %arg1 : i32, i32
  }
}

module attributes {stable_mosaic.version = 11 : i64} {
  func.func @_attention_kernel(%arg0: i32, %arg1: memref<8x2x96xbf16, #tpu.memory_space<vmem>>, %arg2: memref<8x2x32xbf16, #tpu.memory_space<vmem>>) attributes {dimension_semantics = [#tpu.dimension_semantics<parallel>], iteration_bounds = array<i64: 1>, scalar_prefetch = 0 : i64, scratch_operands = 0 : i64, tpu.core_type = #tpu.core_type<tc>, window_params = [{transform_indices = @transform_0, window_bounds = array<i64: 8, 2, 96>}, {transform_indices = @transform_1, window_bounds = array<i64: 8, 2, 32>}]} {
    %c0 = arith.constant 0 : index
    %c0_0 = arith.constant 0 : index
    %c0_1 = arith.constant 0 : index
    %0 = vector.load %arg1[%c0, %c0_0, %c0_1] : memref<8x2x96xbf16, #tpu.memory_space<vmem>>, vector<8x2x96xbf16>
    %1 = vector.extract_strided_slice %0 {offsets = [0, 0, 0], sizes = [8, 2, 8], strides = [1, 1, 1]} : vector<8x2x96xbf16> to vector<8x2x8xbf16>
    %2 = vector.extract_strided_slice %0 {offsets = [0, 0, 32], sizes = [8, 2, 8], strides = [1, 1, 1]} : vector<8x2x96xbf16> to vector<8x2x8xbf16>
    %3 = vector.extract_strided_slice %0 {offsets = [0, 0, 64], sizes = [8, 2, 8], strides = [1, 1, 1]} : vector<8x2x96xbf16> to vector<8x2x8xbf16>
    "tpu.trace_start"() <{level = 10 : i32, message = "nqd,nkd->nqk"}> : () -> ()
    %cst = arith.constant dense<0.000000e+00> : vector<8x2x2xf32>
    %4 = tpu.matmul %1, %2, %cst {dimension_numbers = #tpu.dot_dimension_numbers<[2], [2], [1], [1], [0, 0, 0, 1, 1, 1], [0], [0]>} : vector<8x2x8xbf16>, vector<8x2x8xbf16>, vector<8x2x2xf32> -> vector<8x2x2xf32>
    "tpu.trace_stop"() : () -> ()
    %cst_2 = arith.constant 0.353553385 : f32
    %5 = vector.broadcast %cst_2 : f32 to vector<8x2x2xf32>
    %6 = arith.mulf %4, %5 : vector<8x2x2xf32>
    %cst_3 = arith.constant dense<0xFF800000> : vector<8x2xf32>
    %7 = vector.multi_reduction <maximumf>, %6, %cst_3 [2] : vector<8x2x2xf32> to vector<8x2xf32>
    %8 = vector.shape_cast %7 : vector<8x2xf32> to vector<8x2x1xf32>
    %9 = vector.broadcast %8 : vector<8x2x1xf32> to vector<8x2x2xf32>
    %10 = arith.subf %6, %9 : vector<8x2x2xf32>
    %11 = math.exp %10 : vector<8x2x2xf32>
    %cst_4 = arith.constant dense<0.000000e+00> : vector<8x2xf32>
    %12 = vector.multi_reduction <add>, %11, %cst_4 [2] : vector<8x2x2xf32> to vector<8x2xf32>
    %13 = vector.shape_cast %12 : vector<8x2xf32> to vector<8x2x1xf32>
    %14 = tpu.reciprocal %13 {approx = true} : vector<8x2x1xf32> -> vector<8x2x1xf32>
    %15 = vector.broadcast %14 : vector<8x2x1xf32> to vector<8x2x2xf32>
    %16 = arith.mulf %11, %15 : vector<8x2x2xf32>
    %17 = arith.truncf %16 : vector<8x2x2xf32> to vector<8x2x2xbf16>
    "tpu.trace_start"() <{level = 10 : i32, message = "nqk,nkd->nqd"}> : () -> ()
    %cst_5 = arith.constant dense<0.000000e+00> : vector<8x2x8xf32>
    %18 = tpu.matmul %17, %3, %cst_5 {dimension_numbers = #tpu.dot_dimension_numbers<[2], [1], [1], [2], [0, 0, 0, 1, 1, 2], [0], [0]>} : vector<8x2x2xbf16>, vector<8x2x8xbf16>, vector<8x2x8xf32> -> vector<8x2x8xf32>
    "tpu.trace_stop"() : () -> ()
    %19 = arith.truncf %18 : vector<8x2x8xf32> to vector<8x2x8xbf16>
    %c0_6 = arith.constant 0 : index
    %c0_7 = arith.constant 0 : index
    %c0_8 = arith.constant 0 : index
    %20 = vector.load %arg2[%c0_6, %c0_7, %c0_8] : memref<8x2x32xbf16, #tpu.memory_space<vmem>>, vector<8x2x8xbf16>
    tpu.vector_store %arg2[%c0_6, %c0_7, %c0_8], %19 {strides = array<i32>} : memref<8x2x32xbf16, #tpu.memory_space<vmem>>, vector<8x2x8xbf16>,
    %21 = vector.extract_strided_slice %0 {offsets = [0, 0, 8], sizes = [8, 2, 8], strides = [1, 1, 1]} : vector<8x2x96xbf16> to vector<8x2x8xbf16>
    %22 = vector.extract_strided_slice %0 {offsets = [0, 0, 40], sizes = [8, 2, 8], strides = [1, 1, 1]} : vector<8x2x96xbf16> to vector<8x2x8xbf16>
    %23 = vector.extract_strided_slice %0 {offsets = [0, 0, 72], sizes = [8, 2, 8], strides = [1, 1, 1]} : vector<8x2x96xbf16> to vector<8x2x8xbf16>
    "tpu.trace_start"() <{level = 10 : i32, message = "nqd,nkd->nqk"}> : () -> ()
    %cst_9 = arith.constant dense<0.000000e+00> : vector<8x2x2xf32>
    %24 = tpu.matmul %21, %22, %cst_9 {dimension_numbers = #tpu.dot_dimension_numbers<[2], [2], [1], [1], [0, 0, 0, 1, 1, 1], [0], [0]>} : vector<8x2x8xbf16>, vector<8x2x8xbf16>, vector<8x2x2xf32> -> vector<8x2x2xf32>
    "tpu.trace_stop"() : () -> ()
    %cst_10 = arith.constant 0.353553385 : f32
    %25 = vector.broadcast %cst_10 : f32 to vector<8x2x2xf32>
    %26 = arith.mulf %24, %25 : vector<8x2x2xf32>
    %cst_11 = arith.constant dense<0xFF800000> : vector<8x2xf32>
    %27 = vector.multi_reduction <maximumf>, %26, %cst_11 [2] : vector<8x2x2xf32> to vector<8x2xf32>
    %28 = vector.shape_cast %27 : vector<8x2xf32> to vector<8x2x1xf32>
    %29 = vector.broadcast %28 : vector<8x2x1xf32> to vector<8x2x2xf32>
    %30 = arith.subf %26, %29 : vector<8x2x2xf32>
    %31 = math.exp %30 : vector<8x2x2xf32>
    %cst_12 = arith.constant dense<0.000000e+00> : vector<8x2xf32>
    %32 = vector.multi_reduction <add>, %31, %cst_12 [2] : vector<8x2x2xf32> to vector<8x2xf32>
    %33 = vector.shape_cast %32 : vector<8x2xf32> to vector<8x2x1xf32>
    %34 = tpu.reciprocal %33 {approx = true} : vector<8x2x1xf32> -> vector<8x2x1xf32>
    %35 = vector.broadcast %34 : vector<8x2x1xf32> to vector<8x2x2xf32>
    %36 = arith.mulf %31, %35 : vector<8x2x2xf32>
    %37 = arith.truncf %36 : vector<8x2x2xf32> to vector<8x2x2xbf16>
    "tpu.trace_start"() <{level = 10 : i32, message = "nqk,nkd->nqd"}> : () -> ()
    %cst_13 = arith.constant dense<0.000000e+00> : vector<8x2x8xf32>
    %38 = tpu.matmul %37, %23, %cst_13 {dimension_numbers = #tpu.dot_dimension_numbers<[2], [1], [1], [2], [0, 0, 0, 1, 1, 2], [0], [0]>} : vector<8x2x2xbf16>, vector<8x2x8xbf16>, vector<8x2x8xf32> -> vector<8x2x8xf32>
    "tpu.trace_stop"() : () -> ()
    %39 = arith.truncf %38 : vector<8x2x8xf32> to vector<8x2x8xbf16>
    %c0_14 = arith.constant 0 : index
    %c0_15 = arith.constant 0 : index
    %c8 = arith.constant 8 : index
    %40 = vector.load %arg2[%c0_14, %c0_15, %c8] : memref<8x2x32xbf16, #tpu.memory_space<vmem>>, vector<8x2x8xbf16>
    tpu.vector_store %arg2[%c0_14, %c0_15, %c8], %39 {strides = array<i32>} : memref<8x2x32xbf16, #tpu.memory_space<vmem>>, vector<8x2x8xbf16>,
    %41 = vector.extract_strided_slice %0 {offsets = [0, 0, 16], sizes = [8, 2, 8], strides = [1, 1, 1]} : vector<8x2x96xbf16> to vector<8x2x8xbf16>
    %42 = vector.extract_strided_slice %0 {offsets = [0, 0, 48], sizes = [8, 2, 8], strides = [1, 1, 1]} : vector<8x2x96xbf16> to vector<8x2x8xbf16>
    %43 = vector.extract_strided_slice %0 {offsets = [0, 0, 80], sizes = [8, 2, 8], strides = [1, 1, 1]} : vector<8x2x96xbf16> to vector<8x2x8xbf16>
    "tpu.trace_start"() <{level = 10 : i32, message = "nqd,nkd->nqk"}> : () -> ()
    %cst_16 = arith.constant dense<0.000000e+00> : vector<8x2x2xf32>
    %44 = tpu.matmul %41, %42, %cst_16 {dimension_numbers = #tpu.dot_dimension_numbers<[2], [2], [1], [1], [0, 0, 0, 1, 1, 1], [0], [0]>} : vector<8x2x8xbf16>, vector<8x2x8xbf16>, vector<8x2x2xf32> -> vector<8x2x2xf32>
    "tpu.trace_stop"() : () -> ()
    %cst_17 = arith.constant 0.353553385 : f32
    %45 = vector.broadcast %cst_17 : f32 to vector<8x2x2xf32>
    %46 = arith.mulf %44, %45 : vector<8x2x2xf32>
    %cst_18 = arith.constant dense<0xFF800000> : vector<8x2xf32>
    %47 = vector.multi_reduction <maximumf>, %46, %cst_18 [2] : vector<8x2x2xf32> to vector<8x2xf32>
    %48 = vector.shape_cast %47 : vector<8x2xf32> to vector<8x2x1xf32>
    %49 = vector.broadcast %48 : vector<8x2x1xf32> to vector<8x2x2xf32>
    %50 = arith.subf %46, %49 : vector<8x2x2xf32>
    %51 = math.exp %50 : vector<8x2x2xf32>
    %cst_19 = arith.constant dense<0.000000e+00> : vector<8x2xf32>
    %52 = vector.multi_reduction <add>, %51, %cst_19 [2] : vector<8x2x2xf32> to vector<8x2xf32>
    %53 = vector.shape_cast %52 : vector<8x2xf32> to vector<8x2x1xf32>
    %54 = tpu.reciprocal %53 {approx = true} : vector<8x2x1xf32> -> vector<8x2x1xf32>
    %55 = vector.broadcast %54 : vector<8x2x1xf32> to vector<8x2x2xf32>
    %56 = arith.mulf %51, %55 : vector<8x2x2xf32>
    %57 = arith.truncf %56 : vector<8x2x2xf32> to vector<8x2x2xbf16>
    "tpu.trace_start"() <{level = 10 : i32, message = "nqk,nkd->nqd"}> : () -> ()
    %cst_20 = arith.constant dense<0.000000e+00> : vector<8x2x8xf32>
    %58 = tpu.matmul %57, %43, %cst_20 {dimension_numbers = #tpu.dot_dimension_numbers<[2], [1], [1], [2], [0, 0, 0, 1, 1, 2], [0], [0]>} : vector<8x2x2xbf16>, vector<8x2x8xbf16>, vector<8x2x8xf32> -> vector<8x2x8xf32>
    "tpu.trace_stop"() : () -> ()
    %59 = arith.truncf %58 : vector<8x2x8xf32> to vector<8x2x8xbf16>
    %c0_21 = arith.constant 0 : index
    %c0_22 = arith.constant 0 : index
    %c16 = arith.constant 16 : index
    %60 = vector.load %arg2[%c0_21, %c0_22, %c16] : memref<8x2x32xbf16, #tpu.memory_space<vmem>>, vector<8x2x8xbf16>
    tpu.vector_store %arg2[%c0_21, %c0_22, %c16], %59 {strides = array<i32>} : memref<8x2x32xbf16, #tpu.memory_space<vmem>>, vector<8x2x8xbf16>,
    %61 = vector.extract_strided_slice %0 {offsets = [0, 0, 24], sizes = [8, 2, 8], strides = [1, 1, 1]} : vector<8x2x96xbf16> to vector<8x2x8xbf16>
    %62 = vector.extract_strided_slice %0 {offsets = [0, 0, 56], sizes = [8, 2, 8], strides = [1, 1, 1]} : vector<8x2x96xbf16> to vector<8x2x8xbf16>
    %63 = vector.extract_strided_slice %0 {offsets = [0, 0, 88], sizes = [8, 2, 8], strides = [1, 1, 1]} : vector<8x2x96xbf16> to vector<8x2x8xbf16>
    "tpu.trace_start"() <{level = 10 : i32, message = "nqd,nkd->nqk"}> : () -> ()
    %cst_23 = arith.constant dense<0.000000e+00> : vector<8x2x2xf32>
    %64 = tpu.matmul %61, %62, %cst_23 {dimension_numbers = #tpu.dot_dimension_numbers<[2], [2], [1], [1], [0, 0, 0, 1, 1, 1], [0], [0]>} : vector<8x2x8xbf16>, vector<8x2x8xbf16>, vector<8x2x2xf32> -> vector<8x2x2xf32>
    "tpu.trace_stop"() : () -> ()
    %cst_24 = arith.constant 0.353553385 : f32
    %65 = vector.broadcast %cst_24 : f32 to vector<8x2x2xf32>
    %66 = arith.mulf %64, %65 : vector<8x2x2xf32>
    %cst_25 = arith.constant dense<0xFF800000> : vector<8x2xf32>
    %67 = vector.multi_reduction <maximumf>, %66, %cst_25 [2] : vector<8x2x2xf32> to vector<8x2xf32>
    %68 = vector.shape_cast %67 : vector<8x2xf32> to vector<8x2x1xf32>
    %69 = vector.broadcast %68 : vector<8x2x1xf32> to vector<8x2x2xf32>
    %70 = arith.subf %66, %69 : vector<8x2x2xf32>
    %71 = math.exp %70 : vector<8x2x2xf32>
    %cst_26 = arith.constant dense<0.000000e+00> : vector<8x2xf32>
    %72 = vector.multi_reduction <add>, %71, %cst_26 [2] : vector<8x2x2xf32> to vector<8x2xf32>
    %73 = vector.shape_cast %72 : vector<8x2xf32> to vector<8x2x1xf32>
    %74 = tpu.reciprocal %73 {approx = true} : vector<8x2x1xf32> -> vector<8x2x1xf32>
    %75 = vector.broadcast %74 : vector<8x2x1xf32> to vector<8x2x2xf32>
    %76 = arith.mulf %71, %75 : vector<8x2x2xf32>
    %77 = arith.truncf %76 : vector<8x2x2xf32> to vector<8x2x2xbf16>
    "tpu.trace_start"() <{level = 10 : i32, message = "nqk,nkd->nqd"}> : () -> ()
    %cst_27 = arith.constant dense<0.000000e+00> : vector<8x2x8xf32>
    %78 = tpu.matmul %77, %63, %cst_27 {dimension_numbers = #tpu.dot_dimension_numbers<[2], [1], [1], [2], [0, 0, 0, 1, 1, 2], [0], [0]>} : vector<8x2x2xbf16>, vector<8x2x8xbf16>, vector<8x2x8xf32> -> vector<8x2x8xf32>
    "tpu.trace_stop"() : () -> ()
    %79 = arith.truncf %78 : vector<8x2x8xf32> to vector<8x2x8xbf16>
    %c0_28 = arith.constant 0 : index
    %c0_29 = arith.constant 0 : index
    %c24 = arith.constant 24 : index
    %80 = vector.load %arg2[%c0_28, %c0_29, %c24] : memref<8x2x32xbf16, #tpu.memory_space<vmem>>, vector<8x2x8xbf16>
    tpu.vector_store %arg2[%c0_28, %c0_29, %c24], %79 {strides = array<i32>} : memref<8x2x32xbf16, #tpu.memory_space<vmem>>, vector<8x2x8xbf16>,
    return
  }
  func.func @transform_0(%arg0: i32) -> (i32, i32, i32) {
    %c0_i32 = arith.constant 0 : i32
    %c0_i32_0 = arith.constant 0 : i32
    %c0_i32_1 = arith.constant 0 : i32
    return %arg0, %c0_i32, %c0_i32_0 : i32, i32, i32
  }
  func.func @transform_1(%arg0: i32) -> (i32, i32, i32) {
    %c0_i32 = arith.constant 0 : i32
    %c0_i32_0 = arith.constant 0 : i32
    %c0_i32_1 = arith.constant 0 : i32
    return %arg0, %c0_i32, %c0_i32_0 : i32, i32, i32
  }
}

module attributes {stable_mosaic.version = 11 : i64} {
  func.func @_matmul_kernel(%arg0: i32, %arg1: i32, %arg2: i32, %arg3: memref<16x32xf32, #tpu.memory_space<vmem>>, %arg4: memref<1x32xf32, #tpu.memory_space<vmem>>, %arg5: memref<1x32xf32, #tpu.memory_space<vmem>>, %arg6: memref<32x64xbf16, #tpu.memory_space<vmem>>, %arg7: memref<1x64xf32, #tpu.memory_space<vmem>>, %arg8: memref<16x64xbf16, #tpu.memory_space<vmem>>, %arg9: memref<8x128xf32, #tpu.memory_space<vmem>>) attributes {dimension_semantics = [#tpu.dimension_semantics<parallel>, #tpu.dimension_semantics<parallel>, #tpu.dimension_semantics<arbitrary>], iteration_bounds = array<i64: 1, 1, 1>, scalar_prefetch = 0 : i64, scratch_operands = 0 : i64, tpu.core_type = #tpu.core_type<tc>, window_params = [{transform_indices = @transform_0, window_bounds = array<i64: 16, 32>}, {transform_indices = @transform_1, window_bounds = array<i64: 1, 32>}, {transform_indices = @transform_2, window_bounds = array<i64: 1, 32>}, {transform_indices = @transform_3, window_bounds = array<i64: 32, 64>}, {transform_indices = @transform_4, window_bounds = array<i64: 1, 64>}, {transform_indices = @transform_5, window_bounds = array<i64: 16, 64>}, {transform_indices = @transform_6, window_bounds = array<i64: 8, 128>}]} {
    %c0 = arith.constant 0 : index
    %c0_0 = arith.constant 0 : index
    %0 = vector.load %arg3[%c0, %c0_0] : memref<16x32xf32, #tpu.memory_space<vmem>>, vector<16x32xf32>
    %cst = arith.constant dense<0.000000e+00> : vector<16xf32>
    %1 = vector.multi_reduction <add>, %0, %cst [1] : vector<16x32xf32> to vector<16xf32>
    %2 = vector.shape_cast %1 : vector<16xf32> to vector<16x1xf32>
    %cst_1 = arith.constant 3.200000e+01 : f32
    %3 = vector.broadcast %cst_1 : f32 to vector<16x1xf32>
    %4 = arith.divf %2, %3 : vector<16x1xf32>
    %5 = vector.broadcast %4 : vector<16x1xf32> to vector<16x32xf32>
    %6 = arith.subf %0, %5 : vector<16x32xf32>
    %7 = arith.mulf %6, %6 : vector<16x32xf32>
    %cst_2 = arith.constant dense<0.000000e+00> : vector<16xf32>
    %8 = vector.multi_reduction <add>, %7, %cst_2 [1] : vector<16x32xf32> to vector<16xf32>
    %9 = vector.shape_cast %8 : vector<16xf32> to vector<16x1xf32>
    %cst_3 = arith.constant 3.200000e+01 : f32
    %10 = vector.broadcast %cst_3 : f32 to vector<16x1xf32>
    %11 = arith.divf %9, %10 : vector<16x1xf32>
    %12 = vector.broadcast %4 : vector<16x1xf32> to vector<16x32xf32>
    %13 = arith.subf %0, %12 : vector<16x32xf32>
    %cst_4 = arith.constant 9.99999974E-6 : f32
    %14 = vector.broadcast %cst_4 : f32 to vector<16x1xf32>
    %15 = arith.addf %11, %14 : vector<16x1xf32>
    %16 = math.rsqrt %15 : vector<16x1xf32>
    %17 = vector.broadcast %16 : vector<16x1xf32> to vector<16x32xf32>
    %18 = arith.mulf %13, %17 : vector<16x32xf32>
    %c0_5 = arith.constant 0 : index
    %c0_6 = arith.constant 0 : index
    %19 = vector.load %arg4[%c0_5, %c0_6] : memref<1x32xf32, #tpu.memory_space<vmem>>, vector<1x32xf32>
    %20 = vector.broadcast %19 : vector<1x32xf32> to vector<16x32xf32>
    %21 = arith.mulf %18, %20 : vector<16x32xf32>
    %c0_7 = arith.constant 0 : index
    %c0_8 = arith.constant 0 : index
    %22 = vector.load %arg5[%c0_7, %c0_8] : memref<1x32xf32, #tpu.memory_space<vmem>>, vector<1x32xf32>
    %23 = vector.broadcast %22 : vector<1x32xf32> to vector<16x32xf32>
    %24 = arith.addf %21, %23 : vector<16x32xf32>
    %25 = arith.truncf %24 : vector<16x32xf32> to vector<16x32xbf16>
    %c0_9 = arith.constant 0 : index
    %c0_10 = arith.constant 0 : index
    %26 = vector.load %arg6[%c0_9, %c0_10] : memref<32x64xbf16, #tpu.memory_space<vmem>>, vector<32x64xbf16>
    %cst_11 = arith.constant dense<0.000000e+00> : vector<16x64xf32>
    %27 = tpu.matmul %25, %26, %cst_11 {dimension_numbers = #tpu.dot_dimension_numbers<[1], [0], [0], [1], [0, 0, 1, 1], [], []>} : vector<16x32xbf16>, vector<32x64xbf16>, vector<16x64xf32> -> vector<16x64xf32>
    %c0_12 = arith.constant 0 : index
    %c0_13 = arith.constant 0 : index
    %28 = vector.load %arg7[%c0_12, %c0_13] : memref<1x64xf32, #tpu.memory_space<vmem>>, vector<1x64xf32>
    %29 = vector.broadcast %28 : vector<1x64xf32> to vector<16x64xf32>
    %30 = arith.addf %27, %29 : vector<16x64xf32>
    %31 = arith.truncf %30 : vector<16x64xf32> to vector<16x64xbf16>
    %c0_14 = arith.constant 0 : index
    %c0_15 = arith.constant 0 : index
    %32 = vector.load %arg8[%c0_14, %c0_15] : memref<16x64xbf16, #tpu.memory_space<vmem>>, vector<16x64xbf16>
    tpu.vector_store %arg8[%c0_14, %c0_15], %31 {strides = array<i32>} : memref<16x64xbf16, #tpu.memory_space<vmem>>, vector<16x64xbf16>,
    %c16_i32 = arith.constant 16 : i32
    %33 = arith.muli %arg0, %c16_i32 : i32
    %34 = tpu.iota {dimensions = array<i32: 0>} : vector<16x64xi32>
    %35 = vector.broadcast %33 : i32 to vector<16x64xi32>
    %36 = arith.addi %34, %35 : vector<16x64xi32>
    %c10_i32 = arith.constant 10 : i32
    %37 = vector.broadcast %c10_i32 : i32 to vector<16x64xi32>
    %38 = arith.cmpi slt, %36, %37 : vector<16x64xi32>
    %cst_16 = arith.constant 0.000000e+00 : f32
    %39 = vector.broadcast %cst_16 : f32 to vector<16x64xf32>
    %40 = arith.select %38, %30, %39 : vector<16x64xi1>, vector<16x64xf32>
    %41 = vector.shape_cast %40 : vector<16x64xf32> to vector<1x16x64xf32>
    %cst_17 = arith.constant dense<0.000000e+00> : vector<1xf32>
    %42 = vector.multi_reduction <add>, %41, %cst_17 [1, 2] : vector<1x16x64xf32> to vector<1xf32>
    %43 = vector.shape_cast %42 : vector<1xf32> to vector<1x1x1xf32>
    %44 = vector.extract %43[0, 0, 0] : f32 from vector<1x1x1xf32>
    %45 = arith.mulf %40, %40 : vector<16x64xf32>
    %46 = vector.shape_cast %45 : vector<16x64xf32> to vector<1x16x64xf32>
    %cst_18 = arith.constant dense<0.000000e+00> : vector<1xf32>
    %47 = vector.multi_reduction <add>, %46, %cst_18 [1, 2] : vector<1x16x64xf32> to vector<1xf32>
    %48 = vector.shape_cast %47 : vector<1xf32> to vector<1x1x1xf32>
    %49 = vector.extract %48[0, 0, 0] : f32 from vector<1x1x1xf32>
    %50 = tpu.iota {dimensions = array<i32: 1>} : vector<8x128xi32>
    %c0_i32 = arith.constant 0 : i32
    %51 = vector.broadcast %c0_i32 : i32 to vector<8x128xi32>
    %52 = arith.cmpi eq, %50, %51 : vector<8x128xi32>
    %cst_19 = arith.constant 0.000000e+00 : f32
    %53 = vector.broadcast %44 : f32 to vector<8x128xf32>
    %54 = vector.broadcast %cst_19 : f32 to vector<8x128xf32>
    %55 = arith.select %52, %53, %54 : vector<8x128xi1>, vector<8x128xf32>
    %c1_i32 = arith.constant 1 : i32
    %56 = vector.broadcast %c1_i32 : i32 to vector<8x128xi32>
    %57 = arith.cmpi eq, %50, %56 : vector<8x128xi32>
    %cst_20 = arith.constant 0.000000e+00 : f32
    %58 = vector.broadcast %49 : f32 to vector<8x128xf32>
    %59 = vector.broadcast %cst_20 : f32 to vector<8x128xf32>
    %60 = arith.select %57, %58, %59 : vector<8x128xi1>, vector<8x128xf32>
    %61 = arith.addf %55, %60 : vector<8x128xf32>
    %c0_21 = arith.constant 0 : index
    %c0_22 = arith.constant 0 : index
    %62 = vector.load %arg9[%c0_21, %c0_22] : memref<8x128xf32, #tpu.memory_space<vmem>>, vector<8x128xf32>
    tpu.vector_store %arg9[%c0_21, %c0_22], %61 {strides = array<i32>} : memref<8x128xf32, #tpu.memory_space<vmem>>, vector<8x128xf32>,
    return
  }
  func.func @transform_0(%arg0: i32, %arg1: i32, %arg2: i32) -> (i32, i32) {
    %c0_i32 = arith.constant 0 : i32
    return %arg0, %arg2 : i32, i32
  }
  func.func @transform_1(%arg0: i32, %arg1: i32, %arg2: i32) -> (i32, i32) {
    %c0_i32 = arith.constant 0 : i32
    %c0_i32_0 = arith.constant 0 : i32
    return %c0_i32, %arg2 : i32, i32
  }
  func.func @transform_2(%arg0: i32, %arg1: i32, %arg2: i32) -> (i32, i32) {
    %c0_i32 = arith.constant 0 : i32
    %c0_i32_0 = arith.constant 0 : i32
    return %c0_i32, %arg2 : i32, i32
  }
  func.func @transform_3(%arg0: i32, %arg1: i32, %arg2: i32) -> (i32, i32) {
    %c0_i32 = arith.constant 0 : i32
    return %arg2, %arg1 : i32, i32
  }
  func.func @transform_4(%arg0: i32, %arg1: i32, %arg2: i32) -> (i32, i32) {
    %c0_i32 = arith.constant 0 : i32
    %c0_i32_0 = arith.constant 0 : i32
    return %c0_i32, %arg1 : i32, i32
  }
  func.func @transform_5(%arg0: i32, %arg1: i32, %arg2: i32) -> (i32, i32) {
    %c0_i32 = arith.constant 0 : i32
    return %arg0, %arg1 : i32, i32
  }
  func.func @transform_6(%arg0: i32, %arg1: i32, %arg2: i32) -> (i32, i32) {
    %c0_i32 = arith.constant 0 : i32
    return %arg0, %arg1 : i32, i32
  }
}

module attributes {stable_mosaic.version = 11 : i64} {
  func.func @_layernorm_kernel(%arg0: memref<2x32xf32, #tpu.memory_space<vmem>>, %arg1: memref<1x32xf32, #tpu.memory_space<vmem>>, %arg2: memref<1x32xf32, #tpu.memory_space<vmem>>, %arg3: memref<2x32xf32, #tpu.memory_space<vmem>>) attributes {dimension_semantics = [], scalar_prefetch = 0 : i64, scratch_operands = 0 : i64, tpu.core_type = #tpu.core_type<tc>} {
    %c0 = arith.constant 0 : index
    %c0_0 = arith.constant 0 : index
    %0 = vector.load %arg0[%c0, %c0_0] : memref<2x32xf32, #tpu.memory_space<vmem>>, vector<2x32xf32>
    %cst = arith.constant dense<0.000000e+00> : vector<2xf32>
    %1 = vector.multi_reduction <add>, %0, %cst [1] : vector<2x32xf32> to vector<2xf32>
    %2 = vector.shape_cast %1 : vector<2xf32> to vector<2x1xf32>
    %cst_1 = arith.constant 3.200000e+01 : f32
    %3 = vector.broadcast %cst_1 : f32 to vector<2x1xf32>
    %4 = arith.divf %2, %3 : vector<2x1xf32>
    %5 = vector.broadcast %4 : vector<2x1xf32> to vector<2x32xf32>
    %6 = arith.subf %0, %5 : vector<2x32xf32>
    %7 = arith.mulf %6, %6 : vector<2x32xf32>
    %cst_2 = arith.constant dense<0.000000e+00> : vector<2xf32>
    %8 = vector.multi_reduction <add>, %7, %cst_2 [1] : vector<2x32xf32> to vector<2xf32>
    %9 = vector.shape_cast %8 : vector<2xf32> to vector<2x1xf32>
    %cst_3 = arith.constant 3.200000e+01 : f32
    %10 = vector.broadcast %cst_3 : f32 to vector<2x1xf32>
    %11 = arith.divf %9, %10 : vector<2x1xf32>
    %12 = vector.broadcast %4 : vector<2x1xf32> to vector<2x32xf32>
    %13 = arith.subf %0, %12 : vector<2x32xf32>
    %cst_4 = arith.constant 9.99999974E-6 : f32
    %14 = vector.broadcast %cst_4 : f32 to vector<2x1xf32>
    %15 = arith.addf %11, %14 : vector<2x1xf32>
    %16 = math.rsqrt %15 : vector<2x1xf32>
    %17 = vector.broadcast %16 : vector<2x1xf32> to vector<2x32xf32>
    %18 = arith.mulf %13, %17 : vector<2x32xf32>
    %c0_5 = arith.constant 0 : index
    %c0_6 = arith.constant 0 : index
    %19 = vector.load %arg1[%c0_5, %c0_6] : memref<1x32xf32, #tpu.memory_space<vmem>>, vector<1x32xf32>
    %20 = vector.broadcast %19 : vector<1x32xf32> to vector<2x32xf32>
    %21 = arith.mulf %18, %20 : vector<2x32xf32>
    %c0_7 = arith.constant 0 : index
    %c0_8 = arith.constant 0 : index
    %22 = vector.load %arg2[%c0_7, %c0_8] : memref<1x32xf32, #tpu.memory_space<vmem>>, vector<1x32xf32>
    %23 = vector.broadcast %22 : vector<1x32xf32> to vector<2x32xf32>
    %24 = arith.addf %21, %23 : vector<2x32xf32>
    %c0_9 = arith.constant 0 : index
    %c0_10 = arith.constant 0 : index
    %25 = vector.load %arg3[%c0_9, %c0_10] : memref<2x32xf32, #tpu.memory_space<vmem>>, vector<2x32xf32>
    tpu.vector_store %arg3[%c0_9, %c0_10], %24 {strides = array<i32>} : memref<2x32xf32, #tpu.memory_space<vmem>>, vector<2x32xf32>,
    return
  }
}

module attributes {stable_mosaic.version = 11 : i64} {
  func.func @_matmul_kernel(%arg0: i32, %arg1: i32, %arg2: i32, %arg3: memref<16x64xbf16, #tpu.memory_space<vmem>>, %arg4: memref<6xf32, #tpu.memory_space<smem>>, %arg5: memref<2xf32, #tpu.memory_space<smem>>, %arg6: memref<64x32xbf16, #tpu.memory_space<vmem>>, %arg7: memref<1x32xf32, #tpu.memory_space<vmem>>, %arg8: memref<16x32xf32, #tpu.memory_space<vmem>>, %arg9: memref<16x32xf32, #tpu.memory_space<vmem>>) attributes {dimension_semantics = [#tpu.dimension_semantics<parallel>, #tpu.dimension_semantics<parallel>, #tpu.dimension_semantics<arbitrary>], iteration_bounds = array<i64: 1, 1, 1>, scalar_prefetch = 0 : i64, scratch_operands = 0 : i64, tpu.core_type = #tpu.core_type<tc>, window_params = [{transform_indices = @transform_0, window_bounds = array<i64: 16, 64>}, {transform_indices = @transform_1, window_bounds = array<i64: 6>}, {transform_indices = @transform_2, window_bounds = array<i64: 2>}, {transform_indices = @transform_3, window_bounds = array<i64: 64, 32>}, {transform_indices = @transform_4, window_bounds = array<i64: 1, 32>}, {transform_indices = @transform_5, window_bounds = array<i64: 16, 32>}, {transform_indices = @transform_6, window_bounds = array<i64: 16, 32>}]} {
    %c0 = arith.constant 0 : index
    %c0_0 = arith.constant 0 : index
    %0 = vector.load %arg3[%c0, %c0_0] : memref<16x64xbf16, #tpu.memory_space<vmem>>, vector<16x64xbf16>
    %1 = arith.extf %0 : vector<16x64xbf16> to vector<16x64xf32>
    %c0_1 = arith.constant 0 : index
    %2 = memref.load %arg5[%c0_1] : memref<2xf32, #tpu.memory_space<smem>>
    %c1 = arith.constant 1 : index
    %3 = memref.load %arg5[%c1] : memref<2xf32, #tpu.memory_space<smem>>
    %c0_2 = arith.constant 0 : index
    %4 = memref.load %arg4[%c0_2] : memref<6xf32, #tpu.memory_space<smem>>
    %c1_3 = arith.constant 1 : index
    %5 = memref.load %arg4[%c1_3] : memref<6xf32, #tpu.memory_space<smem>>
    %c2 = arith.constant 2 : index
    %6 = memref.load %arg4[%c2] : memref<6xf32, #tpu.memory_space<smem>>
    %c3 = arith.constant 3 : index
    %7 = memref.load %arg4[%c3] : memref<6xf32, #tpu.memory_space<smem>>
    %c4 = arith.constant 4 : index
    %8 = memref.load %arg4[%c4] : memref<6xf32, #tpu.memory_space<smem>>
    %c5 = arith.constant 5 : index
    %9 = memref.load %arg4[%c5] : memref<6xf32, #tpu.memory_space<smem>>
    %10 = vector.broadcast %2 : f32 to vector<16x64xf32>
    %11 = arith.subf %1, %10 : vector<16x64xf32>
    %12 = vector.broadcast %3 : f32 to vector<16x64xf32>
    %13 = arith.mulf %11, %12 : vector<16x64xf32>
    %cst = arith.constant 1.000000e+00 : f32
    %14 = arith.addf %cst, %5 : f32
    %15 = vector.broadcast %14 : f32 to vector<16x64xf32>
    %16 = arith.mulf %13, %15 : vector<16x64xf32>
    %17 = vector.broadcast %4 : f32 to vector<16x64xf32>
    %18 = arith.addf %16, %17 : vector<16x64xf32>
    %cst_4 = arith.constant 1.000000e+00 : f32
    %19 = arith.addf %cst_4, %7 : f32
    %20 = vector.broadcast %19 : f32 to vector<16x64xf32>
    %21 = arith.mulf %13, %20 : vector<16x64xf32>
    %22 = vector.broadcast %6 : f32 to vector<16x64xf32>
    %23 = arith.addf %21, %22 : vector<16x64xf32>
    %cst_5 = arith.constant 0.000000e+00 : f32
    %24 = vector.broadcast %cst_5 : f32 to vector<16x64xf32>
    %25 = arith.subf %24, %23 : vector<16x64xf32>
    %26 = math.exp %25 : vector<16x64xf32>
    %cst_6 = arith.constant 1.000000e+00 : f32
    %27 = vector.broadcast %cst_6 : f32 to vector<16x64xf32>
    %28 = arith.addf %27, %26 : vector<16x64xf32>
    %cst_7 = arith.constant 1.000000e+00 : f32
    %29 = vector.broadcast %cst_7 : f32 to vector<16x64xf32>
    %30 = arith.divf %29, %28 : vector<16x64xf32>
    %31 = arith.mulf %18, %30 : vector<16x64xf32>
    %32 = vector.broadcast %8 : f32 to vector<16x64xf32>
    %33 = arith.mulf %32, %31 : vector<16x64xf32>
    %34 = math.tanh %13 : vector<16x64xf32>
    %35 = vector.broadcast %9 : f32 to vector<16x64xf32>
    %36 = arith.mulf %35, %34 : vector<16x64xf32>
    %cst_8 = arith.constant 1.000000e+00 : f32
    %37 = vector.broadcast %cst_8 : f32 to vector<16x64xf32>
    %38 = arith.addf %37, %36 : vector<16x64xf32>
    %39 = arith.mulf %13, %38 : vector<16x64xf32>
    %40 = arith.addf %39, %33 : vector<16x64xf32>
    %41 = arith.truncf %40 : vector<16x64xf32> to vector<16x64xbf16>
    %c0_9 = arith.constant 0 : index
    %c0_10 = arith.constant 0 : index
    %42 = vector.load %arg6[%c0_9, %c0_10] : memref<64x32xbf16, #tpu.memory_space<vmem>>, vector<64x32xbf16>
    %cst_11 = arith.constant dense<0.000000e+00> : vector<16x32xf32>
    %43 = tpu.matmul %41, %42, %cst_11 {dimension_numbers = #tpu.dot_dimension_numbers<[1], [0], [0], [1], [0, 0, 1, 1], [], []>} : vector<16x64xbf16>, vector<64x32xbf16>, vector<16x32xf32> -> vector<16x32xf32>
    %c0_12 = arith.constant 0 : index
    %c0_13 = arith.constant 0 : index
    %44 = vector.load %arg7[%c0_12, %c0_13] : memref<1x32xf32, #tpu.memory_space<vmem>>, vector<1x32xf32>
    %45 = vector.broadcast %44 : vector<1x32xf32> to vector<16x32xf32>
    %46 = arith.addf %43, %45 : vector<16x32xf32>
    %c0_14 = arith.constant 0 : index
    %c0_15 = arith.constant 0 : index
    %47 = vector.load %arg8[%c0_14, %c0_15] : memref<16x32xf32, #tpu.memory_space<vmem>>, vector<16x32xf32>
    %48 = arith.addf %46, %47 : vector<16x32xf32>
    %c0_16 = arith.constant 0 : index
    %c0_17 = arith.constant 0 : index
    %49 = vector.load %arg9[%c0_16, %c0_17] : memref<16x32xf32, #tpu.memory_space<vmem>>, vector<16x32xf32>
    tpu.vector_store %arg9[%c0_16, %c0_17], %48 {strides = array<i32>} : memref<16x32xf32, #tpu.memory_space<vmem>>, vector<16x32xf32>,
    return
  }
  func.func @transform_0(%arg0: i32, %arg1: i32, %arg2: i32) -> (i32, i32) {
    %c0_i32 = arith.constant 0 : i32
    return %arg0, %arg2 : i32, i32
  }
  func.func @transform_1(%arg0: i32, %arg1: i32, %arg2: i32) -> i32 {
    %c0_i32 = arith.constant 0 : i32
    %c0_i32_0 = arith.constant 0 : i32
    return %c0_i32 : i32
  }
  func.func @transform_2(%arg0: i32, %arg1: i32, %arg2: i32) -> i32 {
    %c0_i32 = arith.constant 0 : i32
    %c0_i32_0 = arith.constant 0 : i32
    return %c0_i32 : i32
  }
  func.func @transform_3(%arg0: i32, %arg1: i32, %arg2: i32) -> (i32, i32) {
    %c0_i32 = arith.constant 0 : i32
    return %arg2, %arg1 : i32, i32
  }
  func.func @transform_4(%arg0: i32, %arg1: i32, %arg2: i32) -> (i32, i32) {
    %c0_i32 = arith.constant 0 : i32
    %c0_i32_0 = arith.constant 0 : i32
    return %c0_i32, %arg1 : i32, i32
  }
  func.func @transform_5(%arg0: i32, %arg1: i32, %arg2: i32) -> (i32, i32) {
    %c0_i32 = arith.constant 0 : i32
    return %arg0, %arg1 : i32, i32
  }
  func.func @transform_6(%arg0: i32, %arg1: i32, %arg2: i32) -> (i32, i32) {
    %c0_i32 = arith.constant 0 : i32
    return %arg0, %arg1 : i32, i32
  }
}

</mosaic_0001>

<llo_original>
// kernel: vit_forward.15
$region0: #{vit_forward.15}
  #allocation0 [shape = 'u32[]', space=smem, size = 0x4, offset = 0x4, fixed_abs, tag = 'smem constant byte address 0x4 - core index']
  #allocation1 [shape = 'u32[72,128]{1,0:T(1,128)}', space=vmem, size = 0x9000, scoped, tag = 'internal scratch']
  %s0 = inlined_call_operand.vmem [shape: bf16[16,32], index: 0, kind: input, shape index: {}]
  %s1 = inlined_call_operand.vmem [shape: bf16[32,32], index: 1, kind: input, shape index: {}]
  %s2 = inlined_call_operand.vmem [shape: f32[1,32], index: 2, kind: input, shape index: {}]
  %s3 = inlined_call_operand.vmem [shape: f32[16,32], index: 3, kind: input, shape index: {}]
  %s4 = inlined_call_operand.vmem [shape: f32[16,32], index: 4, kind: output, shape index: {}]
  %s5 = sld [smem:[#allocation0]]
  $region26: #{vit_forward.15} parent=0
    _
  %s7 = ssub.s32 1, %s5
  %s8 = scalar_select 0, %s7, %s5
  // Predicated region
  $region2: #{vit_forward.15} parent=0 // pred_check
    _
  $region3: #{vit_forward.15} parent=0 // pred_check_branch
    %10 = sbr.rel (0) target = $region5
  $region4: #{vit_forward.15} parent=0 // pred_region
    _
  $region5: #{vit_forward.15} parent=0 // pred_fallthru
    _
  // Predicated region
  $region6: #{vit_forward.15} parent=0 // pred_check
    _
  $region7: #{vit_forward.15} parent=0 // pred_check_branch
    %12 = sbr.rel (0) target = $region9
  $region8: #{vit_forward.15} parent=0 // pred_region
    _
  $region9: #{vit_forward.15} parent=0 // pred_fallthru
    _
  // Predicated region
  $region10: #{vit_forward.15} parent=0 // pred_check
    _
  $region11: #{vit_forward.15} parent=0 // pred_check_branch
    %14 = sbr.rel (0) target = $region13
  $region12: #{vit_forward.15} parent=0 // pred_region
    _
  $region13: #{vit_forward.15} parent=0 // pred_fallthru
    _
  // Predicated region
  $region14: #{vit_forward.15} parent=0 // pred_check
    _
  $region15: #{vit_forward.15} parent=0 // pred_check_branch
    %16 = sbr.rel (0) target = $region17
  $region16: #{vit_forward.15} parent=0 // pred_region
    _
  $region17: #{vit_forward.15} parent=0 // pred_fallthru
    _
  %v18 = vld [vmem:[%s0] sm:$0xf]
  %v19 = vld [vmem:[%s0 + $0x4] sm:$0xf]
  %v20 = vld [vmem:[%s1] sm:$0xf]
  %v21 = vld [vmem:[%s1 + $0x4] sm:$0xf]
  %v22 = vld [vmem:[%s1 + $0x8] sm:$0xf]
  %v23 = vld [vmem:[%s1 + $0xc] sm:$0xf]
  %v24 = vld [vmem:[%s2] sm:$0x1]
  %v26 = vperm.slane %v24, 0
  %v30 = vunpack.c.l.b16 %v18
  %v31 = vunpack.c.l.b16 %v19
  %v32 = vpack.c.b16 %v31, %v30
  %v37 = vunpack.c.l.b16 %v20
  %v38 = vunpack.c.l.b16 %v21
  %v39 = vunpack.c.l.b16 %v22
  %v40 = vunpack.c.l.b16 %v23
  %v41 = vpack.c.b16 %v38, %v37
  %v42 = vpack.c.b16 %v40, %v39
  %vm45 = vcmask 261120
  %v47 = vsel %vm45, %v32, 0
  %49 = vmatpush.bf16.msra.mxu0 0
  %50 = vmatpush.bf16.msra.mxu0 0
  %51 = vmatpush.bf16.msra.mxu0 0
  %52 = vmatpush.bf16.msra.mxu0 0
  %53 = vmatpush.bf16.msra.mxu0 0
  %54 = vmatpush.bf16.msra.mxu0 0
  %55 = vmatpush.bf16.msra.mxu0 %v42
  %56 = vmatpush.bf16.msra.mxu0 %v41
  %57 = vmatmul.bf16.gmra.mxu0 %v47
  %v58 = vpop.f32.mrf.mxu0
  %v59 = vadd.f32 %v26, %v58
  %v60 = vpop.f32.mrf.mxu0
  %v61 = vadd.f32 %v26, %v60
  %62 = vdwg.mxu0
  %v63 = vld [vmem:[%s3] sm:$0xff]
  %v64 = vld [vmem:[%s3 + $0x8] sm:$0xff]
  %v65 = vadd.f32 %v59, %v63
  %v66 = vadd.f32 %v61, %v64
  %67 = vst.msk [vmem:[%s4] sm:$0xff] %vm45, %v65
  %68 = vst.msk [vmem:[%s4 + $0x8] sm:$0xff] %vm45, %v66
  // Predicated region
  $region18: #{vit_forward.15} parent=0 // pred_check
    _
  $region19: #{vit_forward.15} parent=0 // pred_check_branch
    %70 = sbr.rel (0) target = $region21
  $region20: #{vit_forward.15} parent=0 // pred_region
    _
  $region21: #{vit_forward.15} parent=0 // pred_fallthru
    _
  // Predicated region
  $region22: #{vit_forward.15} parent=0 // pred_check
    _
  $region23: #{vit_forward.15} parent=0 // pred_check_branch
    %72 = sbr.rel (0) target = $region25
  $region24: #{vit_forward.15} parent=0 // pred_region
    _
  $region25: #{vit_forward.15} parent=0 // pred_fallthru
    _

// kernel: vit_forward.12
$region0: #{vit_forward.12}
  #allocation0 [shape = 'u32[]', space=smem, size = 0x4, offset = 0x4, fixed_abs, tag = 'smem constant byte address 0x4 - core index']
  #allocation1 [shape = 'u32[72,128]{1,0:T(1,128)}', space=vmem, size = 0x9000, scoped, tag = 'internal scratch']
  %s0 = inlined_call_operand.vmem [shape: f32[8,192], index: 0, kind: input, shape index: {}]
  %s1 = inlined_call_operand.vmem [shape: bf16[192,32], index: 1, kind: input, shape index: {}]
  %s2 = inlined_call_operand.vmem [shape: f32[1,32], index: 2, kind: input, shape index: {}]
  %s3 = inlined_call_operand.vmem [shape: f32[8,32], index: 3, kind: output, shape index: {}]
  %s4 = sld [smem:[#allocation0]]
  $region22: #{vit_forward.12} parent=0
    _
  %s6 = ssub.s32 1, %s4
  %s7 = scalar_select 0, %s6, %s4
  // Predicated region
  $region2: #{vit_forward.12} parent=0 // pred_check
    _
  $region3: #{vit_forward.12} parent=0 // pred_check_branch
    %9 = sbr.rel (0) target = $region5
  $region4: #{vit_forward.12} parent=0 // pred_region
    _
  $region5: #{vit_forward.12} parent=0 // pred_fallthru
    _
  // Predicated region
  $region6: #{vit_forward.12} parent=0 // pred_check
    _
  $region7: #{vit_forward.12} parent=0 // pred_check_branch
    %11 = sbr.rel (0) target = $region9
  $region8: #{vit_forward.12} parent=0 // pred_region
    _
  $region9: #{vit_forward.12} parent=0 // pred_fallthru
    _
  // Predicated region
  $region10: #{vit_forward.12} parent=0 // pred_check
    _
  $region11: #{vit_forward.12} parent=0 // pred_check_branch
    %13 = sbr.rel (0) target = $region13
  $region12: #{vit_forward.12} parent=0 // pred_region
    _
  $region13: #{vit_forward.12} parent=0 // pred_fallthru
    _
  %v15 = vld [vmem:[%s0] sm:$0xff]
  %v16 = vld [vmem:[%s0 + $0x8] sm:$0xff]
  %v17 = vpack.c.bf16 %v15, %v15
  %v18 = vpack.c.bf16 %v16, %v16
  %v19 = vld [vmem:[%s1] sm:$0xf]
  %v20 = vld [vmem:[%s1 + $0x4] sm:$0xf]
  %v21 = vld [vmem:[%s1 + $0x8] sm:$0xf]
  %v22 = vld [vmem:[%s1 + $0xc] sm:$0xf]
  %v23 = vld [vmem:[%s1 + $0x10] sm:$0xf]
  %v24 = vld [vmem:[%s1 + $0x14] sm:$0xf]
  %v25 = vld [vmem:[%s1 + $0x18] sm:$0xf]
  %v26 = vld [vmem:[%s1 + $0x1c] sm:$0xf]
  %v27 = vld [vmem:[%s1 + $0x20] sm:$0xf]
  %v28 = vld [vmem:[%s1 + $0x24] sm:$0xf]
  %v29 = vld [vmem:[%s1 + $0x28] sm:$0xf]
  %v30 = vld [vmem:[%s1 + $0x2c] sm:$0xf]
  %v31 = vld [vmem:[%s1 + $0x30] sm:$0xf]
  %v32 = vld [vmem:[%s1 + $0x34] sm:$0xf]
  %v33 = vld [vmem:[%s1 + $0x38] sm:$0xf]
  %v34 = vld [vmem:[%s1 + $0x3c] sm:$0xf]
  %v35 = vld [vmem:[%s1 + $0x40] sm:$0xf]
  %v36 = vld [vmem:[%s1 + $0x44] sm:$0xf]
  %v37 = vld [vmem:[%s1 + $0x48] sm:$0xf]
  %v38 = vld [vmem:[%s1 + $0x4c] sm:$0xf]
  %v39 = vld [vmem:[%s1 + $0x50] sm:$0xf]
  %v40 = vld [vmem:[%s1 + $0x54] sm:$0xf]
  %v41 = vld [vmem:[%s1 + $0x58] sm:$0xf]
  %v42 = vld [vmem:[%s1 + $0x5c] sm:$0xf]
  %v43 = vld [vmem:[%s2] sm:$0x1]
  %v45 = vperm.slane %v43, 0
  %v71 = vunpack.c.l.b16 %v19
  %v72 = vunpack.c.l.b16 %v20
  %v73 = vunpack.c.l.b16 %v21
  %v74 = vunpack.c.l.b16 %v22
  %v75 = vunpack.c.l.b16 %v23
  %v76 = vunpack.c.l.b16 %v24
  %v77 = vunpack.c.l.b16 %v25
  %v78 = vunpack.c.l.b16 %v26
  %v79 = vunpack.c.l.b16 %v27
  %v80 = vunpack.c.l.b16 %v28
  %v81 = vunpack.c.l.b16 %v29
  %v82 = vunpack.c.l.b16 %v30
  %v83 = vunpack.c.l.b16 %v31
  %v84 = vunpack.c.l.b16 %v32
  %v85 = vunpack.c.l.b16 %v33
  %v86 = vunpack.c.l.b16 %v34
  %v87 = vunpack.c.l.b16 %v35
  %v88 = vunpack.c.l.b16 %v36
  %v89 = vunpack.c.l.b16 %v37
  %v90 = vunpack.c.l.b16 %v38
  %v91 = vunpack.c.l.b16 %v39
  %v92 = vunpack.c.l.b16 %v40
  %v93 = vunpack.c.l.b16 %v41
  %v94 = vunpack.c.l.b16 %v42
  %v95 = vpack.c.b16 %v72, %v71
  %v96 = vpack.c.b16 %v74, %v73
  %v97 = vpack.c.b16 %v76, %v75
  %v98 = vpack.c.b16 %v78, %v77
  %v99 = vpack.c.b16 %v80, %v79
  %v100 = vpack.c.b16 %v82, %v81
  %v101 = vpack.c.b16 %v84, %v83
  %v102 = vpack.c.b16 %v86, %v85
  %v103 = vpack.c.b16 %v88, %v87
  %v104 = vpack.c.b16 %v90, %v89
  %v105 = vpack.c.b16 %v92, %v91
  %v106 = vpack.c.b16 %v94, %v93
  %vm119 = vcmask 523264
  %v121 = vsel %vm119, %v18, 0
  %123 = vmatpush.bf16.msra.mxu0 %v102
  %124 = vmatpush.bf16.msra.mxu0 %v101
  %125 = vmatpush.bf16.msra.mxu0 %v100
  %126 = vmatpush.bf16.msra.mxu0 %v99
  %127 = vmatpush.bf16.msra.mxu0 %v98
  %128 = vmatpush.bf16.msra.mxu0 %v97
  %129 = vmatpush.bf16.msra.mxu0 %v96
  %130 = vmatpush.bf16.msra.mxu0 %v95
  %131 = vmatmul.bf16.gmra.mxu0 %v17
  %v132 = vpop.f32.mrf.mxu0
  %v133 = vadd.f32 %v45, %v132
  %v134 = vpop.f32.mrf.mxu0
  %135 = vdwg.mxu0
  %136 = vmatpush.bf16.msra.mxu0 0
  %137 = vmatpush.bf16.msra.mxu0 0
  %138 = vmatpush.bf16.msra.mxu0 0
  %139 = vmatpush.bf16.msra.mxu0 0
  %140 = vmatpush.bf16.msra.mxu0 %v106
  %141 = vmatpush.bf16.msra.mxu0 %v105
  %142 = vmatpush.bf16.msra.mxu0 %v104
  %143 = vmatpush.bf16.msra.mxu0 %v103
  %144 = vmatmul.bf16.gmra.mxu0 %v121
  %v145 = vpop.f32.mrf.mxu0
  %v146 = vadd.f32 %v133, %v145
  %v147 = vpop.f32.mrf.mxu0
  %148 = vdwg.mxu0
  %vm149 = vcmask 261120
  %150 = vst.msk [vmem:[%s3] sm:$0xff] %vm149, %v146
  // Predicated region
  $region14: #{vit_forward.12} parent=0 // pred_check
    _
  $region15: #{vit_forward.12} parent=0 // pred_check_branch
    %152 = sbr.rel (0) target = $region17
  $region16: #{vit_forward.12} parent=0 // pred_region
    _
  $region17: #{vit_forward.12} parent=0 // pred_fallthru
    _
  // Predicated region
  $region18: #{vit_forward.12} parent=0 // pred_check
    _
  $region19: #{vit_forward.12} parent=0 // pred_check_branch
    %154 = sbr.rel (0) target = $region21
  $region20: #{vit_forward.12} parent=0 // pred_region
    _
  $region21: #{vit_forward.12} parent=0 // pred_fallthru
    _

// kernel: vit_forward.13
$region0: #{vit_forward.13}
  #allocation0 [shape = 'u32[]', space=smem, size = 0x4, offset = 0x4, fixed_abs, tag = 'smem constant byte address 0x4 - core index']
  #allocation1 [shape = 'u32[72,128]{1,0:T(1,128)}', space=vmem, size = 0x9000, scoped, tag = 'internal scratch']
  %s0 = inlined_call_operand.vmem [shape: f32[16,32], index: 0, kind: input, shape index: {}]
  %s1 = inlined_call_operand.vmem [shape: f32[1,32], index: 1, kind: input, shape index: {}]
  %s2 = inlined_call_operand.vmem [shape: f32[1,32], index: 2, kind: input, shape index: {}]
  %s3 = inlined_call_operand.vmem [shape: bf16[32,96], index: 3, kind: input, shape index: {}]
  %s4 = inlined_call_operand.vmem [shape: f32[1,96], index: 4, kind: input, shape index: {}]
  %s5 = inlined_call_operand.vmem [shape: bf16[16,96], index: 5, kind: output, shape index: {}]
  %s6 = sld [smem:[#allocation0]]
  $region30: #{vit_forward.13} parent=0
    _
  %s8 = ssub.s32 1, %s6
  %s9 = scalar_select 0, %s8, %s6
  // Predicated region
  $region2: #{vit_forward.13} parent=0 // pred_check
    _
  $region3: #{vit_forward.13} parent=0 // pred_check_branch
    %11 = sbr.rel (0) target = $region5
  $region4: #{vit_forward.13} parent=0 // pred_region
    _
  $region5: #{vit_forward.13} parent=0 // pred_fallthru
    _
  // Predicated region
  $region6: #{vit_forward.13} parent=0 // pred_check
    _
  $region7: #{vit_forward.13} parent=0 // pred_check_branch
    %13 = sbr.rel (0) target = $region9
  $region8: #{vit_forward.13} parent=0 // pred_region
    _
  $region9: #{vit_forward.13} parent=0 // pred_fallthru
    _
  // Predicated region
  $region10: #{vit_forward.13} parent=0 // pred_check
    _
  $region11: #{vit_forward.13} parent=0 // pred_check_branch
    %15 = sbr.rel (0) target = $region13
  $region12: #{vit_forward.13} parent=0 // pred_region
    _
  $region13: #{vit_forward.13} parent=0 // pred_fallthru
    _
  // Predicated region
  $region14: #{vit_forward.13} parent=0 // pred_check
    _
  $region15: #{vit_forward.13} parent=0 // pred_check_branch
    %17 = sbr.rel (0) target = $region17
  $region16: #{vit_forward.13} parent=0 // pred_region
    _
  $region17: #{vit_forward.13} parent=0 // pred_fallthru
    _
  // Predicated region
  $region18: #{vit_forward.13} parent=0 // pred_check
    _
  $region19: #{vit_forward.13} parent=0 // pred_check_branch
    %19 = sbr.rel (0) target = $region21
  $region20: #{vit_forward.13} parent=0 // pred_region
    _
  $region21: #{vit_forward.13} parent=0 // pred_fallthru
    _
  %v21 = vld [vmem:[%s0] sm:$0xff]
  %v22 = vld [vmem:[%s0 + $0x8] sm:$0xff]
  %vm23 = vcmask 261120
  %v24 = vsel %vm23, %v21, 0.0
  %25 = vadd.xlane.f32.xlu0 %v24
  %v26 = vpop.xlane.xlu0 %25
  %v27 = vsel %vm23, %v22, 0.0
  %28 = vadd.xlane.f32.xlu0 %v27
  %v29 = vpop.xlane.xlu0 %28
  %v30 = vrcp.pop 32.0
  %v31 = vmul.f32 32.0, %v30
  %v32 = vsub.f32 1.0, %v31
  %v33 = vmul.f32 %v30, %v32
  %v34 = vadd.f32 %v30, %v33
  %vm35 = vweird.f32 %v30
  %v36 = vsel %vm35, %v30, %v34
  %v37 = vmul.f32 %v26, %v36
  %v38 = vmul.f32 %v29, %v36
  %v39 = vsub.f32 %v21, %v37
  %v40 = vsub.f32 %v22, %v38
  %v41 = vmul.f32 %v39, %v39
  %v42 = vmul.f32 %v40, %v40
  %v43 = vsel %vm23, %v41, 0.0
  %44 = vadd.xlane.f32.xlu0 %v43
  %v45 = vpop.xlane.xlu0 %44
  %v46 = vsel %vm23, %v42, 0.0
  %47 = vadd.xlane.f32.xlu0 %v46
  %v48 = vpop.xlane.xlu0 %47
  %v49 = vmul.f32 %v45, %v36
  %v50 = vmul.f32 %v48, %v36
  %v51 = vadd.f32 %v49, 1e-05
  %v52 = vadd.f32 %v50, 1e-05
  %v53 = vrsqrt.pop %v51
  %v54 = vmul.f32 %v53, %v51
  %v55 = vmul.f32 %v54, %v53
  %v56 = vmul.f32 0.5, %v55
  %v57 = vsub.f32 1.5, %v56
  %v58 = vmul.f32 %v53, %v57
  %vm59 = vweird.f32 %v51
  %vm60 = vweird.f32 %v53
  %vm61 = vmor %vm59, %vm60
  %v62 = vsel %vm61, %v53, %v58
  %v63 = vrsqrt.pop %v52
  %v64 = vmul.f32 %v63, %v52
  %v65 = vmul.f32 %v64, %v63
  %v66 = vmul.f32 0.5, %v65
  %v67 = vsub.f32 1.5, %v66
  %v68 = vmul.f32 %v63, %v67
  %vm69 = vweird.f32 %v52
  %vm70 = vweird.f32 %v63
  %vm71 = vmor %vm69, %vm70
  %v72 = vsel %vm71, %v63, %v68
  %v73 = vmul.f32 %v39, %v62
  %v74 = vmul.f32 %v40, %v72
  %v75 = vld [vmem:[%s1] sm:$0x1]
  %v77 = vperm.slane %v75, 0
  %v79 = vmul.f32 %v73, %v77
  %v80 = vmul.f32 %v74, %v77
  %v81 = vld [vmem:[%s2] sm:$0x1]
  %v83 = vperm.slane %v81, 0
  %v85 = vadd.f32 %v79, %v83
  %v86 = vadd.f32 %v80, %v83
  %v87 = vpack.c.bf16 %v86, %v85
  %v88 = vld [vmem:[%s3] sm:$0xf]
  %v89 = vld [vmem:[%s3 + $0x4] sm:$0xf]
  %v90 = vld [vmem:[%s3 + $0x8] sm:$0xf]
  %v91 = vld [vmem:[%s3 + $0xc] sm:$0xf]
  %v92 = vld [vmem:[%s4] sm:$0x1]
  %v94 = vperm.slane %v92, 0
  %v100 = vunpack.c.l.b16 %v88
  %v101 = vunpack.c.l.b16 %v89
  %v102 = vunpack.c.l.b16 %v90
  %v103 = vunpack.c.l.b16 %v91
  %v104 = vpack.c.b16 %v101, %v100
  %v105 = vpack.c.b16 %v103, %v102
  %v109 = vsel %vm23, %v87, 0
  %111 = vmatpush.bf16.msra.mxu0 0
  %112 = vmatpush.bf16.msra.mxu0 0
  %113 = vmatpush.bf16.msra.mxu0 0
  %114 = vmatpush.bf16.msra.mxu0 0
  %115 = vmatpush.bf16.msra.mxu0 0
  %116 = vmatpush.bf16.msra.mxu0 0
  %117 = vmatpush.bf16.msra.mxu0 %v105
  %118 = vmatpush.bf16.msra.mxu0 %v104
  %119 = vmatmul.bf16.gmra.mxu0 %v109
  %v120 = vpop.f32.mrf.mxu0
  %v121 = vadd.f32 %v94, %v120
  %v122 = vpop.f32.mrf.mxu0
  %v123 = vadd.f32 %v94, %v122
  %124 = vdwg.mxu0
  %v125 = vpack.c.bf16 %v121, %v121
  %v126 = vpack.c.bf16 %v123, %v123
  %vm127 = vcmask 781312
  %128 = vst.msk [vmem:[%s5] sm:$0xf] %vm127, %v125
  %129 = vst.msk [vmem:[%s5 + $0x4] sm:$0xf] %vm127, %v126
  // Predicated region
  $region22: #{vit_forward.13} parent=0 // pred_check
    _
  $region23: #{vit_forward.13} parent=0 // pred_check_branch
    %131 = sbr.rel (0) target = $region25
  $region24: #{vit_forward.13} parent=0 // pred_region
    _
  $region25: #{vit_forward.13} parent=0 // pred_fallthru
    _
  // Predicated region
  $region26: #{vit_forward.13} parent=0 // pred_check
    _
  $region27: #{vit_forward.13} parent=0 // pred_check_branch
    %133 = sbr.rel (0) target = $region29
  $region28: #{vit_forward.13} parent=0 // pred_region
    _
  $region29: #{vit_forward.13} parent=0 // pred_fallthru
    _

// kernel: vit_forward.23
$region0: #{vit_forward.23}
  #allocation0 [shape = 'u32[]', space=smem, size = 0x4, offset = 0x4, fixed_abs, tag = 'smem constant byte address 0x4 - core index']
  #allocation1 [shape = 'u32[72,128]{1,0:T(1,128)}', space=vmem, size = 0x9000, scoped, tag = 'internal scratch']
  %s0 = inlined_call_operand.vmem [shape: f32[2,32], index: 0, kind: input, shape index: {}]
  %s1 = inlined_call_operand.vmem [shape: f32[1,32], index: 1, kind: input, shape index: {}]
  %s2 = inlined_call_operand.vmem [shape: f32[1,32], index: 2, kind: input, shape index: {}]
  %s3 = inlined_call_operand.hbm [shape: f32[2,32], index: 3, kind: output, shape index: {}]
  %s4 = sld [smem:[#allocation0]]
  $region22: #{vit_forward.23} parent=0
    _
  %s6 = ssub.s32 1, %s4
  %s7 = scalar_select 0, %s6, %s4
  $region1: #{vit_forward.23} parent=0
    #allocation2 [shape = 'u8[1024]{0}', space=vmem, size = 0x400, scoped, tag = 'output window, operand 0, single buffered']
    #allocation3 [shape = 's32[1]{0}', space=sflag, size = 0x4, scoped, tag = 'scoped memory for vit_forward.23']
    %8 = vsyncpa [#allocation3], 0
    // Predicated region
    $region2: #{vit_forward.23} parent=1 // pred_check
      _
    $region3: #{vit_forward.23} parent=1 // pred_check_branch
      %10 = sbr.rel (0) target = $region5
    $region4: #{vit_forward.23} parent=1 // pred_region
      _
    $region5: #{vit_forward.23} parent=1 // pred_fallthru
      _
    // Predicated region
    $region6: #{vit_forward.23} parent=1 // pred_check
      _
    $region7: #{vit_forward.23} parent=1 // pred_check_branch
      %12 = sbr.rel (0) target = $region9
    $region8: #{vit_forward.23} parent=1 // pred_region
      _
    $region9: #{vit_forward.23} parent=1 // pred_fallthru
      _
    // Predicated region
    $region10: #{vit_forward.23} parent=1 // pred_check
      _
    $region11: #{vit_forward.23} parent=1 // pred_check_branch
      %14 = sbr.rel (0) target = $region13
    $region12: #{vit_forward.23} parent=1 // pred_region
      _
    $region13: #{vit_forward.23} parent=1 // pred_fallthru
      _
    %v15 = vld [vmem:[%s0] sm:$0x3]
    %vm16 = vcmask 254976
    %v17 = vsel %vm16, %v15, 0.0
    %18 = vadd.xlane.f32.xlu0 %v17
    %v19 = vpop.xlane.xlu0 %18
    %v20 = vrcp.pop 32.0
    %v21 = vmul.f32 32.0, %v20
    %v22 = vsub.f32 1.0, %v21
    %v23 = vmul.f32 %v20, %v22
    %v24 = vadd.f32 %v20, %v23
    %vm25 = vweird.f32 %v20
    %v26 = vsel %vm25, %v20, %v24
    %v27 = vmul.f32 %v19, %v26
    %v28 = vsub.f32 %v15, %v27
    %v29 = vmul.f32 %v28, %v28
    %v30 = vsel %vm16, %v29, 0.0
    %31 = vadd.xlane.f32.xlu0 %v30
    %v32 = vpop.xlane.xlu0 %31
    %v33 = vmul.f32 %v32, %v26
    %v34 = vadd.f32 %v33, 1e-05
    %v35 = vrsqrt.pop %v34
    %v36 = vmul.f32 %v35, %v34
    %v37 = vmul.f32 %v36, %v35
    %v38 = vmul.f32 0.5, %v37
    %v39 = vsub.f32 1.5, %v38
    %v40 = vmul.f32 %v35, %v39
    %vm41 = vweird.f32 %v34
    %vm42 = vweird.f32 %v35
    %vm43 = vmor %vm41, %vm42
    %v44 = vsel %vm43, %v35, %v40
    %v45 = vmul.f32 %v28, %v44
    %v46 = vld [vmem:[%s1] sm:$0x1]
    %v48 = vperm.slane %v46, 0
    %v50 = vmul.f32 %v45, %v48
    %v51 = vld [vmem:[%s2] sm:$0x1]
    %v53 = vperm.slane %v51, 0
    %v55 = vadd.f32 %v50, %v53
    %56 = vst.msk [vmem:[#allocation2] sm:$0x3] %vm16, %v55
    // Predicated region
    $region14: #{vit_forward.23} parent=1 // pred_check
      _
    $region15: #{vit_forward.23} parent=1 // pred_check_branch
      %58 = sbr.rel (0) target = $region17
    $region16: #{vit_forward.23} parent=1 // pred_region
      %60 = vsyncadd [#allocation3], 0
      %s62 = sshll.u32 [#allocation2], 4
      %s63 = int_to_ptr.vmem [resolvable:$true] %s62
      %s64 = sshll.u32 %s3, 4
      %s65 = int_to_ptr.hbm [resolvable:$true] %s64
      %67 = dma.vmem_to_hbm [thread:$0]  %s63, 32, %s65, [#allocation3]
    $region17: #{vit_forward.23} parent=1 // pred_fallthru
      _
    // Predicated region
    $region18: #{vit_forward.23} parent=1 // pred_check
      _
    $region19: #{vit_forward.23} parent=1 // pred_check_branch
      %69 = sbr.rel (0) target = $region21
    $region20: #{vit_forward.23} parent=1 // pred_region
      %71 = dma.done [#allocation3], 32
    $region21: #{vit_forward.23} parent=1 // pred_fallthru
      _
    %72 = vsyncpa [#allocation3], 1

// kernel: vit_forward.16
$region0: #{vit_forward.16}
  #allocation0 [shape = 'u32[]', space=smem, size = 0x4, offset = 0x4, fixed_abs, tag = 'smem constant byte address 0x4 - core index']
  #allocation1 [shape = 'u32[72,128]{1,0:T(1,128)}', space=vmem, size = 0x9000, scoped, tag = 'internal scratch']
  %s0 = inlined_call_operand.vmem [shape: f32[16,32], index: 0, kind: input, shape index: {}]
  %s1 = inlined_call_operand.vmem [shape: f32[1,32], index: 1, kind: input, shape index: {}]
  %s2 = inlined_call_operand.vmem [shape: f32[1,32], index: 2, kind: input, shape index: {}]
  %s3 = inlined_call_operand.vmem [shape: bf16[32,64], index: 3, kind: input, shape index: {}]
  %s4 = inlined_call_operand.vmem [shape: f32[1,64], index: 4, kind: input, shape index: {}]
  %s5 = inlined_call_operand.vmem [shape: bf16[16,64], index: 5, kind: output, shape index: {0}]
  %s6 = inlined_call_operand.vmem [shape: f32[8,128], index: 6, kind: output, shape index: {1}]
  %7 = xla_tuple %s5, %s6
  %s8 = sld [smem:[#allocation0]]
  $region38: #{vit_forward.16} parent=0
    _
  %s10 = ssub.s32 1, %s8
  %s11 = scalar_select 0, %s10, %s8
  // Predicated region
  $region2: #{vit_forward.16} parent=0 // pred_check
    _
  $region3: #{vit_forward.16} parent=0 // pred_check_branch
    %13 = sbr.rel (0) target = $region5
  $region4: #{vit_forward.16} parent=0 // pred_region
    _
  $region5: #{vit_forward.16} parent=0 // pred_fallthru
    _
  // Predicated region
  $region6: #{vit_forward.16} parent=0 // pred_check
    _
  $region7: #{vit_forward.16} parent=0 // pred_check_branch
    %15 = sbr.rel (0) target = $region9
  $region8: #{vit_forward.16} parent=0 // pred_region
    _
  $region9: #{vit_forward.16} parent=0 // pred_fallthru
    _
  // Predicated region
  $region10: #{vit_forward.16} parent=0 // pred_check
    _
  $region11: #{vit_forward.16} parent=0 // pred_check_branch
    %17 = sbr.rel (0) target = $region13
  $region12: #{vit_forward.16} parent=0 // pred_region
    _
  $region13: #{vit_forward.16} parent=0 // pred_fallthru
    _
  // Predicated region
  $region14: #{vit_forward.16} parent=0 // pred_check
    _
  $region15: #{vit_forward.16} parent=0 // pred_check_branch
    %19 = sbr.rel (0) target = $region17
  $region16: #{vit_forward.16} parent=0 // pred_region
    _
  $region17: #{vit_forward.16} parent=0 // pred_fallthru
    _
  // Predicated region
  $region18: #{vit_forward.16} parent=0 // pred_check
    _
  $region19: #{vit_forward.16} parent=0 // pred_check_branch
    %21 = sbr.rel (0) target = $region21
  $region20: #{vit_forward.16} parent=0 // pred_region
    _
  $region21: #{vit_forward.16} parent=0 // pred_fallthru
    _
  %v23 = vld [vmem:[%s0] sm:$0xff]
  %v24 = vld [vmem:[%s0 + $0x8] sm:$0xff]
  %vm25 = vcmask 261120
  %v26 = vsel %vm25, %v23, 0.0
  %27 = vadd.xlane.f32.xlu0 %v26
  %v28 = vpop.xlane.xlu0 %27
  %v29 = vsel %vm25, %v24, 0.0
  %30 = vadd.xlane.f32.xlu0 %v29
  %v31 = vpop.xlane.xlu0 %30
  %v32 = vrcp.pop 32.0
  %v33 = vmul.f32 32.0, %v32
  %v34 = vsub.f32 1.0, %v33
  %v35 = vmul.f32 %v32, %v34
  %v36 = vadd.f32 %v32, %v35
  %vm37 = vweird.f32 %v32
  %v38 = vsel %vm37, %v32, %v36
  %v39 = vmul.f32 %v28, %v38
  %v40 = vmul.f32 %v31, %v38
  %v41 = vsub.f32 %v23, %v39
  %v42 = vsub.f32 %v24, %v40
  %v43 = vmul.f32 %v41, %v41
  %v44 = vmul.f32 %v42, %v42
  %v45 = vsel %vm25, %v43, 0.0
  %46 = vadd.xlane.f32.xlu0 %v45
  %v47 = vpop.xlane.xlu0 %46
  %v48 = vsel %vm25, %v44, 0.0
  %49 = vadd.xlane.f32.xlu0 %v48
  %v50 = vpop.xlane.xlu0 %49
  %v51 = vmul.f32 %v47, %v38
  %v52 = vmul.f32 %v50, %v38
  %v53 = vadd.f32 %v51, 1e-05
  %v54 = vadd.f32 %v52, 1e-05
  %v55 = vrsqrt.pop %v53
  %v56 = vmul.f32 %v55, %v53
  %v57 = vmul.f32 %v56, %v55
  %v58 = vmul.f32 0.5, %v57
  %v59 = vsub.f32 1.5, %v58
  %v60 = vmul.f32 %v55, %v59
  %vm61 = vweird.f32 %v53
  %vm62 = vweird.f32 %v55
  %vm63 = vmor %vm61, %vm62
  %v64 = vsel %vm63, %v55, %v60
  %v65 = vrsqrt.pop %v54
  %v66 = vmul.f32 %v65, %v54
  %v67 = vmul.f32 %v66, %v65
  %v68 = vmul.f32 0.5, %v67
  %v69 = vsub.f32 1.5, %v68
  %v70 = vmul.f32 %v65, %v69
  %vm71 = vweird.f32 %v54
  %vm72 = vweird.f32 %v65
  %vm73 = vmor %vm71, %vm72
  %v74 = vsel %vm73, %v65, %v70
  %v75 = vmul.f32 %v41, %v64
  %v76 = vmul.f32 %v42, %v74
  %v77 = vld [vmem:[%s1] sm:$0x1]
  %v79 = vperm.slane %v77, 0
  %v81 = vmul.f32 %v75, %v79
  %v82 = vmul.f32 %v76, %v79
  %v83 = vld [vmem:[%s2] sm:$0x1]
  %v85 = vperm.slane %v83, 0
  %v87 = vadd.f32 %v81, %v85
  %v88 = vadd.f32 %v82, %v85
  %v89 = vpack.c.bf16 %v88, %v87
  %v90 = vld [vmem:[%s3] sm:$0xf]
  %v91 = vld [vmem:[%s3 + $0x4] sm:$0xf]
  %v92 = vld [vmem:[%s3 + $0x8] sm:$0xf]
  %v93 = vld [vmem:[%s3 + $0xc] sm:$0xf]
  %v94 = vld [vmem:[%s4] sm:$0x1]
  %v96 = vperm.slane %v94, 0
  %v102 = vunpack.c.l.b16 %v90
  %v103 = vunpack.c.l.b16 %v91
  %v104 = vunpack.c.l.b16 %v92
  %v105 = vunpack.c.l.b16 %v93
  %v106 = vpack.c.b16 %v103, %v102
  %v107 = vpack.c.b16 %v105, %v104
  %v111 = vsel %vm25, %v89, 0
  %113 = vmatpush.bf16.msra.mxu0 0
  %114 = vmatpush.bf16.msra.mxu0 0
  %115 = vmatpush.bf16.msra.mxu0 0
  %116 = vmatpush.bf16.msra.mxu0 0
  %117 = vmatpush.bf16.msra.mxu0 0
  %118 = vmatpush.bf16.msra.mxu0 0
  %119 = vmatpush.bf16.msra.mxu0 %v107
  %120 = vmatpush.bf16.msra.mxu0 %v106
  %121 = vmatmul.bf16.gmra.mxu0 %v111
  %v122 = vpop.f32.mrf.mxu0
  %v123 = vadd.f32 %v96, %v122
  %v124 = vpop.f32.mrf.mxu0
  %v125 = vadd.f32 %v96, %v124
  %126 = vdwg.mxu0
  %v127 = vpack.c.bf16 %v123, %v123
  %v128 = vpack.c.bf16 %v125, %v125
  %vm129 = vcmask 519168
  %130 = vst.msk [vmem:[%s5] sm:$0xf] %vm129, %v127
  %131 = vst.msk [vmem:[%s5 + $0x4] sm:$0xf] %vm129, %v128
  %s132 = smul.u32 0, 16
  %v133 = vlaneseq
  %v134 = vshrl.u32 %v133, 7
  %v135 = vadd.s32 %v134, 8
  %v136 = vstv %s132
  %v137 = vadd.s32 %v134, %v136
  %v138 = vadd.s32 %v135, %v136
  %vm139 = vcmp.lt.s32.totalorder %v137, 10
  %vm140 = vcmp.lt.s32.totalorder %v138, 10
  %v141 = vsel %vm139, %v123, 0.0
  %v142 = vsel %vm140, %v125, 0.0
  %vm143 = vcmask 523264
  %v144 = vsel %vm143, %v141, 0.0
  %v145 = vsel %vm143, %v142, 0.0
  %v146 = vadd.f32 %v144, %v145
  %147 = vadd.xlane.f32.xlu0 %v146
  %v148 = vpop.xlane.xlu0 %147
  %v149 = vrot.slane %v148, 4
  %v150 = vadd.f32 %v148, %v149
  %v151 = vrot.slane %v150, 2
  %v152 = vadd.f32 %v150, %v151
  %v153 = vrot.slane %v152, 1
  %v154 = vadd.f32 %v152, %v153
  %s155 = vtos %v154
  %v156 = vmul.f32 %v141, %v141
  %v157 = vmul.f32 %v142, %v142
  %v158 = vsel %vm143, %v156, 0.0
  %v159 = vsel %vm143, %v157, 0.0
  %v160 = vadd.f32 %v158, %v159
  %161 = vadd.xlane.f32.xlu0 %v160
  %v162 = vpop.xlane.xlu0 %161
  %v163 = vrot.slane %v162, 4
  %v164 = vadd.f32 %v162, %v163
  %v165 = vrot.slane %v164, 2
  %v166 = vadd.f32 %v164, %v165
  %v167 = vrot.slane %v166, 1
  %v168 = vadd.f32 %v166, %v167
  %s169 = vtos %v168
  %v170 = vlaneseq
  %v171 = vand.u32 %v170, 127
  %vm172 = vcmp.eq.s32.totalorder %v171, 0
  %v173 = vstv %s155
  %v174 = vsel %vm172, %v173, 0.0
  %vm175 = vcmp.eq.s32.totalorder %v171, 1
  %v176 = vstv %s169
  %v177 = vsel %vm175, %v176, 0.0
  %v178 = vadd.f32 %v174, %v177
  %179 = vst [vmem:[%s6] sm:$0xff] %v178
  // Predicated region
  $region22: #{vit_forward.16} parent=0 // pred_check
    _
  $region23: #{vit_forward.16} parent=0 // pred_check_branch
    %181 = sbr.rel (0) target = $region25
  $region24: #{vit_forward.16} parent=0 // pred_region
    _
  $region25: #{vit_forward.16} parent=0 // pred_fallthru
    _
  // Predicated region
  $region26: #{vit_forward.16} parent=0 // pred_check
    _
  $region27: #{vit_forward.16} parent=0 // pred_check_branch
    %183 = sbr.rel (0) target = $region29
  $region28: #{vit_forward.16} parent=0 // pred_region
    _
  $region29: #{vit_forward.16} parent=0 // pred_fallthru
    _
  // Predicated region
  $region30: #{vit_forward.16} parent=0 // pred_check
    _
  $region31: #{vit_forward.16} parent=0 // pred_check_branch
    %185 = sbr.rel (0) target = $region33
  $region32: #{vit_forward.16} parent=0 // pred_region
    _
  $region33: #{vit_forward.16} parent=0 // pred_fallthru
    _
  // Predicated region
  $region34: #{vit_forward.16} parent=0 // pred_check
    _
  $region35: #{vit_forward.16} parent=0 // pred_check_branch
    %187 = sbr.rel (0) target = $region37
  $region36: #{vit_forward.16} parent=0 // pred_region
    _
  $region37: #{vit_forward.16} parent=0 // pred_fallthru
    _

// kernel: vit_forward.17
$region0: #{vit_forward.17}
  #allocation0 [shape = 'u32[]', space=smem, size = 0x4, offset = 0x4, fixed_abs, tag = 'smem constant byte address 0x4 - core index']
  #allocation1 [shape = 'u32[72,128]{1,0:T(1,128)}', space=vmem, size = 0x9000, scoped, tag = 'internal scratch']
  %s0 = inlined_call_operand.vmem [shape: bf16[16,64], index: 0, kind: input, shape index: {}]
  %s1 = inlined_call_operand.vmem [shape: f32[6], index: 1, kind: input, shape index: {}]
  %s2 = inlined_call_operand.vmem [shape: f32[2], index: 2, kind: input, shape index: {}]
  %s3 = inlined_call_operand.vmem [shape: bf16[64,32], index: 3, kind: input, shape index: {}]
  %s4 = inlined_call_operand.vmem [shape: f32[1,32], index: 4, kind: input, shape index: {}]
  %s5 = inlined_call_operand.vmem [shape: f32[16,32], index: 5, kind: input, shape index: {}]
  %s6 = inlined_call_operand.vmem [shape: f32[16,32], index: 6, kind: output, shape index: {}]
  %s7 = sld [smem:[#allocation0]]
  $region42: #{vit_forward.17} parent=0
    _
  %s9 = ssub.s32 1, %s7
  %s10 = scalar_select 0, %s9, %s7
  $region1: #{vit_forward.17} parent=0
    #allocation2 [shape = 'u8[512]{0}', space=smem, size = 0x200, scoped, tag = 'input window, operand 1, single buffered']
    #allocation3 [shape = 's32[1]{0}', space=sflag, size = 0x4, scoped, tag = 'scoped memory for vit_forward.17']
    #allocation4 [shape = 'u8[512]{0}', space=smem, size = 0x200, scoped, tag = 'input window, operand 2, single buffered']
    #allocation5 [shape = 's32[1]{0}', space=sflag, size = 0x4, scoped, tag = 'scoped memory for vit_forward.17']
    %11 = vsyncpa [#allocation3], 0
    %12 = vsyncpa [#allocation5], 0
    // Predicated region
    $region2: #{vit_forward.17} parent=1 // pred_check
      _
    $region3: #{vit_forward.17} parent=1 // pred_check_branch
      %14 = sbr.rel (0) target = $region5
    $region4: #{vit_forward.17} parent=1 // pred_region
      _
    $region5: #{vit_forward.17} parent=1 // pred_fallthru
      _
    // Predicated region
    $region6: #{vit_forward.17} parent=1 // pred_check
      _
    $region7: #{vit_forward.17} parent=1 // pred_check_branch
      %16 = sbr.rel (0) target = $region9
    $region8: #{vit_forward.17} parent=1 // pred_region
      %18 = vsyncadd [#allocation3], 0
      %s20 = sshll.u32 %s1, 4
      %s21 = int_to_ptr.vmem [resolvable:$true] %s20
      %23 = dma.vmem_to_smem %s21, 16, [#allocation2], [#allocation3]
    $region9: #{vit_forward.17} parent=1 // pred_fallthru
      _
    // Predicated region
    $region10: #{vit_forward.17} parent=1 // pred_check
      _
    $region11: #{vit_forward.17} parent=1 // pred_check_branch
      %25 = sbr.rel (0) target = $region13
    $region12: #{vit_forward.17} parent=1 // pred_region
      %27 = vsyncadd [#allocation5], 0
      %s29 = sshll.u32 %s2, 4
      %s30 = int_to_ptr.vmem [resolvable:$true] %s29
      %32 = dma.vmem_to_smem %s30, 16, [#allocation4], [#allocation5]
    $region13: #{vit_forward.17} parent=1 // pred_fallthru
      _
    // Predicated region
    $region14: #{vit_forward.17} parent=1 // pred_check
      _
    $region15: #{vit_forward.17} parent=1 // pred_check_branch
      %34 = sbr.rel (0) target = $region17
    $region16: #{vit_forward.17} parent=1 // pred_region
      _
    $region17: #{vit_forward.17} parent=1 // pred_fallthru
      _
    // Predicated region
    $region18: #{vit_forward.17} parent=1 // pred_check
      _
    $region19: #{vit_forward.17} parent=1 // pred_check_branch
      %36 = sbr.rel (0) target = $region21
    $region20: #{vit_forward.17} parent=1 // pred_region
      _
    $region21: #{vit_forward.17} parent=1 // pred_fallthru
      _
    // Predicated region
    $region22: #{vit_forward.17} parent=1 // pred_check
      _
    $region23: #{vit_forward.17} parent=1 // pred_check_branch
      %38 = sbr.rel (0) target = $region25
    $region24: #{vit_forward.17} parent=1 // pred_region
      _
    $region25: #{vit_forward.17} parent=1 // pred_fallthru
      _
    // Predicated region
    $region26: #{vit_forward.17} parent=1 // pred_check
      _
    $region27: #{vit_forward.17} parent=1 // pred_check_branch
      %40 = sbr.rel (0) target = $region29
    $region28: #{vit_forward.17} parent=1 // pred_region
      %42 = dma.done [#allocation3], 16
    $region29: #{vit_forward.17} parent=1 // pred_fallthru
      _
    // Predicated region
    $region30: #{vit_forward.17} parent=1 // pred_check
      _
    $region31: #{vit_forward.17} parent=1 // pred_check_branch
      %44 = sbr.rel (0) target = $region33
    $region32: #{vit_forward.17} parent=1 // pred_region
      %46 = dma.done [#allocation5], 16
    $region33: #{vit_forward.17} parent=1 // pred_fallthru
      _
    %47 = sfence
    %v49 = vld [vmem:[%s0] sm:$0xf]
    %v50 = vld [vmem:[%s0 + $0x4] sm:$0xf]
    %v51 = vunpack.c.l.bf16 %v49
    %v52 = vunpack.c.l.bf16 %v50
    %s53 = sld [smem:[#allocation4]]
    %s54 = sld [smem:[#allocation4 + $0x1]]
    %s55 = sld [smem:[#allocation2]]
    %s56 = sld [smem:[#allocation2 + $0x1]]
    %s57 = sld [smem:[#allocation2 + $0x2]]
    %s58 = sld [smem:[#allocation2 + $0x3]]
    %s59 = sld [smem:[#allocation2 + $0x4]]
    %s60 = sld [smem:[#allocation2 + $0x5]]
    %v61 = vstv %s53
    %v62 = vsub.f32 %v51, %v61
    %v63 = vsub.f32 %v52, %v61
    %v64 = vstv %s54
    %v65 = vmul.f32 %v62, %v64
    %v66 = vmul.f32 %v63, %v64
    %s67 = sadd.f32 %s56, 1.0
    %v68 = vstv %s67
    %v69 = vmul.f32 %v65, %v68
    %v70 = vmul.f32 %v66, %v68
    %v71 = vstv %s55
    %v72 = vadd.f32 %v69, %v71
    %v73 = vadd.f32 %v70, %v71
    %s74 = sadd.f32 %s58, 1.0
    %v75 = vstv %s74
    %v76 = vmul.f32 %v65, %v75
    %v77 = vmul.f32 %v66, %v75
    %v78 = vstv %s57
    %v79 = vadd.f32 %v76, %v78
    %v80 = vadd.f32 %v77, %v78
    %v81 = vsub.f32 0.0, %v79
    %v82 = vsub.f32 0.0, %v80
    %v83 = vmul.f32 %v81, 1.442695
    %v84 = vpow.pop %v83
    %v85 = vmul.f32 %v82, 1.442695
    %v86 = vpow.pop %v85
    %v87 = vadd.f32 %v84, 1.0
    %v88 = vadd.f32 %v86, 1.0
    %v89 = vrcp.pop %v87
    %v90 = vmul.f32 %v87, %v89
    %v91 = vsub.f32 1.0, %v90
    %v92 = vmul.f32 %v89, %v91
    %v93 = vadd.f32 %v89, %v92
    %vm94 = vweird.f32 %v87
    %vm95 = vweird.f32 %v89
    %vm96 = vmor %vm94, %vm95
    %v97 = vsel %vm96, %v89, %v93
    %v98 = vand.u32 2147483647, %v87
    %vm99 = vcmp.eq.f32.partialorder %v98, 8.507059e+37
    %v100 = vand.u32 %v87, 2147483648
    %v101 = vor.u32 1.1754944e-38, %v100
    %v102 = vsel %vm99, %v101, %v97
    %v103 = vmul.f32 1.0, %v102
    %v104 = vrcp.pop %v88
    %v105 = vmul.f32 %v88, %v104
    %v106 = vsub.f32 1.0, %v105
    %v107 = vmul.f32 %v104, %v106
    %v108 = vadd.f32 %v104, %v107
    %vm109 = vweird.f32 %v88
    %vm110 = vweird.f32 %v104
    %vm111 = vmor %vm109, %vm110
    %v112 = vsel %vm111, %v104, %v108
    %v113 = vand.u32 2147483647, %v88
    %vm114 = vcmp.eq.f32.partialorder %v113, 8.507059e+37
    %v115 = vand.u32 %v88, 2147483648
    %v116 = vor.u32 1.1754944e-38, %v115
    %v117 = vsel %vm114, %v116, %v112
    %v118 = vmul.f32 1.0, %v117
    %v119 = vmul.f32 %v72, %v103
    %v120 = vmul.f32 %v73, %v118
    %v121 = vstv %s59
    %v122 = vmul.f32 %v121, %v119
    %v123 = vmul.f32 %v121, %v120
    %v124 = vtanh.pop %v65
    %v125 = vtanh.pop %v66
    %v126 = vstv %s60
    %v127 = vmul.f32 %v126, %v124
    %v128 = vmul.f32 %v126, %v125
    %v129 = vadd.f32 %v127, 1.0
    %v130 = vadd.f32 %v128, 1.0
    %v131 = vmul.f32 %v65, %v129
    %v132 = vmul.f32 %v66, %v130
    %v133 = vadd.f32 %v131, %v122
    %v134 = vadd.f32 %v132, %v123
    %v135 = vpack.c.bf16 %v134, %v133
    %v136 = vld [vmem:[%s3] sm:$0xf]
    %v137 = vld [vmem:[%s3 + $0x4] sm:$0xf]
    %v138 = vld [vmem:[%s3 + $0x8] sm:$0xf]
    %v139 = vld [vmem:[%s3 + $0xc] sm:$0xf]
    %v140 = vld [vmem:[%s3 + $0x10] sm:$0xf]
    %v141 = vld [vmem:[%s3 + $0x14] sm:$0xf]
    %v142 = vld [vmem:[%s3 + $0x18] sm:$0xf]
    %v143 = vld [vmem:[%s3 + $0x1c] sm:$0xf]
    %v144 = vld [vmem:[%s4] sm:$0x1]
    %v146 = vperm.slane %v144, 0
    %v156 = vunpack.c.l.b16 %v136
    %v157 = vunpack.c.l.b16 %v137
    %v158 = vunpack.c.l.b16 %v138
    %v159 = vunpack.c.l.b16 %v139
    %v160 = vunpack.c.l.b16 %v140
    %v161 = vunpack.c.l.b16 %v141
    %v162 = vunpack.c.l.b16 %v142
    %v163 = vunpack.c.l.b16 %v143
    %v164 = vpack.c.b16 %v157, %v156
    %v165 = vpack.c.b16 %v159, %v158
    %v166 = vpack.c.b16 %v161, %v160
    %v167 = vpack.c.b16 %v163, %v162
    %vm172 = vcmask 523264
    %v174 = vsel %vm172, %v135, 0
    %176 = vmatpush.bf16.msra.mxu0 0
    %177 = vmatpush.bf16.msra.mxu0 0
    %178 = vmatpush.bf16.msra.mxu0 0
    %179 = vmatpush.bf16.msra.mxu0 0
    %180 = vmatpush.bf16.msra.mxu0 %v167
    %181 = vmatpush.bf16.msra.mxu0 %v166
    %182 = vmatpush.bf16.msra.mxu0 %v165
    %183 = vmatpush.bf16.msra.mxu0 %v164
    %184 = vmatmul.bf16.gmra.mxu0 %v174
    %v185 = vpop.f32.mrf.mxu0
    %v186 = vadd.f32 %v146, %v185
    %v187 = vpop.f32.mrf.mxu0
    %v188 = vadd.f32 %v146, %v187
    %189 = vdwg.mxu0
    %v190 = vld [vmem:[%s5] sm:$0xff]
    %v191 = vld [vmem:[%s5 + $0x8] sm:$0xff]
    %v192 = vadd.f32 %v186, %v190
    %v193 = vadd.f32 %v188, %v191
    %vm194 = vcmask 261120
    %195 = vst.msk [vmem:[%s6] sm:$0xff] %vm194, %v192
    %196 = vst.msk [vmem:[%s6 + $0x8] sm:$0xff] %vm194, %v193
    // Predicated region
    $region34: #{vit_forward.17} parent=1 // pred_check
      _
    $region35: #{vit_forward.17} parent=1 // pred_check_branch
      %198 = sbr.rel (0) target = $region37
    $region36: #{vit_forward.17} parent=1 // pred_region
      _
    $region37: #{vit_forward.17} parent=1 // pred_fallthru
      _
    // Predicated region
    $region38: #{vit_forward.17} parent=1 // pred_check
      _
    $region39: #{vit_forward.17} parent=1 // pred_check_branch
      %200 = sbr.rel (0) target = $region41
    $region40: #{vit_forward.17} parent=1 // pred_region
      _
    $region41: #{vit_forward.17} parent=1 // pred_fallthru
      _
    %201 = vsyncpa [#allocation3], 1
    %202 = vsyncpa [#allocation5], 1

// kernel: vit_forward.14
$region0: #{vit_forward.14}
  #allocation0 [shape = 'u32[]', space=smem, size = 0x4, offset = 0x4, fixed_abs, tag = 'smem constant byte address 0x4 - core index']
  #allocation1 [shape = 'u32[72,128]{1,0:T(1,128)}', space=vmem, size = 0x9000, scoped, tag = 'internal scratch']
  %s0 = inlined_call_operand.vmem [shape: bf16[8,2,96], index: 0, kind: input, shape index: {}]
  %s1 = inlined_call_operand.vmem [shape: bf16[8,2,32], index: 1, kind: output, shape index: {}]
  %s2 = sld [smem:[#allocation0]]
  $region14: #{vit_forward.14} parent=0
    _
  %s4 = ssub.s32 1, %s2
  %s5 = scalar_select 0, %s4, %s2
  // Predicated region
  $region2: #{vit_forward.14} parent=0 // pred_check
    _
  $region3: #{vit_forward.14} parent=0 // pred_check_branch
    %7 = sbr.rel (0) target = $region5
  $region4: #{vit_forward.14} parent=0 // pred_region
    _
  $region5: #{vit_forward.14} parent=0 // pred_fallthru
    _
  %v9 = vld [vmem:[%s0] sm:$0x1]
  %v10 = vld [vmem:[%s0 + $0x1] sm:$0x1]
  %v11 = vld [vmem:[%s0 + $0x2] sm:$0x1]
  %v12 = vld [vmem:[%s0 + $0x3] sm:$0x1]
  %v13 = vld [vmem:[%s0 + $0x4] sm:$0x1]
  %v14 = vld [vmem:[%s0 + $0x5] sm:$0x1]
  %v15 = vld [vmem:[%s0 + $0x6] sm:$0x1]
  %v16 = vld [vmem:[%s0 + $0x7] sm:$0x1]
  %18 = vst [vmem:[#allocation1] ss:$9 sm:$0xff] %v9
  %v19 = vld [vmem:[#allocation1] sm:$0xff]
  %21 = vrot.lane.b32.xlu0 %v19, 96
  %v22 = vpop.permute.xlu0 %21
  %vm23 = vcmask 64512
  %v24 = vsel %vm23, %v9, 0
  %v27 = vsel %vm23, %v22, 0
  %29 = vmatpush.bf16.xpose.msra.mxu0 0
  %30 = vmatpush.bf16.xpose.msra.mxu0 0
  %31 = vmatpush.bf16.xpose.msra.mxu0 0
  %32 = vmatpush.bf16.xpose.msra.mxu0 0
  %33 = vmatpush.bf16.xpose.msra.mxu0 0
  %34 = vmatpush.bf16.xpose.msra.mxu0 0
  %35 = vmatpush.bf16.xpose.msra.mxu0 0
  %36 = vmatpush.bf16.xpose.msra.mxu0 %v27
  %37 = vmatmul.bf16.gmra.mxu0 %v24
  %v38 = vpop.f32.mrf.mxu0
  %v39 = vadd.f32 0.0, %v38
  %v40 = vpop.f32.mrf.mxu0
  %41 = vdwg.mxu0
  %43 = vst [vmem:[#allocation1] ss:$9 sm:$0xff] %v10
  %v44 = vld [vmem:[#allocation1] sm:$0xff]
  %46 = vrot.lane.b32.xlu0 %v44, 96
  %v47 = vpop.permute.xlu0 %46
  %v48 = vsel %vm23, %v10, 0
  %v51 = vsel %vm23, %v47, 0
  %53 = vmatpush.bf16.xpose.msra.mxu0 0
  %54 = vmatpush.bf16.xpose.msra.mxu0 0
  %55 = vmatpush.bf16.xpose.msra.mxu0 0
  %56 = vmatpush.bf16.xpose.msra.mxu0 0
  %57 = vmatpush.bf16.xpose.msra.mxu0 0
  %58 = vmatpush.bf16.xpose.msra.mxu0 0
  %59 = vmatpush.bf16.xpose.msra.mxu0 0
  %60 = vmatpush.bf16.xpose.msra.mxu0 %v51
  %61 = vmatmul.bf16.gmra.mxu0 %v48
  %v62 = vpop.f32.mrf.mxu0
  %v63 = vadd.f32 0.0, %v62
  %v64 = vpop.f32.mrf.mxu0
  %65 = vdwg.mxu0
  %67 = vst [vmem:[#allocation1] ss:$9 sm:$0xff] %v11
  %v68 = vld [vmem:[#allocation1] sm:$0xff]
  %70 = vrot.lane.b32.xlu0 %v68, 96
  %v71 = vpop.permute.xlu0 %70
  %v72 = vsel %vm23, %v11, 0
  %v75 = vsel %vm23, %v71, 0
  %77 = vmatpush.bf16.xpose.msra.mxu0 0
  %78 = vmatpush.bf16.xpose.msra.mxu0 0
  %79 = vmatpush.bf16.xpose.msra.mxu0 0
  %80 = vmatpush.bf16.xpose.msra.mxu0 0
  %81 = vmatpush.bf16.xpose.msra.mxu0 0
  %82 = vmatpush.bf16.xpose.msra.mxu0 0
  %83 = vmatpush.bf16.xpose.msra.mxu0 0
  %84 = vmatpush.bf16.xpose.msra.mxu0 %v75
  %85 = vmatmul.bf16.gmra.mxu0 %v72
  %v86 = vpop.f32.mrf.mxu0
  %v87 = vadd.f32 0.0, %v86
  %v88 = vpop.f32.mrf.mxu0
  %89 = vdwg.mxu0
  %91 = vst [vmem:[#allocation1] ss:$9 sm:$0xff] %v12
  %v92 = vld [vmem:[#allocation1] sm:$0xff]
  %94 = vrot.lane.b32.xlu0 %v92, 96
  %v95 = vpop.permute.xlu0 %94
  %v96 = vsel %vm23, %v12, 0
  %v99 = vsel %vm23, %v95, 0
  %101 = vmatpush.bf16.xpose.msra.mxu0 0
  %102 = vmatpush.bf16.xpose.msra.mxu0 0
  %103 = vmatpush.bf16.xpose.msra.mxu0 0
  %104 = vmatpush.bf16.xpose.msra.mxu0 0
  %105 = vmatpush.bf16.xpose.msra.mxu0 0
  %106 = vmatpush.bf16.xpose.msra.mxu0 0
  %107 = vmatpush.bf16.xpose.msra.mxu0 0
  %108 = vmatpush.bf16.xpose.msra.mxu0 %v99
  %109 = vmatmul.bf16.gmra.mxu0 %v96
  %v110 = vpop.f32.mrf.mxu0
  %v111 = vadd.f32 0.0, %v110
  %v112 = vpop.f32.mrf.mxu0
  %113 = vdwg.mxu0
  %115 = vst [vmem:[#allocation1] ss:$9 sm:$0xff] %v13
  %v116 = vld [vmem:[#allocation1] sm:$0xff]
  %118 = vrot.lane.b32.xlu0 %v116, 96
  %v119 = vpop.permute.xlu0 %118
  %v120 = vsel %vm23, %v13, 0
  %v123 = vsel %vm23, %v119, 0
  %125 = vmatpush.bf16.xpose.msra.mxu0 0
  %126 = vmatpush.bf16.xpose.msra.mxu0 0
  %127 = vmatpush.bf16.xpose.msra.mxu0 0
  %128 = vmatpush.bf16.xpose.msra.mxu0 0
  %129 = vmatpush.bf16.xpose.msra.mxu0 0
  %130 = vmatpush.bf16.xpose.msra.mxu0 0
  %131 = vmatpush.bf16.xpose.msra.mxu0 0
  %132 = vmatpush.bf16.xpose.msra.mxu0 %v123
  %133 = vmatmul.bf16.gmra.mxu0 %v120
  %v134 = vpop.f32.mrf.mxu0
  %v135 = vadd.f32 0.0, %v134
  %v136 = vpop.f32.mrf.mxu0
  %137 = vdwg.mxu0
  %139 = vst [vmem:[#allocation1] ss:$9 sm:$0xff] %v14
  %v140 = vld [vmem:[#allocation1] sm:$0xff]
  %142 = vrot.lane.b32.xlu0 %v140, 96
  %v143 = vpop.permute.xlu0 %142
  %v144 = vsel %vm23, %v14, 0
  %v147 = vsel %vm23, %v143, 0
  %149 = vmatpush.bf16.xpose.msra.mxu0 0
  %150 = vmatpush.bf16.xpose.msra.mxu0 0
  %151 = vmatpush.bf16.xpose.msra.mxu0 0
  %152 = vmatpush.bf16.xpose.msra.mxu0 0
  %153 = vmatpush.bf16.xpose.msra.mxu0 0
  %154 = vmatpush.bf16.xpose.msra.mxu0 0
  %155 = vmatpush.bf16.xpose.msra.mxu0 0
  %156 = vmatpush.bf16.xpose.msra.mxu0 %v147
  %157 = vmatmul.bf16.gmra.mxu0 %v144
  %v158 = vpop.f32.mrf.mxu0
  %v159 = vadd.f32 0.0, %v158
  %v160 = vpop.f32.mrf.mxu0
  %161 = vdwg.mxu0
  %163 = vst [vmem:[#allocation1] ss:$9 sm:$0xff] %v15
  %v164 = vld [vmem:[#allocation1] sm:$0xff]
  %166 = vrot.lane.b32.xlu0 %v164, 96
  %v167 = vpop.permute.xlu0 %166
  %v168 = vsel %vm23, %v15, 0
  %v171 = vsel %vm23, %v167, 0
  %173 = vmatpush.bf16.xpose.msra.mxu0 0
  %174 = vmatpush.bf16.xpose.msra.mxu0 0
  %175 = vmatpush.bf16.xpose.msra.mxu0 0
  %176 = vmatpush.bf16.xpose.msra.mxu0 0
  %177 = vmatpush.bf16.xpose.msra.mxu0 0
  %178 = vmatpush.bf16.xpose.msra.mxu0 0
  %179 = vmatpush.bf16.xpose.msra.mxu0 0
  %180 = vmatpush.bf16.xpose.msra.mxu0 %v171
  %181 = vmatmul.bf16.gmra.mxu0 %v168
  %v182 = vpop.f32.mrf.mxu0
  %v183 = vadd.f32 0.0, %v182
  %v184 = vpop.f32.mrf.mxu0
  %185 = vdwg.mxu0
  %187 = vst [vmem:[#allocation1] ss:$9 sm:$0xff] %v16
  %v188 = vld [vmem:[#allocation1] sm:$0xff]
  %190 = vrot.lane.b32.xlu0 %v188, 96
  %v191 = vpop.permute.xlu0 %190
  %v192 = vsel %vm23, %v16, 0
  %v195 = vsel %vm23, %v191, 0
  %197 = vmatpush.bf16.xpose.msra.mxu0 0
  %198 = vmatpush.bf16.xpose.msra.mxu0 0
  %199 = vmatpush.bf16.xpose.msra.mxu0 0
  %200 = vmatpush.bf16.xpose.msra.mxu0 0
  %201 = vmatpush.bf16.xpose.msra.mxu0 0
  %202 = vmatpush.bf16.xpose.msra.mxu0 0
  %203 = vmatpush.bf16.xpose.msra.mxu0 0
  %204 = vmatpush.bf16.xpose.msra.mxu0 %v195
  %205 = vmatmul.bf16.gmra.mxu0 %v192
  %v206 = vpop.f32.mrf.mxu0
  %v207 = vadd.f32 0.0, %v206
  %v208 = vpop.f32.mrf.mxu0
  %209 = vdwg.mxu0
  %v210 = vmul.f32 %v39, 0.35355338
  %v211 = vmul.f32 %v63, 0.35355338
  %v212 = vmul.f32 %v87, 0.35355338
  %v213 = vmul.f32 %v111, 0.35355338
  %v214 = vmul.f32 %v135, 0.35355338
  %v215 = vmul.f32 %v159, 0.35355338
  %v216 = vmul.f32 %v183, 0.35355338
  %v217 = vmul.f32 %v207, 0.35355338
  %vm218 = vcmask 9216
  %v219 = vsel %vm218, %v210, -inf
  %220 = vmax.xlane.f32.xlu0 %v219
  %v221 = vpop.xlane.xlu0 %220
  %v222 = vsel %vm218, %v211, -inf
  %223 = vmax.xlane.f32.xlu0 %v222
  %v224 = vpop.xlane.xlu0 %223
  %v225 = vsel %vm218, %v212, -inf
  %226 = vmax.xlane.f32.xlu0 %v225
  %v227 = vpop.xlane.xlu0 %226
  %v228 = vsel %vm218, %v213, -inf
  %229 = vmax.xlane.f32.xlu0 %v228
  %v230 = vpop.xlane.xlu0 %229
  %v231 = vsel %vm218, %v214, -inf
  %232 = vmax.xlane.f32.xlu0 %v231
  %v233 = vpop.xlane.xlu0 %232
  %v234 = vsel %vm218, %v215, -inf
  %235 = vmax.xlane.f32.xlu0 %v234
  %v236 = vpop.xlane.xlu0 %235
  %v237 = vsel %vm218, %v216, -inf
  %238 = vmax.xlane.f32.xlu0 %v237
  %v239 = vpop.xlane.xlu0 %238
  %v240 = vsel %vm218, %v217, -inf
  %241 = vmax.xlane.f32.xlu0 %v240
  %v242 = vpop.xlane.xlu0 %241
  %v243 = vsub.f32 %v210, %v221
  %v244 = vsub.f32 %v211, %v224
  %v245 = vsub.f32 %v212, %v227
  %v246 = vsub.f32 %v213, %v230
  %v247 = vsub.f32 %v214, %v233
  %v248 = vsub.f32 %v215, %v236
  %v249 = vsub.f32 %v216, %v239
  %v250 = vsub.f32 %v217, %v242
  %v251 = vmul.f32 %v243, 1.442695
  %v252 = vpow.pop %v251
  %v253 = vmul.f32 %v244, 1.442695
  %v254 = vpow.pop %v253
  %v255 = vmul.f32 %v245, 1.442695
  %v256 = vpow.pop %v255
  %v257 = vmul.f32 %v246, 1.442695
  %v258 = vpow.pop %v257
  %v259 = vmul.f32 %v247, 1.442695
  %v260 = vpow.pop %v259
  %v261 = vmul.f32 %v248, 1.442695
  %v262 = vpow.pop %v261
  %v263 = vmul.f32 %v249, 1.442695
  %v264 = vpow.pop %v263
  %v265 = vmul.f32 %v250, 1.442695
  %v266 = vpow.pop %v265
  %v267 = vsel %vm218, %v252, 0.0
  %268 = vadd.xlane.f32.xlu0 %v267
  %v269 = vpop.xlane.xlu0 %268
  %v270 = vsel %vm218, %v254, 0.0
  %271 = vadd.xlane.f32.xlu0 %v270
  %v272 = vpop.xlane.xlu0 %271
  %v273 = vsel %vm218, %v256, 0.0
  %274 = vadd.xlane.f32.xlu0 %v273
  %v275 = vpop.xlane.xlu0 %274
  %v276 = vsel %vm218, %v258, 0.0
  %277 = vadd.xlane.f32.xlu0 %v276
  %v278 = vpop.xlane.xlu0 %277
  %v279 = vsel %vm218, %v260, 0.0
  %280 = vadd.xlane.f32.xlu0 %v279
  %v281 = vpop.xlane.xlu0 %280
  %v282 = vsel %vm218, %v262, 0.0
  %283 = vadd.xlane.f32.xlu0 %v282
  %v284 = vpop.xlane.xlu0 %283
  %v285 = vsel %vm218, %v264, 0.0
  %286 = vadd.xlane.f32.xlu0 %v285
  %v287 = vpop.xlane.xlu0 %286
  %v288 = vsel %vm218, %v266, 0.0
  %289 = vadd.xlane.f32.xlu0 %v288
  %v290 = vpop.xlane.xlu0 %289
  %v291 = vrcp.pop %v269
  %v292 = vrcp.pop %v272
  %v293 = vrcp.pop %v275
  %v294 = vrcp.pop %v278
  %v295 = vrcp.pop %v281
  %v296 = vrcp.pop %v284
  %v297 = vrcp.pop %v287
  %v298 = vrcp.pop %v290
  %v299 = vmul.f32 %v252, %v291
  %v300 = vmul.f32 %v254, %v292
  %v301 = vmul.f32 %v256, %v293
  %v302 = vmul.f32 %v258, %v294
  %v303 = vmul.f32 %v260, %v295
  %v304 = vmul.f32 %v262, %v296
  %v305 = vmul.f32 %v264, %v297
  %v306 = vmul.f32 %v266, %v298
  %v307 = vpack.c.bf16 %v299, %v299
  %v308 = vpack.c.bf16 %v300, %v300
  %v309 = vpack.c.bf16 %v301, %v301
  %v310 = vpack.c.bf16 %v302, %v302
  %v311 = vpack.c.bf16 %v303, %v303
  %v312 = vpack.c.bf16 %v304, %v304
  %v313 = vpack.c.bf16 %v305, %v305
  %v314 = vpack.c.bf16 %v306, %v306
  %315 = vst [vmem:[#allocation1] ss:$9 sm:$0xff] %v9
  %v316 = vld [vmem:[#allocation1] sm:$0xff]
  %318 = vrot.lane.b32.xlu0 %v316, 64
  %v319 = vpop.permute.xlu0 %318
  %vm320 = vcmask 15360
  %v322 = vsel %vm320, %v307, 0
  %vm324 = vcmask 1040384
  %v326 = vsel %vm324, %v319, 0
  %328 = vmatpush.bf16.msra.mxu0 0
  %329 = vmatpush.bf16.msra.mxu0 0
  %330 = vmatpush.bf16.msra.mxu0 0
  %331 = vmatpush.bf16.msra.mxu0 0
  %332 = vmatpush.bf16.msra.mxu0 0
  %333 = vmatpush.bf16.msra.mxu0 0
  %334 = vmatpush.bf16.msra.mxu0 0
  %335 = vmatpush.bf16.msra.mxu0 %v326
  %336 = vmatmul.bf16.gmra.mxu0 %v322
  %v337 = vpop.f32.mrf.mxu0
  %v338 = vadd.f32 0.0, %v337
  %v339 = vpop.f32.mrf.mxu0
  %340 = vdwg.mxu0
  %341 = vst [vmem:[#allocation1] ss:$9 sm:$0xff] %v10
  %v342 = vld [vmem:[#allocation1] sm:$0xff]
  %344 = vrot.lane.b32.xlu0 %v342, 64
  %v345 = vpop.permute.xlu0 %344
  %v347 = vsel %vm320, %v308, 0
  %v350 = vsel %vm324, %v345, 0
  %352 = vmatpush.bf16.msra.mxu0 0
  %353 = vmatpush.bf16.msra.mxu0 0
  %354 = vmatpush.bf16.msra.mxu0 0
  %355 = vmatpush.bf16.msra.mxu0 0
  %356 = vmatpush.bf16.msra.mxu0 0
  %357 = vmatpush.bf16.msra.mxu0 0
  %358 = vmatpush.bf16.msra.mxu0 0
  %359 = vmatpush.bf16.msra.mxu0 %v350
  %360 = vmatmul.bf16.gmra.mxu0 %v347
  %v361 = vpop.f32.mrf.mxu0
  %v362 = vadd.f32 0.0, %v361
  %v363 = vpop.f32.mrf.mxu0
  %364 = vdwg.mxu0
  %365 = vst [vmem:[#allocation1] ss:$9 sm:$0xff] %v11
  %v366 = vld [vmem:[#allocation1] sm:$0xff]
  %368 = vrot.lane.b32.xlu0 %v366, 64
  %v369 = vpop.permute.xlu0 %368
  %v371 = vsel %vm320, %v309, 0
  %v374 = vsel %vm324, %v369, 0
  %376 = vmatpush.bf16.msra.mxu0 0
  %377 = vmatpush.bf16.msra.mxu0 0
  %378 = vmatpush.bf16.msra.mxu0 0
  %379 = vmatpush.bf16.msra.mxu0 0
  %380 = vmatpush.bf16.msra.mxu0 0
  %381 = vmatpush.bf16.msra.mxu0 0
  %382 = vmatpush.bf16.msra.mxu0 0
  %383 = vmatpush.bf16.msra.mxu0 %v374
  %384 = vmatmul.bf16.gmra.mxu0 %v371
  %v385 = vpop.f32.mrf.mxu0
  %v386 = vadd.f32 0.0, %v385
  %v387 = vpop.f32.mrf.mxu0
  %388 = vdwg.mxu0
  %389 = vst [vmem:[#allocation1] ss:$9 sm:$0xff] %v12
  %v390 = vld [vmem:[#allocation1] sm:$0xff]
  %392 = vrot.lane.b32.xlu0 %v390, 64
  %v393 = vpop.permute.xlu0 %392
  %v395 = vsel %vm320, %v310, 0
  %v398 = vsel %vm324, %v393, 0
  %400 = vmatpush.bf16.msra.mxu0 0
  %401 = vmatpush.bf16.msra.mxu0 0
  %402 = vmatpush.bf16.msra.mxu0 0
  %403 = vmatpush.bf16.msra.mxu0 0
  %404 = vmatpush.bf16.msra.mxu0 0
  %405 = vmatpush.bf16.msra.mxu0 0
  %406 = vmatpush.bf16.msra.mxu0 0
  %407 = vmatpush.bf16.msra.mxu0 %v398
  %408 = vmatmul.bf16.gmra.mxu0 %v395
  %v409 = vpop.f32.mrf.mxu0
  %v410 = vadd.f32 0.0, %v409
  %v411 = vpop.f32.mrf.mxu0
  %412 = vdwg.mxu0
  %413 = vst [vmem:[#allocation1] ss:$9 sm:$0xff] %v13
  %v414 = vld [vmem:[#allocation1] sm:$0xff]
  %416 = vrot.lane.b32.xlu0 %v414, 64
  %v417 = vpop.permute.xlu0 %416
  %v419 = vsel %vm320, %v311, 0
  %v422 = vsel %vm324, %v417, 0
  %424 = vmatpush.bf16.msra.mxu0 0
  %425 = vmatpush.bf16.msra.mxu0 0
  %426 = vmatpush.bf16.msra.mxu0 0
  %427 = vmatpush.bf16.msra.mxu0 0
  %428 = vmatpush.bf16.msra.mxu0 0
  %429 = vmatpush.bf16.msra.mxu0 0
  %430 = vmatpush.bf16.msra.mxu0 0
  %431 = vmatpush.bf16.msra.mxu0 %v422
  %432 = vmatmul.bf16.gmra.mxu0 %v419
  %v433 = vpop.f32.mrf.mxu0
  %v434 = vadd.f32 0.0, %v433
  %v435 = vpop.f32.mrf.mxu0
  %436 = vdwg.mxu0
  %437 = vst [vmem:[#allocation1] ss:$9 sm:$0xff] %v14
  %v438 = vld [vmem:[#allocation1] sm:$0xff]
  %440 = vrot.lane.b32.xlu0 %v438, 64
  %v441 = vpop.permute.xlu0 %440
  %v443 = vsel %vm320, %v312, 0
  %v446 = vsel %vm324, %v441, 0
  %448 = vmatpush.bf16.msra.mxu0 0
  %449 = vmatpush.bf16.msra.mxu0 0
  %450 = vmatpush.bf16.msra.mxu0 0
  %451 = vmatpush.bf16.msra.mxu0 0
  %452 = vmatpush.bf16.msra.mxu0 0
  %453 = vmatpush.bf16.msra.mxu0 0
  %454 = vmatpush.bf16.msra.mxu0 0
  %455 = vmatpush.bf16.msra.mxu0 %v446
  %456 = vmatmul.bf16.gmra.mxu0 %v443
  %v457 = vpop.f32.mrf.mxu0
  %v458 = vadd.f32 0.0, %v457
  %v459 = vpop.f32.mrf.mxu0
  %460 = vdwg.mxu0
  %461 = vst [vmem:[#allocation1] ss:$9 sm:$0xff] %v15
  %v462 = vld [vmem:[#allocation1] sm:$0xff]
  %464 = vrot.lane.b32.xlu0 %v462, 64
  %v465 = vpop.permute.xlu0 %464
  %v467 = vsel %vm320, %v313, 0
  %v470 = vsel %vm324, %v465, 0
  %472 = vmatpush.bf16.msra.mxu0 0
  %473 = vmatpush.bf16.msra.mxu0 0
  %474 = vmatpush.bf16.msra.mxu0 0
  %475 = vmatpush.bf16.msra.mxu0 0
  %476 = vmatpush.bf16.msra.mxu0 0
  %477 = vmatpush.bf16.msra.mxu0 0
  %478 = vmatpush.bf16.msra.mxu0 0
  %479 = vmatpush.bf16.msra.mxu0 %v470
  %480 = vmatmul.bf16.gmra.mxu0 %v467
  %v481 = vpop.f32.mrf.mxu0
  %v482 = vadd.f32 0.0, %v481
  %v483 = vpop.f32.mrf.mxu0
  %484 = vdwg.mxu0
  %485 = vst [vmem:[#allocation1] ss:$9 sm:$0xff] %v16
  %v486 = vld [vmem:[#allocation1] sm:$0xff]
  %488 = vrot.lane.b32.xlu0 %v486, 64
  %v489 = vpop.permute.xlu0 %488
  %v491 = vsel %vm320, %v314, 0
  %v494 = vsel %vm324, %v489, 0
  %496 = vmatpush.bf16.msra.mxu0 0
  %497 = vmatpush.bf16.msra.mxu0 0
  %498 = vmatpush.bf16.msra.mxu0 0
  %499 = vmatpush.bf16.msra.mxu0 0
  %500 = vmatpush.bf16.msra.mxu0 0
  %501 = vmatpush.bf16.msra.mxu0 0
  %502 = vmatpush.bf16.msra.mxu0 0
  %503 = vmatpush.bf16.msra.mxu0 %v494
  %504 = vmatmul.bf16.gmra.mxu0 %v491
  %v505 = vpop.f32.mrf.mxu0
  %v506 = vadd.f32 0.0, %v505
  %v507 = vpop.f32.mrf.mxu0
  %508 = vdwg.mxu0
  %v509 = vpack.c.bf16 %v338, %v338
  %v510 = vpack.c.bf16 %v362, %v362
  %v511 = vpack.c.bf16 %v386, %v386
  %v512 = vpack.c.bf16 %v410, %v410
  %v513 = vpack.c.bf16 %v434, %v434
  %v514 = vpack.c.bf16 %v458, %v458
  %v515 = vpack.c.bf16 %v482, %v482
  %v516 = vpack.c.bf16 %v506, %v506
  %vm517 = vcmask 57344
  %518 = vst.msk [vmem:[%s1] sm:$0x1] %vm517, %v509
  %519 = vst.msk [vmem:[%s1 + $0x1] sm:$0x1] %vm517, %v510
  %520 = vst.msk [vmem:[%s1 + $0x2] sm:$0x1] %vm517, %v511
  %521 = vst.msk [vmem:[%s1 + $0x3] sm:$0x1] %vm517, %v512
  %522 = vst.msk [vmem:[%s1 + $0x4] sm:$0x1] %vm517, %v513
  %523 = vst.msk [vmem:[%s1 + $0x5] sm:$0x1] %vm517, %v514
  %524 = vst.msk [vmem:[%s1 + $0x6] sm:$0x1] %vm517, %v515
  %525 = vst.msk [vmem:[%s1 + $0x7] sm:$0x1] %vm517, %v516
  %526 = vst [vmem:[#allocation1] ss:$9 sm:$0xff] %v9
  %v527 = vld [vmem:[#allocation1] sm:$0xff]
  %529 = vrot.lane.b32.xlu0 %v527, 120
  %v530 = vpop.permute.xlu0 %529
  %531 = vst [vmem:[#allocation1] ss:$9 sm:$0xff] %v9
  %v532 = vld [vmem:[#allocation1] sm:$0xff]
  %534 = vrot.lane.b32.xlu0 %v532, 88
  %v535 = vpop.permute.xlu0 %534
  %v537 = vsel %vm23, %v530, 0
  %v540 = vsel %vm23, %v535, 0
  %542 = vmatpush.bf16.xpose.msra.mxu0 0
  %543 = vmatpush.bf16.xpose.msra.mxu0 0
  %544 = vmatpush.bf16.xpose.msra.mxu0 0
  %545 = vmatpush.bf16.xpose.msra.mxu0 0
  %546 = vmatpush.bf16.xpose.msra.mxu0 0
  %547 = vmatpush.bf16.xpose.msra.mxu0 0
  %548 = vmatpush.bf16.xpose.msra.mxu0 0
  %549 = vmatpush.bf16.xpose.msra.mxu0 %v540
  %550 = vmatmul.bf16.gmra.mxu0 %v537
  %v551 = vpop.f32.mrf.mxu0
  %v552 = vadd.f32 0.0, %v551
  %v553 = vpop.f32.mrf.mxu0
  %554 = vdwg.mxu0
  %555 = vst [vmem:[#allocation1] ss:$9 sm:$0xff] %v10
  %v556 = vld [vmem:[#allocation1] sm:$0xff]
  %558 = vrot.lane.b32.xlu0 %v556, 120
  %v559 = vpop.permute.xlu0 %558
  %560 = vst [vmem:[#allocation1] ss:$9 sm:$0xff] %v10
  %v561 = vld [vmem:[#allocation1] sm:$0xff]
  %563 = vrot.lane.b32.xlu0 %v561, 88
  %v564 = vpop.permute.xlu0 %563
  %v566 = vsel %vm23, %v559, 0
  %v569 = vsel %vm23, %v564, 0
  %571 = vmatpush.bf16.xpose.msra.mxu0 0
  %572 = vmatpush.bf16.xpose.msra.mxu0 0
  %573 = vmatpush.bf16.xpose.msra.mxu0 0
  %574 = vmatpush.bf16.xpose.msra.mxu0 0
  %575 = vmatpush.bf16.xpose.msra.mxu0 0
  %576 = vmatpush.bf16.xpose.msra.mxu0 0
  %577 = vmatpush.bf16.xpose.msra.mxu0 0
  %578 = vmatpush.bf16.xpose.msra.mxu0 %v569
  %579 = vmatmul.bf16.gmra.mxu0 %v566
  %v580 = vpop.f32.mrf.mxu0
  %v581 = vadd.f32 0.0, %v580
  %v582 = vpop.f32.mrf.mxu0
  %583 = vdwg.mxu0
  %584 = vst [vmem:[#allocation1] ss:$9 sm:$0xff] %v11
  %v585 = vld [vmem:[#allocation1] sm:$0xff]
  %587 = vrot.lane.b32.xlu0 %v585, 120
  %v588 = vpop.permute.xlu0 %587
  %589 = vst [vmem:[#allocation1] ss:$9 sm:$0xff] %v11
  %v590 = vld [vmem:[#allocation1] sm:$0xff]
  %592 = vrot.lane.b32.xlu0 %v590, 88
  %v593 = vpop.permute.xlu0 %592
  %v595 = vsel %vm23, %v588, 0
  %v598 = vsel %vm23, %v593, 0
  %600 = vmatpush.bf16.xpose.msra.mxu0 0
  %601 = vmatpush.bf16.xpose.msra.mxu0 0
  %602 = vmatpush.bf16.xpose.msra.mxu0 0
  %603 = vmatpush.bf16.xpose.msra.mxu0 0
  %604 = vmatpush.bf16.xpose.msra.mxu0 0
  %605 = vmatpush.bf16.xpose.msra.mxu0 0
  %606 = vmatpush.bf16.xpose.msra.mxu0 0
  %607 = vmatpush.bf16.xpose.msra.mxu0 %v598
  %608 = vmatmul.bf16.gmra.mxu0 %v595
  %v609 = vpop.f32.mrf.mxu0
  %v610 = vadd.f32 0.0, %v609
  %v611 = vpop.f32.mrf.mxu0
  %612 = vdwg.mxu0
  %613 = vst [vmem:[#allocation1] ss:$9 sm:$0xff] %v12
  %v614 = vld [vmem:[#allocation1] sm:$0xff]
  %616 = vrot.lane.b32.xlu0 %v614, 120
  %v617 = vpop.permute.xlu0 %616
  %618 = vst [vmem:[#allocation1] ss:$9 sm:$0xff] %v12
  %v619 = vld [vmem:[#allocation1] sm:$0xff]
  %621 = vrot.lane.b32.xlu0 %v619, 88
  %v622 = vpop.permute.xlu0 %621
  %v624 = vsel %vm23, %v617, 0
  %v627 = vsel %vm23, %v622, 0
  %629 = vmatpush.bf16.xpose.msra.mxu0 0
  %630 = vmatpush.bf16.xpose.msra.mxu0 0
  %631 = vmatpush.bf16.xpose.msra.mxu0 0
  %632 = vmatpush.bf16.xpose.msra.mxu0 0
  %633 = vmatpush.bf16.xpose.msra.mxu0 0
  %634 = vmatpush.bf16.xpose.msra.mxu0 0
  %635 = vmatpush.bf16.xpose.msra.mxu0 0
  %636 = vmatpush.bf16.xpose.msra.mxu0 %v627
  %637 = vmatmul.bf16.gmra.mxu0 %v624
  %v638 = vpop.f32.mrf.mxu0
  %v639 = vadd.f32 0.0, %v638
  %v640 = vpop.f32.mrf.mxu0
  %641 = vdwg.mxu0
  %642 = vst [vmem:[#allocation1] ss:$9 sm:$0xff] %v13
  %v643 = vld [vmem:[#allocation1] sm:$0xff]
  %645 = vrot.lane.b32.xlu0 %v643, 120
  %v646 = vpop.permute.xlu0 %645
  %647 = vst [vmem:[#allocation1] ss:$9 sm:$0xff] %v13
  %v648 = vld [vmem:[#allocation1] sm:$0xff]
  %650 = vrot.lane.b32.xlu0 %v648, 88
  %v651 = vpop.permute.xlu0 %650
  %v653 = vsel %vm23, %v646, 0
  %v656 = vsel %vm23, %v651, 0
  %658 = vmatpush.bf16.xpose.msra.mxu0 0
  %659 = vmatpush.bf16.xpose.msra.mxu0 0
  %660 = vmatpush.bf16.xpose.msra.mxu0 0
  %661 = vmatpush.bf16.xpose.msra.mxu0 0
  %662 = vmatpush.bf16.xpose.msra.mxu0 0
  %663 = vmatpush.bf16.xpose.msra.mxu0 0
  %664 = vmatpush.bf16.xpose.msra.mxu0 0
  %665 = vmatpush.bf16.xpose.msra.mxu0 %v656
  %666 = vmatmul.bf16.gmra.mxu0 %v653
  %v667 = vpop.f32.mrf.mxu0
  %v668 = vadd.f32 0.0, %v667
  %v669 = vpop.f32.mrf.mxu0
  %670 = vdwg.mxu0
  %671 = vst [vmem:[#allocation1] ss:$9 sm:$0xff] %v14
  %v672 = vld [vmem:[#allocation1] sm:$0xff]
  %674 = vrot.lane.b32.xlu0 %v672, 120
  %v675 = vpop.permute.xlu0 %674
  %676 = vst [vmem:[#allocation1] ss:$9 sm:$0xff] %v14
  %v677 = vld [vmem:[#allocation1] sm:$0xff]
  %679 = vrot.lane.b32.xlu0 %v677, 88
  %v680 = vpop.permute.xlu0 %679
  %v682 = vsel %vm23, %v675, 0
  %v685 = vsel %vm23, %v680, 0
  %687 = vmatpush.bf16.xpose.msra.mxu0 0
  %688 = vmatpush.bf16.xpose.msra.mxu0 0
  %689 = vmatpush.bf16.xpose.msra.mxu0 0
  %690 = vmatpush.bf16.xpose.msra.mxu0 0
  %691 = vmatpush.bf16.xpose.msra.mxu0 0
  %692 = vmatpush.bf16.xpose.msra.mxu0 0
  %693 = vmatpush.bf16.xpose.msra.mxu0 0
  %694 = vmatpush.bf16.xpose.msra.mxu0 %v685
  %695 = vmatmul.bf16.gmra.mxu0 %v682
  %v696 = vpop.f32.mrf.mxu0
  %v697 = vadd.f32 0.0, %v696
  %v698 = vpop.f32.mrf.mxu0
  %699 = vdwg.mxu0
  %700 = vst [vmem:[#allocation1] ss:$9 sm:$0xff] %v15
  %v701 = vld [vmem:[#allocation1] sm:$0xff]
  %703 = vrot.lane.b32.xlu0 %v701, 120
  %v704 = vpop.permute.xlu0 %703
  %705 = vst [vmem:[#allocation1] ss:$9 sm:$0xff] %v15
  %v706 = vld [vmem:[#allocation1] sm:$0xff]
  %708 = vrot.lane.b32.xlu0 %v706, 88
  %v709 = vpop.permute.xlu0 %708
  %v711 = vsel %vm23, %v704, 0
  %v714 = vsel %vm23, %v709, 0
  %716 = vmatpush.bf16.xpose.msra.mxu0 0
  %717 = vmatpush.bf16.xpose.msra.mxu0 0
  %718 = vmatpush.bf16.xpose.msra.mxu0 0
  %719 = vmatpush.bf16.xpose.msra.mxu0 0
  %720 = vmatpush.bf16.xpose.msra.mxu0 0
  %721 = vmatpush.bf16.xpose.msra.mxu0 0
  %722 = vmatpush.bf16.xpose.msra.mxu0 0
  %723 = vmatpush.bf16.xpose.msra.mxu0 %v714
  %724 = vmatmul.bf16.gmra.mxu0 %v711
  %v725 = vpop.f32.mrf.mxu0
  %v726 = vadd.f32 0.0, %v725
  %v727 = vpop.f32.mrf.mxu0
  %728 = vdwg.mxu0
  %729 = vst [vmem:[#allocation1] ss:$9 sm:$0xff] %v16
  %v730 = vld [vmem:[#allocation1] sm:$0xff]
  %732 = vrot.lane.b32.xlu0 %v730, 120
  %v733 = vpop.permute.xlu0 %732
  %734 = vst [vmem:[#allocation1] ss:$9 sm:$0xff] %v16
  %v735 = vld [vmem:[#allocation1] sm:$0xff]
  %737 = vrot.lane.b32.xlu0 %v735, 88
  %v738 = vpop.permute.xlu0 %737
  %v740 = vsel %vm23, %v733, 0
  %v743 = vsel %vm23, %v738, 0
  %745 = vmatpush.bf16.xpose.msra.mxu0 0
  %746 = vmatpush.bf16.xpose.msra.mxu0 0
  %747 = vmatpush.bf16.xpose.msra.mxu0 0
  %748 = vmatpush.bf16.xpose.msra.mxu0 0
  %749 = vmatpush.bf16.xpose.msra.mxu0 0
  %750 = vmatpush.bf16.xpose.msra.mxu0 0
  %751 = vmatpush.bf16.xpose.msra.mxu0 0
  %752 = vmatpush.bf16.xpose.msra.mxu0 %v743
  %753 = vmatmul.bf16.gmra.mxu0 %v740
  %v754 = vpop.f32.mrf.mxu0
  %v755 = vadd.f32 0.0, %v754
  %v756 = vpop.f32.mrf.mxu0
  %757 = vdwg.mxu0
  %v758 = vmul.f32 %v552, 0.35355338
  %v759 = vmul.f32 %v581, 0.35355338
  %v760 = vmul.f32 %v610, 0.35355338
  %v761 = vmul.f32 %v639, 0.35355338
  %v762 = vmul.f32 %v668, 0.35355338
  %v763 = vmul.f32 %v697, 0.35355338
  %v764 = vmul.f32 %v726, 0.35355338
  %v765 = vmul.f32 %v755, 0.35355338
  %v766 = vsel %vm218, %v758, -inf
  %767 = vmax.xlane.f32.xlu0 %v766
  %v768 = vpop.xlane.xlu0 %767
  %v769 = vsel %vm218, %v759, -inf
  %770 = vmax.xlane.f32.xlu0 %v769
  %v771 = vpop.xlane.xlu0 %770
  %v772 = vsel %vm218, %v760, -inf
  %773 = vmax.xlane.f32.xlu0 %v772
  %v774 = vpop.xlane.xlu0 %773
  %v775 = vsel %vm218, %v761, -inf
  %776 = vmax.xlane.f32.xlu0 %v775
  %v777 = vpop.xlane.xlu0 %776
  %v778 = vsel %vm218, %v762, -inf
  %779 = vmax.xlane.f32.xlu0 %v778
  %v780 = vpop.xlane.xlu0 %779
  %v781 = vsel %vm218, %v763, -inf
  %782 = vmax.xlane.f32.xlu0 %v781
  %v783 = vpop.xlane.xlu0 %782
  %v784 = vsel %vm218, %v764, -inf
  %785 = vmax.xlane.f32.xlu0 %v784
  %v786 = vpop.xlane.xlu0 %785
  %v787 = vsel %vm218, %v765, -inf
  %788 = vmax.xlane.f32.xlu0 %v787
  %v789 = vpop.xlane.xlu0 %788
  %v790 = vsub.f32 %v758, %v768
  %v791 = vsub.f32 %v759, %v771
  %v792 = vsub.f32 %v760, %v774
  %v793 = vsub.f32 %v761, %v777
  %v794 = vsub.f32 %v762, %v780
  %v795 = vsub.f32 %v763, %v783
  %v796 = vsub.f32 %v764, %v786
  %v797 = vsub.f32 %v765, %v789
  %v798 = vmul.f32 %v790, 1.442695
  %v799 = vpow.pop %v798
  %v800 = vmul.f32 %v791, 1.442695
  %v801 = vpow.pop %v800
  %v802 = vmul.f32 %v792, 1.442695
  %v803 = vpow.pop %v802
  %v804 = vmul.f32 %v793, 1.442695
  %v805 = vpow.pop %v804
  %v806 = vmul.f32 %v794, 1.442695
  %v807 = vpow.pop %v806
  %v808 = vmul.f32 %v795, 1.442695
  %v809 = vpow.pop %v808
  %v810 = vmul.f32 %v796, 1.442695
  %v811 = vpow.pop %v810
  %v812 = vmul.f32 %v797, 1.442695
  %v813 = vpow.pop %v812
  %v814 = vsel %vm218, %v799, 0.0
  %815 = vadd.xlane.f32.xlu0 %v814
  %v816 = vpop.xlane.xlu0 %815
  %v817 = vsel %vm218, %v801, 0.0
  %818 = vadd.xlane.f32.xlu0 %v817
  %v819 = vpop.xlane.xlu0 %818
  %v820 = vsel %vm218, %v803, 0.0
  %821 = vadd.xlane.f32.xlu0 %v820
  %v822 = vpop.xlane.xlu0 %821
  %v823 = vsel %vm218, %v805, 0.0
  %824 = vadd.xlane.f32.xlu0 %v823
  %v825 = vpop.xlane.xlu0 %824
  %v826 = vsel %vm218, %v807, 0.0
  %827 = vadd.xlane.f32.xlu0 %v826
  %v828 = vpop.xlane.xlu0 %827
  %v829 = vsel %vm218, %v809, 0.0
  %830 = vadd.xlane.f32.xlu0 %v829
  %v831 = vpop.xlane.xlu0 %830
  %v832 = vsel %vm218, %v811, 0.0
  %833 = vadd.xlane.f32.xlu0 %v832
  %v834 = vpop.xlane.xlu0 %833
  %v835 = vsel %vm218, %v813, 0.0
  %836 = vadd.xlane.f32.xlu0 %v835
  %v837 = vpop.xlane.xlu0 %836
  %v838 = vrcp.pop %v816
  %v839 = vrcp.pop %v819
  %v840 = vrcp.pop %v822
  %v841 = vrcp.pop %v825
  %v842 = vrcp.pop %v828
  %v843 = vrcp.pop %v831
  %v844 = vrcp.pop %v834
  %v845 = vrcp.pop %v837
  %v846 = vmul.f32 %v799, %v838
  %v847 = vmul.f32 %v801, %v839
  %v848 = vmul.f32 %v803, %v840
  %v849 = vmul.f32 %v805, %v841
  %v850 = vmul.f32 %v807, %v842
  %v851 = vmul.f32 %v809, %v843
  %v852 = vmul.f32 %v811, %v844
  %v853 = vmul.f32 %v813, %v845
  %v854 = vpack.c.bf16 %v846, %v846
  %v855 = vpack.c.bf16 %v847, %v847
  %v856 = vpack.c.bf16 %v848, %v848
  %v857 = vpack.c.bf16 %v849, %v849
  %v858 = vpack.c.bf16 %v850, %v850
  %v859 = vpack.c.bf16 %v851, %v851
  %v860 = vpack.c.bf16 %v852, %v852
  %v861 = vpack.c.bf16 %v853, %v853
  %862 = vst [vmem:[#allocation1] ss:$9 sm:$0xff] %v9
  %v863 = vld [vmem:[#allocation1] sm:$0xff]
  %865 = vrot.lane.b32.xlu0 %v863, 56
  %v866 = vpop.permute.xlu0 %865
  %v868 = vsel %vm320, %v854, 0
  %v871 = vsel %vm324, %v866, 0
  %873 = vmatpush.bf16.msra.mxu0 0
  %874 = vmatpush.bf16.msra.mxu0 0
  %875 = vmatpush.bf16.msra.mxu0 0
  %876 = vmatpush.bf16.msra.mxu0 0
  %877 = vmatpush.bf16.msra.mxu0 0
  %878 = vmatpush.bf16.msra.mxu0 0
  %879 = vmatpush.bf16.msra.mxu0 0
  %880 = vmatpush.bf16.msra.mxu0 %v871
  %881 = vmatmul.bf16.gmra.mxu0 %v868
  %v882 = vpop.f32.mrf.mxu0
  %v883 = vadd.f32 0.0, %v882
  %v884 = vpop.f32.mrf.mxu0
  %885 = vdwg.mxu0
  %886 = vst [vmem:[#allocation1] ss:$9 sm:$0xff] %v10
  %v887 = vld [vmem:[#allocation1] sm:$0xff]
  %889 = vrot.lane.b32.xlu0 %v887, 56
  %v890 = vpop.permute.xlu0 %889
  %v892 = vsel %vm320, %v855, 0
  %v895 = vsel %vm324, %v890, 0
  %897 = vmatpush.bf16.msra.mxu0 0
  %898 = vmatpush.bf16.msra.mxu0 0
  %899 = vmatpush.bf16.msra.mxu0 0
  %900 = vmatpush.bf16.msra.mxu0 0
  %901 = vmatpush.bf16.msra.mxu0 0
  %902 = vmatpush.bf16.msra.mxu0 0
  %903 = vmatpush.bf16.msra.mxu0 0
  %904 = vmatpush.bf16.msra.mxu0 %v895
  %905 = vmatmul.bf16.gmra.mxu0 %v892
  %v906 = vpop.f32.mrf.mxu0
  %v907 = vadd.f32 0.0, %v906
  %v908 = vpop.f32.mrf.mxu0
  %909 = vdwg.mxu0
  %910 = vst [vmem:[#allocation1] ss:$9 sm:$0xff] %v11
  %v911 = vld [vmem:[#allocation1] sm:$0xff]
  %913 = vrot.lane.b32.xlu0 %v911, 56
  %v914 = vpop.permute.xlu0 %913
  %v916 = vsel %vm320, %v856, 0
  %v919 = vsel %vm324, %v914, 0
  %921 = vmatpush.bf16.msra.mxu0 0
  %922 = vmatpush.bf16.msra.mxu0 0
  %923 = vmatpush.bf16.msra.mxu0 0
  %924 = vmatpush.bf16.msra.mxu0 0
  %925 = vmatpush.bf16.msra.mxu0 0
  %926 = vmatpush.bf16.msra.mxu0 0
  %927 = vmatpush.bf16.msra.mxu0 0
  %928 = vmatpush.bf16.msra.mxu0 %v919
  %929 = vmatmul.bf16.gmra.mxu0 %v916
  %v930 = vpop.f32.mrf.mxu0
  %v931 = vadd.f32 0.0, %v930
  %v932 = vpop.f32.mrf.mxu0
  %933 = vdwg.mxu0
  %934 = vst [vmem:[#allocation1] ss:$9 sm:$0xff] %v12
  %v935 = vld [vmem:[#allocation1] sm:$0xff]
  %937 = vrot.lane.b32.xlu0 %v935, 56
  %v938 = vpop.permute.xlu0 %937
  %v940 = vsel %vm320, %v857, 0
  %v943 = vsel %vm324, %v938, 0
  %945 = vmatpush.bf16.msra.mxu0 0
  %946 = vmatpush.bf16.msra.mxu0 0
  %947 = vmatpush.bf16.msra.mxu0 0
  %948 = vmatpush.bf16.msra.mxu0 0
  %949 = vmatpush.bf16.msra.mxu0 0
  %950 = vmatpush.bf16.msra.mxu0 0
  %951 = vmatpush.bf16.msra.mxu0 0
  %952 = vmatpush.bf16.msra.mxu0 %v943
  %953 = vmatmul.bf16.gmra.mxu0 %v940
  %v954 = vpop.f32.mrf.mxu0
  %v955 = vadd.f32 0.0, %v954
  %v956 = vpop.f32.mrf.mxu0
  %957 = vdwg.mxu0
  %958 = vst [vmem:[#allocation1] ss:$9 sm:$0xff] %v13
  %v959 = vld [vmem:[#allocation1] sm:$0xff]
  %961 = vrot.lane.b32.xlu0 %v959, 56
  %v962 = vpop.permute.xlu0 %961
  %v964 = vsel %vm320, %v858, 0
  %v967 = vsel %vm324, %v962, 0
  %969 = vmatpush.bf16.msra.mxu0 0
  %970 = vmatpush.bf16.msra.mxu0 0
  %971 = vmatpush.bf16.msra.mxu0 0
  %972 = vmatpush.bf16.msra.mxu0 0
  %973 = vmatpush.bf16.msra.mxu0 0
  %974 = vmatpush.bf16.msra.mxu0 0
  %975 = vmatpush.bf16.msra.mxu0 0
  %976 = vmatpush.bf16.msra.mxu0 %v967
  %977 = vmatmul.bf16.gmra.mxu0 %v964
  %v978 = vpop.f32.mrf.mxu0
  %v979 = vadd.f32 0.0, %v978
  %v980 = vpop.f32.mrf.mxu0
  %981 = vdwg.mxu0
  %982 = vst [vmem:[#allocation1] ss:$9 sm:$0xff] %v14
  %v983 = vld [vmem:[#allocation1] sm:$0xff]
  %985 = vrot.lane.b32.xlu0 %v983, 56
  %v986 = vpop.permute.xlu0 %985
  %v988 = vsel %vm320, %v859, 0
  %v991 = vsel %vm324, %v986, 0
  %993 = vmatpush.bf16.msra.mxu0 0
  %994 = vmatpush.bf16.msra.mxu0 0
  %995 = vmatpush.bf16.msra.mxu0 0
  %996 = vmatpush.bf16.msra.mxu0 0
  %997 = vmatpush.bf16.msra.mxu0 0
  %998 = vmatpush.bf16.msra.mxu0 0
  %999 = vmatpush.bf16.msra.mxu0 0
  %1000 = vmatpush.bf16.msra.mxu0 %v991
  %1001 = vmatmul.bf16.gmra.mxu0 %v988
  %v1002 = vpop.f32.mrf.mxu0
  %v1003 = vadd.f32 0.0, %v1002
  %v1004 = vpop.f32.mrf.mxu0
  %1005 = vdwg.mxu0
  %1006 = vst [vmem:[#allocation1] ss:$9 sm:$0xff] %v15
  %v1007 = vld [vmem:[#allocation1] sm:$0xff]
  %1009 = vrot.lane.b32.xlu0 %v1007, 56
  %v1010 = vpop.permute.xlu0 %1009
  %v1012 = vsel %vm320, %v860, 0
  %v1015 = vsel %vm324, %v1010, 0
  %1017 = vmatpush.bf16.msra.mxu0 0
  %1018 = vmatpush.bf16.msra.mxu0 0
  %1019 = vmatpush.bf16.msra.mxu0 0
  %1020 = vmatpush.bf16.msra.mxu0 0
  %1021 = vmatpush.bf16.msra.mxu0 0
  %1022 = vmatpush.bf16.msra.mxu0 0
  %1023 = vmatpush.bf16.msra.mxu0 0
  %1024 = vmatpush.bf16.msra.mxu0 %v1015
  %1025 = vmatmul.bf16.gmra.mxu0 %v1012
  %v1026 = vpop.f32.mrf.mxu0
  %v1027 = vadd.f32 0.0, %v1026
  %v1028 = vpop.f32.mrf.mxu0
  %1029 = vdwg.mxu0
  %1030 = vst [vmem:[#allocation1] ss:$9 sm:$0xff] %v16
  %v1031 = vld [vmem:[#allocation1] sm:$0xff]
  %1033 = vrot.lane.b32.xlu0 %v1031, 56
  %v1034 = vpop.permute.xlu0 %1033
  %v1036 = vsel %vm320, %v861, 0
  %v1039 = vsel %vm324, %v1034, 0
  %1041 = vmatpush.bf16.msra.mxu0 0
  %1042 = vmatpush.bf16.msra.mxu0 0
  %1043 = vmatpush.bf16.msra.mxu0 0
  %1044 = vmatpush.bf16.msra.mxu0 0
  %1045 = vmatpush.bf16.msra.mxu0 0
  %1046 = vmatpush.bf16.msra.mxu0 0
  %1047 = vmatpush.bf16.msra.mxu0 0
  %1048 = vmatpush.bf16.msra.mxu0 %v1039
  %1049 = vmatmul.bf16.gmra.mxu0 %v1036
  %v1050 = vpop.f32.mrf.mxu0
  %v1051 = vadd.f32 0.0, %v1050
  %v1052 = vpop.f32.mrf.mxu0
  %1053 = vdwg.mxu0
  %v1054 = vpack.c.bf16 %v883, %v883
  %v1055 = vpack.c.bf16 %v907, %v907
  %v1056 = vpack.c.bf16 %v931, %v931
  %v1057 = vpack.c.bf16 %v955, %v955
  %v1058 = vpack.c.bf16 %v979, %v979
  %v1059 = vpack.c.bf16 %v1003, %v1003
  %v1060 = vpack.c.bf16 %v1027, %v1027
  %v1061 = vpack.c.bf16 %v1051, %v1051
  %v1070 = vrot.slane %v1054, 3
  %v1071 = vrot.slane %v1055, 3
  %v1072 = vrot.slane %v1056, 3
  %v1073 = vrot.slane %v1057, 3
  %v1074 = vrot.slane %v1058, 3
  %v1075 = vrot.slane %v1059, 3
  %v1076 = vrot.slane %v1060, 3
  %v1077 = vrot.slane %v1061, 3
  %v1080 = vsel %vm324, %v1054, %v1070
  %v1084 = vsel %vm324, %v1055, %v1071
  %v1088 = vsel %vm324, %v1056, %v1072
  %v1092 = vsel %vm324, %v1057, %v1073
  %v1096 = vsel %vm324, %v1058, %v1074
  %v1100 = vsel %vm324, %v1059, %v1075
  %v1104 = vsel %vm324, %v1060, %v1076
  %v1108 = vsel %vm324, %v1061, %v1077
  %1110 = vrot.lane.b32.xlu0 %v1080, 8
  %v1111 = vpop.permute.xlu0 %1110
  %1112 = vrot.lane.b32.xlu0 %v1084, 8
  %v1113 = vpop.permute.xlu0 %1112
  %1114 = vrot.lane.b32.xlu0 %v1088, 8
  %v1115 = vpop.permute.xlu0 %1114
  %1116 = vrot.lane.b32.xlu0 %v1092, 8
  %v1117 = vpop.permute.xlu0 %1116
  %1118 = vrot.lane.b32.xlu0 %v1096, 8
  %v1119 = vpop.permute.xlu0 %1118
  %1120 = vrot.lane.b32.xlu0 %v1100, 8
  %v1121 = vpop.permute.xlu0 %1120
  %1122 = vrot.lane.b32.xlu0 %v1104, 8
  %v1123 = vpop.permute.xlu0 %1122
  %1124 = vrot.lane.b32.xlu0 %v1108, 8
  %v1125 = vpop.permute.xlu0 %1124
  %vm1134 = vcmask 122944
  %1135 = vst.msk [vmem:[%s1] sm:$0x1] %vm1134, %v1111
  %1136 = vst.msk [vmem:[%s1 + $0x1] sm:$0x1] %vm1134, %v1113
  %1137 = vst.msk [vmem:[%s1 + $0x2] sm:$0x1] %vm1134, %v1115
  %1138 = vst.msk [vmem:[%s1 + $0x3] sm:$0x1] %vm1134, %v1117
  %1139 = vst.msk [vmem:[%s1 + $0x4] sm:$0x1] %vm1134, %v1119
  %1140 = vst.msk [vmem:[%s1 + $0x5] sm:$0x1] %vm1134, %v1121
  %1141 = vst.msk [vmem:[%s1 + $0x6] sm:$0x1] %vm1134, %v1123
  %1142 = vst.msk [vmem:[%s1 + $0x7] sm:$0x1] %vm1134, %v1125
  %1143 = vst [vmem:[#allocation1] ss:$9 sm:$0xff] %v9
  %v1144 = vld [vmem:[#allocation1] sm:$0xff]
  %1146 = vrot.lane.b32.xlu0 %v1144, 112
  %v1147 = vpop.permute.xlu0 %1146
  %1148 = vst [vmem:[#allocation1] ss:$9 sm:$0xff] %v9
  %v1149 = vld [vmem:[#allocation1] sm:$0xff]
  %1151 = vrot.lane.b32.xlu0 %v1149, 80
  %v1152 = vpop.permute.xlu0 %1151
  %v1154 = vsel %vm23, %v1147, 0
  %v1157 = vsel %vm23, %v1152, 0
  %1159 = vmatpush.bf16.xpose.msra.mxu0 0
  %1160 = vmatpush.bf16.xpose.msra.mxu0 0
  %1161 = vmatpush.bf16.xpose.msra.mxu0 0
  %1162 = vmatpush.bf16.xpose.msra.mxu0 0
  %1163 = vmatpush.bf16.xpose.msra.mxu0 0
  %1164 = vmatpush.bf16.xpose.msra.mxu0 0
  %1165 = vmatpush.bf16.xpose.msra.mxu0 0
  %1166 = vmatpush.bf16.xpose.msra.mxu0 %v1157
  %1167 = vmatmul.bf16.gmra.mxu0 %v1154
  %v1168 = vpop.f32.mrf.mxu0
  %v1169 = vadd.f32 0.0, %v1168
  %v1170 = vpop.f32.mrf.mxu0
  %1171 = vdwg.mxu0
  %1172 = vst [vmem:[#allocation1] ss:$9 sm:$0xff] %v10
  %v1173 = vld [vmem:[#allocation1] sm:$0xff]
  %1175 = vrot.lane.b32.xlu0 %v1173, 112
  %v1176 = vpop.permute.xlu0 %1175
  %1177 = vst [vmem:[#allocation1] ss:$9 sm:$0xff] %v10
  %v1178 = vld [vmem:[#allocation1] sm:$0xff]
  %1180 = vrot.lane.b32.xlu0 %v1178, 80
  %v1181 = vpop.permute.xlu0 %1180
  %v1183 = vsel %vm23, %v1176, 0
  %v1186 = vsel %vm23, %v1181, 0
  %1188 = vmatpush.bf16.xpose.msra.mxu0 0
  %1189 = vmatpush.bf16.xpose.msra.mxu0 0
  %1190 = vmatpush.bf16.xpose.msra.mxu0 0
  %1191 = vmatpush.bf16.xpose.msra.mxu0 0
  %1192 = vmatpush.bf16.xpose.msra.mxu0 0
  %1193 = vmatpush.bf16.xpose.msra.mxu0 0
  %1194 = vmatpush.bf16.xpose.msra.mxu0 0
  %1195 = vmatpush.bf16.xpose.msra.mxu0 %v1186
  %1196 = vmatmul.bf16.gmra.mxu0 %v1183
  %v1197 = vpop.f32.mrf.mxu0
  %v1198 = vadd.f32 0.0, %v1197
  %v1199 = vpop.f32.mrf.mxu0
  %1200 = vdwg.mxu0
  %1201 = vst [vmem:[#allocation1] ss:$9 sm:$0xff] %v11
  %v1202 = vld [vmem:[#allocation1] sm:$0xff]
  %1204 = vrot.lane.b32.xlu0 %v1202, 112
  %v1205 = vpop.permute.xlu0 %1204
  %1206 = vst [vmem:[#allocation1] ss:$9 sm:$0xff] %v11
  %v1207 = vld [vmem:[#allocation1] sm:$0xff]
  %1209 = vrot.lane.b32.xlu0 %v1207, 80
  %v1210 = vpop.permute.xlu0 %1209
  %v1212 = vsel %vm23, %v1205, 0
  %v1215 = vsel %vm23, %v1210, 0
  %1217 = vmatpush.bf16.xpose.msra.mxu0 0
  %1218 = vmatpush.bf16.xpose.msra.mxu0 0
  %1219 = vmatpush.bf16.xpose.msra.mxu0 0
  %1220 = vmatpush.bf16.xpose.msra.mxu0 0
  %1221 = vmatpush.bf16.xpose.msra.mxu0 0
  %1222 = vmatpush.bf16.xpose.msra.mxu0 0
  %1223 = vmatpush.bf16.xpose.msra.mxu0 0
  %1224 = vmatpush.bf16.xpose.msra.mxu0 %v1215
  %1225 = vmatmul.bf16.gmra.mxu0 %v1212
  %v1226 = vpop.f32.mrf.mxu0
  %v1227 = vadd.f32 0.0, %v1226
  %v1228 = vpop.f32.mrf.mxu0
  %1229 = vdwg.mxu0
  %1230 = vst [vmem:[#allocation1] ss:$9 sm:$0xff] %v12
  %v1231 = vld [vmem:[#allocation1] sm:$0xff]
  %1233 = vrot.lane.b32.xlu0 %v1231, 112
  %v1234 = vpop.permute.xlu0 %1233
  %1235 = vst [vmem:[#allocation1] ss:$9 sm:$0xff] %v12
  %v1236 = vld [vmem:[#allocation1] sm:$0xff]
  %1238 = vrot.lane.b32.xlu0 %v1236, 80
  %v1239 = vpop.permute.xlu0 %1238
  %v1241 = vsel %vm23, %v1234, 0
  %v1244 = vsel %vm23, %v1239, 0
  %1246 = vmatpush.bf16.xpose.msra.mxu0 0
  %1247 = vmatpush.bf16.xpose.msra.mxu0 0
  %1248 = vmatpush.bf16.xpose.msra.mxu0 0
  %1249 = vmatpush.bf16.xpose.msra.mxu0 0
  %1250 = vmatpush.bf16.xpose.msra.mxu0 0
  %1251 = vmatpush.bf16.xpose.msra.mxu0 0
  %1252 = vmatpush.bf16.xpose.msra.mxu0 0
  %1253 = vmatpush.bf16.xpose.msra.mxu0 %v1244
  %1254 = vmatmul.bf16.gmra.mxu0 %v1241
  %v1255 = vpop.f32.mrf.mxu0
  %v1256 = vadd.f32 0.0, %v1255
  %v1257 = vpop.f32.mrf.mxu0
  %1258 = vdwg.mxu0
  %1259 = vst [vmem:[#allocation1] ss:$9 sm:$0xff] %v13
  %v1260 = vld [vmem:[#allocation1] sm:$0xff]
  %1262 = vrot.lane.b32.xlu0 %v1260, 112
  %v1263 = vpop.permute.xlu0 %1262
  %1264 = vst [vmem:[#allocation1] ss:$9 sm:$0xff] %v13
  %v1265 = vld [vmem:[#allocation1] sm:$0xff]
  %1267 = vrot.lane.b32.xlu0 %v1265, 80
  %v1268 = vpop.permute.xlu0 %1267
  %v1270 = vsel %vm23, %v1263, 0
  %v1273 = vsel %vm23, %v1268, 0
  %1275 = vmatpush.bf16.xpose.msra.mxu0 0
  %1276 = vmatpush.bf16.xpose.msra.mxu0 0
  %1277 = vmatpush.bf16.xpose.msra.mxu0 0
  %1278 = vmatpush.bf16.xpose.msra.mxu0 0
  %1279 = vmatpush.bf16.xpose.msra.mxu0 0
  %1280 = vmatpush.bf16.xpose.msra.mxu0 0
  %1281 = vmatpush.bf16.xpose.msra.mxu0 0
  %1282 = vmatpush.bf16.xpose.msra.mxu0 %v1273
  %1283 = vmatmul.bf16.gmra.mxu0 %v1270
  %v1284 = vpop.f32.mrf.mxu0
  %v1285 = vadd.f32 0.0, %v1284
  %v1286 = vpop.f32.mrf.mxu0
  %1287 = vdwg.mxu0
  %1288 = vst [vmem:[#allocation1] ss:$9 sm:$0xff] %v14
  %v1289 = vld [vmem:[#allocation1] sm:$0xff]
  %1291 = vrot.lane.b32.xlu0 %v1289, 112
  %v1292 = vpop.permute.xlu0 %1291
  %1293 = vst [vmem:[#allocation1] ss:$9 sm:$0xff] %v14
  %v1294 = vld [vmem:[#allocation1] sm:$0xff]
  %1296 = vrot.lane.b32.xlu0 %v1294, 80
  %v1297 = vpop.permute.xlu0 %1296
  %v1299 = vsel %vm23, %v1292, 0
  %v1302 = vsel %vm23, %v1297, 0
  %1304 = vmatpush.bf16.xpose.msra.mxu0 0
  %1305 = vmatpush.bf16.xpose.msra.mxu0 0
  %1306 = vmatpush.bf16.xpose.msra.mxu0 0
  %1307 = vmatpush.bf16.xpose.msra.mxu0 0
  %1308 = vmatpush.bf16.xpose.msra.mxu0 0
  %1309 = vmatpush.bf16.xpose.msra.mxu0 0
  %1310 = vmatpush.bf16.xpose.msra.mxu0 0
  %1311 = vmatpush.bf16.xpose.msra.mxu0 %v1302
  %1312 = vmatmul.bf16.gmra.mxu0 %v1299
  %v1313 = vpop.f32.mrf.mxu0
  %v1314 = vadd.f32 0.0, %v1313
  %v1315 = vpop.f32.mrf.mxu0
  %1316 = vdwg.mxu0
  %1317 = vst [vmem:[#allocation1] ss:$9 sm:$0xff] %v15
  %v1318 = vld [vmem:[#allocation1] sm:$0xff]
  %1320 = vrot.lane.b32.xlu0 %v1318, 112
  %v1321 = vpop.permute.xlu0 %1320
  %1322 = vst [vmem:[#allocation1] ss:$9 sm:$0xff] %v15
  %v1323 = vld [vmem:[#allocation1] sm:$0xff]
  %1325 = vrot.lane.b32.xlu0 %v1323, 80
  %v1326 = vpop.permute.xlu0 %1325
  %v1328 = vsel %vm23, %v1321, 0
  %v1331 = vsel %vm23, %v1326, 0
  %1333 = vmatpush.bf16.xpose.msra.mxu0 0
  %1334 = vmatpush.bf16.xpose.msra.mxu0 0
  %1335 = vmatpush.bf16.xpose.msra.mxu0 0
  %1336 = vmatpush.bf16.xpose.msra.mxu0 0
  %1337 = vmatpush.bf16.xpose.msra.mxu0 0
  %1338 = vmatpush.bf16.xpose.msra.mxu0 0
  %1339 = vmatpush.bf16.xpose.msra.mxu0 0
  %1340 = vmatpush.bf16.xpose.msra.mxu0 %v1331
  %1341 = vmatmul.bf16.gmra.mxu0 %v1328
  %v1342 = vpop.f32.mrf.mxu0
  %v1343 = vadd.f32 0.0, %v1342
  %v1344 = vpop.f32.mrf.mxu0
  %1345 = vdwg.mxu0
  %1346 = vst [vmem:[#allocation1] ss:$9 sm:$0xff] %v16
  %v1347 = vld [vmem:[#allocation1] sm:$0xff]
  %1349 = vrot.lane.b32.xlu0 %v1347, 112
  %v1350 = vpop.permute.xlu0 %1349
  %1351 = vst [vmem:[#allocation1] ss:$9 sm:$0xff] %v16
  %v1352 = vld [vmem:[#allocation1] sm:$0xff]
  %1354 = vrot.lane.b32.xlu0 %v1352, 80
  %v1355 = vpop.permute.xlu0 %1354
  %v1357 = vsel %vm23, %v1350, 0
  %v1360 = vsel %vm23, %v1355, 0
  %1362 = vmatpush.bf16.xpose.msra.mxu0 0
  %1363 = vmatpush.bf16.xpose.msra.mxu0 0
  %1364 = vmatpush.bf16.xpose.msra.mxu0 0
  %1365 = vmatpush.bf16.xpose.msra.mxu0 0
  %1366 = vmatpush.bf16.xpose.msra.mxu0 0
  %1367 = vmatpush.bf16.xpose.msra.mxu0 0
  %1368 = vmatpush.bf16.xpose.msra.mxu0 0
  %1369 = vmatpush.bf16.xpose.msra.mxu0 %v1360
  %1370 = vmatmul.bf16.gmra.mxu0 %v1357
  %v1371 = vpop.f32.mrf.mxu0
  %v1372 = vadd.f32 0.0, %v1371
  %v1373 = vpop.f32.mrf.mxu0
  %1374 = vdwg.mxu0
  %v1375 = vmul.f32 %v1169, 0.35355338
  %v1376 = vmul.f32 %v1198, 0.35355338
  %v1377 = vmul.f32 %v1227, 0.35355338
  %v1378 = vmul.f32 %v1256, 0.35355338
  %v1379 = vmul.f32 %v1285, 0.35355338
  %v1380 = vmul.f32 %v1314, 0.35355338
  %v1381 = vmul.f32 %v1343, 0.35355338
  %v1382 = vmul.f32 %v1372, 0.35355338
  %v1383 = vsel %vm218, %v1375, -inf
  %1384 = vmax.xlane.f32.xlu0 %v1383
  %v1385 = vpop.xlane.xlu0 %1384
  %v1386 = vsel %vm218, %v1376, -inf
  %1387 = vmax.xlane.f32.xlu0 %v1386
  %v1388 = vpop.xlane.xlu0 %1387
  %v1389 = vsel %vm218, %v1377, -inf
  %1390 = vmax.xlane.f32.xlu0 %v1389
  %v1391 = vpop.xlane.xlu0 %1390
  %v1392 = vsel %vm218, %v1378, -inf
  %1393 = vmax.xlane.f32.xlu0 %v1392
  %v1394 = vpop.xlane.xlu0 %1393
  %v1395 = vsel %vm218, %v1379, -inf
  %1396 = vmax.xlane.f32.xlu0 %v1395
  %v1397 = vpop.xlane.xlu0 %1396
  %v1398 = vsel %vm218, %v1380, -inf
  %1399 = vmax.xlane.f32.xlu0 %v1398
  %v1400 = vpop.xlane.xlu0 %1399
  %v1401 = vsel %vm218, %v1381, -inf
  %1402 = vmax.xlane.f32.xlu0 %v1401
  %v1403 = vpop.xlane.xlu0 %1402
  %v1404 = vsel %vm218, %v1382, -inf
  %1405 = vmax.xlane.f32.xlu0 %v1404
  %v1406 = vpop.xlane.xlu0 %1405
  %v1407 = vsub.f32 %v1375, %v1385
  %v1408 = vsub.f32 %v1376, %v1388
  %v1409 = vsub.f32 %v1377, %v1391
  %v1410 = vsub.f32 %v1378, %v1394
  %v1411 = vsub.f32 %v1379, %v1397
  %v1412 = vsub.f32 %v1380, %v1400
  %v1413 = vsub.f32 %v1381, %v1403
  %v1414 = vsub.f32 %v1382, %v1406
  %v1415 = vmul.f32 %v1407, 1.442695
  %v1416 = vpow.pop %v1415
  %v1417 = vmul.f32 %v1408, 1.442695
  %v1418 = vpow.pop %v1417
  %v1419 = vmul.f32 %v1409, 1.442695
  %v1420 = vpow.pop %v1419
  %v1421 = vmul.f32 %v1410, 1.442695
  %v1422 = vpow.pop %v1421
  %v1423 = vmul.f32 %v1411, 1.442695
  %v1424 = vpow.pop %v1423
  %v1425 = vmul.f32 %v1412, 1.442695
  %v1426 = vpow.pop %v1425
  %v1427 = vmul.f32 %v1413, 1.442695
  %v1428 = vpow.pop %v1427
  %v1429 = vmul.f32 %v1414, 1.442695
  %v1430 = vpow.pop %v1429
  %v1431 = vsel %vm218, %v1416, 0.0
  %1432 = vadd.xlane.f32.xlu0 %v1431
  %v1433 = vpop.xlane.xlu0 %1432
  %v1434 = vsel %vm218, %v1418, 0.0
  %1435 = vadd.xlane.f32.xlu0 %v1434
  %v1436 = vpop.xlane.xlu0 %1435
  %v1437 = vsel %vm218, %v1420, 0.0
  %1438 = vadd.xlane.f32.xlu0 %v1437
  %v1439 = vpop.xlane.xlu0 %1438
  %v1440 = vsel %vm218, %v1422, 0.0
  %1441 = vadd.xlane.f32.xlu0 %v1440
  %v1442 = vpop.xlane.xlu0 %1441
  %v1443 = vsel %vm218, %v1424, 0.0
  %1444 = vadd.xlane.f32.xlu0 %v1443
  %v1445 = vpop.xlane.xlu0 %1444
  %v1446 = vsel %vm218, %v1426, 0.0
  %1447 = vadd.xlane.f32.xlu0 %v1446
  %v1448 = vpop.xlane.xlu0 %1447
  %v1449 = vsel %vm218, %v1428, 0.0
  %1450 = vadd.xlane.f32.xlu0 %v1449
  %v1451 = vpop.xlane.xlu0 %1450
  %v1452 = vsel %vm218, %v1430, 0.0
  %1453 = vadd.xlane.f32.xlu0 %v1452
  %v1454 = vpop.xlane.xlu0 %1453
  %v1455 = vrcp.pop %v1433
  %v1456 = vrcp.pop %v1436
  %v1457 = vrcp.pop %v1439
  %v1458 = vrcp.pop %v1442
  %v1459 = vrcp.pop %v1445
  %v1460 = vrcp.pop %v1448
  %v1461 = vrcp.pop %v1451
  %v1462 = vrcp.pop %v1454
  %v1463 = vmul.f32 %v1416, %v1455
  %v1464 = vmul.f32 %v1418, %v1456
  %v1465 = vmul.f32 %v1420, %v1457
  %v1466 = vmul.f32 %v1422, %v1458
  %v1467 = vmul.f32 %v1424, %v1459
  %v1468 = vmul.f32 %v1426, %v1460
  %v1469 = vmul.f32 %v1428, %v1461
  %v1470 = vmul.f32 %v1430, %v1462
  %v1471 = vpack.c.bf16 %v1463, %v1463
  %v1472 = vpack.c.bf16 %v1464, %v1464
  %v1473 = vpack.c.bf16 %v1465, %v1465
  %v1474 = vpack.c.bf16 %v1466, %v1466
  %v1475 = vpack.c.bf16 %v1467, %v1467
  %v1476 = vpack.c.bf16 %v1468, %v1468
  %v1477 = vpack.c.bf16 %v1469, %v1469
  %v1478 = vpack.c.bf16 %v1470, %v1470
  %1479 = vst [vmem:[#allocation1] ss:$9 sm:$0xff] %v9
  %v1480 = vld [vmem:[#allocation1] sm:$0xff]
  %1482 = vrot.lane.b32.xlu0 %v1480, 48
  %v1483 = vpop.permute.xlu0 %1482
  %v1485 = vsel %vm320, %v1471, 0
  %v1488 = vsel %vm324, %v1483, 0
  %1490 = vmatpush.bf16.msra.mxu0 0
  %1491 = vmatpush.bf16.msra.mxu0 0
  %1492 = vmatpush.bf16.msra.mxu0 0
  %1493 = vmatpush.bf16.msra.mxu0 0
  %1494 = vmatpush.bf16.msra.mxu0 0
  %1495 = vmatpush.bf16.msra.mxu0 0
  %1496 = vmatpush.bf16.msra.mxu0 0
  %1497 = vmatpush.bf16.msra.mxu0 %v1488
  %1498 = vmatmul.bf16.gmra.mxu0 %v1485
  %v1499 = vpop.f32.mrf.mxu0
  %v1500 = vadd.f32 0.0, %v1499
  %v1501 = vpop.f32.mrf.mxu0
  %1502 = vdwg.mxu0
  %1503 = vst [vmem:[#allocation1] ss:$9 sm:$0xff] %v10
  %v1504 = vld [vmem:[#allocation1] sm:$0xff]
  %1506 = vrot.lane.b32.xlu0 %v1504, 48
  %v1507 = vpop.permute.xlu0 %1506
  %v1509 = vsel %vm320, %v1472, 0
  %v1512 = vsel %vm324, %v1507, 0
  %1514 = vmatpush.bf16.msra.mxu0 0
  %1515 = vmatpush.bf16.msra.mxu0 0
  %1516 = vmatpush.bf16.msra.mxu0 0
  %1517 = vmatpush.bf16.msra.mxu0 0
  %1518 = vmatpush.bf16.msra.mxu0 0
  %1519 = vmatpush.bf16.msra.mxu0 0
  %1520 = vmatpush.bf16.msra.mxu0 0
  %1521 = vmatpush.bf16.msra.mxu0 %v1512
  %1522 = vmatmul.bf16.gmra.mxu0 %v1509
  %v1523 = vpop.f32.mrf.mxu0
  %v1524 = vadd.f32 0.0, %v1523
  %v1525 = vpop.f32.mrf.mxu0
  %1526 = vdwg.mxu0
  %1527 = vst [vmem:[#allocation1] ss:$9 sm:$0xff] %v11
  %v1528 = vld [vmem:[#allocation1] sm:$0xff]
  %1530 = vrot.lane.b32.xlu0 %v1528, 48
  %v1531 = vpop.permute.xlu0 %1530
  %v1533 = vsel %vm320, %v1473, 0
  %v1536 = vsel %vm324, %v1531, 0
  %1538 = vmatpush.bf16.msra.mxu0 0
  %1539 = vmatpush.bf16.msra.mxu0 0
  %1540 = vmatpush.bf16.msra.mxu0 0
  %1541 = vmatpush.bf16.msra.mxu0 0
  %1542 = vmatpush.bf16.msra.mxu0 0
  %1543 = vmatpush.bf16.msra.mxu0 0
  %1544 = vmatpush.bf16.msra.mxu0 0
  %1545 = vmatpush.bf16.msra.mxu0 %v1536
  %1546 = vmatmul.bf16.gmra.mxu0 %v1533
  %v1547 = vpop.f32.mrf.mxu0
  %v1548 = vadd.f32 0.0, %v1547
  %v1549 = vpop.f32.mrf.mxu0
  %1550 = vdwg.mxu0
  %1551 = vst [vmem:[#allocation1] ss:$9 sm:$0xff] %v12
  %v1552 = vld [vmem:[#allocation1] sm:$0xff]
  %1554 = vrot.lane.b32.xlu0 %v1552, 48
  %v1555 = vpop.permute.xlu0 %1554
  %v1557 = vsel %vm320, %v1474, 0
  %v1560 = vsel %vm324, %v1555, 0
  %1562 = vmatpush.bf16.msra.mxu0 0
  %1563 = vmatpush.bf16.msra.mxu0 0
  %1564 = vmatpush.bf16.msra.mxu0 0
  %1565 = vmatpush.bf16.msra.mxu0 0
  %1566 = vmatpush.bf16.msra.mxu0 0
  %1567 = vmatpush.bf16.msra.mxu0 0
  %1568 = vmatpush.bf16.msra.mxu0 0
  %1569 = vmatpush.bf16.msra.mxu0 %v1560
  %1570 = vmatmul.bf16.gmra.mxu0 %v1557
  %v1571 = vpop.f32.mrf.mxu0
  %v1572 = vadd.f32 0.0, %v1571
  %v1573 = vpop.f32.mrf.mxu0
  %1574 = vdwg.mxu0
  %1575 = vst [vmem:[#allocation1] ss:$9 sm:$0xff] %v13
  %v1576 = vld [vmem:[#allocation1] sm:$0xff]
  %1578 = vrot.lane.b32.xlu0 %v1576, 48
  %v1579 = vpop.permute.xlu0 %1578
  %v1581 = vsel %vm320, %v1475, 0
  %v1584 = vsel %vm324, %v1579, 0
  %1586 = vmatpush.bf16.msra.mxu0 0
  %1587 = vmatpush.bf16.msra.mxu0 0
  %1588 = vmatpush.bf16.msra.mxu0 0
  %1589 = vmatpush.bf16.msra.mxu0 0
  %1590 = vmatpush.bf16.msra.mxu0 0
  %1591 = vmatpush.bf16.msra.mxu0 0
  %1592 = vmatpush.bf16.msra.mxu0 0
  %1593 = vmatpush.bf16.msra.mxu0 %v1584
  %1594 = vmatmul.bf16.gmra.mxu0 %v1581
  %v1595 = vpop.f32.mrf.mxu0
  %v1596 = vadd.f32 0.0, %v1595
  %v1597 = vpop.f32.mrf.mxu0
  %1598 = vdwg.mxu0
  %1599 = vst [vmem:[#allocation1] ss:$9 sm:$0xff] %v14
  %v1600 = vld [vmem:[#allocation1] sm:$0xff]
  %1602 = vrot.lane.b32.xlu0 %v1600, 48
  %v1603 = vpop.permute.xlu0 %1602
  %v1605 = vsel %vm320, %v1476, 0
  %v1608 = vsel %vm324, %v1603, 0
  %1610 = vmatpush.bf16.msra.mxu0 0
  %1611 = vmatpush.bf16.msra.mxu0 0
  %1612 = vmatpush.bf16.msra.mxu0 0
  %1613 = vmatpush.bf16.msra.mxu0 0
  %1614 = vmatpush.bf16.msra.mxu0 0
  %1615 = vmatpush.bf16.msra.mxu0 0
  %1616 = vmatpush.bf16.msra.mxu0 0
  %1617 = vmatpush.bf16.msra.mxu0 %v1608
  %1618 = vmatmul.bf16.gmra.mxu0 %v1605
  %v1619 = vpop.f32.mrf.mxu0
  %v1620 = vadd.f32 0.0, %v1619
  %v1621 = vpop.f32.mrf.mxu0
  %1622 = vdwg.mxu0
  %1623 = vst [vmem:[#allocation1] ss:$9 sm:$0xff] %v15
  %v1624 = vld [vmem:[#allocation1] sm:$0xff]
  %1626 = vrot.lane.b32.xlu0 %v1624, 48
  %v1627 = vpop.permute.xlu0 %1626
  %v1629 = vsel %vm320, %v1477, 0
  %v1632 = vsel %vm324, %v1627, 0
  %1634 = vmatpush.bf16.msra.mxu0 0
  %1635 = vmatpush.bf16.msra.mxu0 0
  %1636 = vmatpush.bf16.msra.mxu0 0
  %1637 = vmatpush.bf16.msra.mxu0 0
  %1638 = vmatpush.bf16.msra.mxu0 0
  %1639 = vmatpush.bf16.msra.mxu0 0
  %1640 = vmatpush.bf16.msra.mxu0 0
  %1641 = vmatpush.bf16.msra.mxu0 %v1632
  %1642 = vmatmul.bf16.gmra.mxu0 %v1629
  %v1643 = vpop.f32.mrf.mxu0
  %v1644 = vadd.f32 0.0, %v1643
  %v1645 = vpop.f32.mrf.mxu0
  %1646 = vdwg.mxu0
  %1647 = vst [vmem:[#allocation1] ss:$9 sm:$0xff] %v16
  %v1648 = vld [vmem:[#allocation1] sm:$0xff]
  %1650 = vrot.lane.b32.xlu0 %v1648, 48
  %v1651 = vpop.permute.xlu0 %1650
  %v1653 = vsel %vm320, %v1478, 0
  %v1656 = vsel %vm324, %v1651, 0
  %1658 = vmatpush.bf16.msra.mxu0 0
  %1659 = vmatpush.bf16.msra.mxu0 0
  %1660 = vmatpush.bf16.msra.mxu0 0
  %1661 = vmatpush.bf16.msra.mxu0 0
  %1662 = vmatpush.bf16.msra.mxu0 0
  %1663 = vmatpush.bf16.msra.mxu0 0
  %1664 = vmatpush.bf16.msra.mxu0 0
  %1665 = vmatpush.bf16.msra.mxu0 %v1656
  %1666 = vmatmul.bf16.gmra.mxu0 %v1653
  %v1667 = vpop.f32.mrf.mxu0
  %v1668 = vadd.f32 0.0, %v1667
  %v1669 = vpop.f32.mrf.mxu0
  %1670 = vdwg.mxu0
  %v1671 = vpack.c.bf16 %v1500, %v1500
  %v1672 = vpack.c.bf16 %v1524, %v1524
  %v1673 = vpack.c.bf16 %v1548, %v1548
  %v1674 = vpack.c.bf16 %v1572, %v1572
  %v1675 = vpack.c.bf16 %v1596, %v1596
  %v1676 = vpack.c.bf16 %v1620, %v1620
  %v1677 = vpack.c.bf16 %v1644, %v1644
  %v1678 = vpack.c.bf16 %v1668, %v1668
  %v1687 = vrot.slane %v1671, 3
  %v1688 = vrot.slane %v1672, 3
  %v1689 = vrot.slane %v1673, 3
  %v1690 = vrot.slane %v1674, 3
  %v1691 = vrot.slane %v1675, 3
  %v1692 = vrot.slane %v1676, 3
  %v1693 = vrot.slane %v1677, 3
  %v1694 = vrot.slane %v1678, 3
  %v1697 = vsel %vm324, %v1671, %v1687
  %v1701 = vsel %vm324, %v1672, %v1688
  %v1705 = vsel %vm324, %v1673, %v1689
  %v1709 = vsel %vm324, %v1674, %v1690
  %v1713 = vsel %vm324, %v1675, %v1691
  %v1717 = vsel %vm324, %v1676, %v1692
  %v1721 = vsel %vm324, %v1677, %v1693
  %v1725 = vsel %vm324, %v1678, %v1694
  %1727 = vrot.lane.b32.xlu0 %v1697, 16
  %v1728 = vpop.permute.xlu0 %1727
  %1729 = vrot.lane.b32.xlu0 %v1701, 16
  %v1730 = vpop.permute.xlu0 %1729
  %1731 = vrot.lane.b32.xlu0 %v1705, 16
  %v1732 = vpop.permute.xlu0 %1731
  %1733 = vrot.lane.b32.xlu0 %v1709, 16
  %v1734 = vpop.permute.xlu0 %1733
  %1735 = vrot.lane.b32.xlu0 %v1713, 16
  %v1736 = vpop.permute.xlu0 %1735
  %1737 = vrot.lane.b32.xlu0 %v1717, 16
  %v1738 = vpop.permute.xlu0 %1737
  %1739 = vrot.lane.b32.xlu0 %v1721, 16
  %v1740 = vpop.permute.xlu0 %1739
  %1741 = vrot.lane.b32.xlu0 %v1725, 16
  %v1742 = vpop.permute.xlu0 %1741
  %vm1751 = vcmask 188544
  %1752 = vst.msk [vmem:[%s1] sm:$0x1] %vm1751, %v1728
  %1753 = vst.msk [vmem:[%s1 + $0x1] sm:$0x1] %vm1751, %v1730
  %1754 = vst.msk [vmem:[%s1 + $0x2] sm:$0x1] %vm1751, %v1732
  %1755 = vst.msk [vmem:[%s1 + $0x3] sm:$0x1] %vm1751, %v1734
  %1756 = vst.msk [vmem:[%s1 + $0x4] sm:$0x1] %vm1751, %v1736
  %1757 = vst.msk [vmem:[%s1 + $0x5] sm:$0x1] %vm1751, %v1738
  %1758 = vst.msk [vmem:[%s1 + $0x6] sm:$0x1] %vm1751, %v1740
  %1759 = vst.msk [vmem:[%s1 + $0x7] sm:$0x1] %vm1751, %v1742
  %1760 = vst [vmem:[#allocation1] ss:$9 sm:$0xff] %v9
  %v1761 = vld [vmem:[#allocation1] sm:$0xff]
  %1763 = vrot.lane.b32.xlu0 %v1761, 104
  %v1764 = vpop.permute.xlu0 %1763
  %1765 = vst [vmem:[#allocation1] ss:$9 sm:$0xff] %v9
  %v1766 = vld [vmem:[#allocation1] sm:$0xff]
  %1768 = vrot.lane.b32.xlu0 %v1766, 72
  %v1769 = vpop.permute.xlu0 %1768
  %v1771 = vsel %vm23, %v1764, 0
  %v1774 = vsel %vm23, %v1769, 0
  %1776 = vmatpush.bf16.xpose.msra.mxu0 0
  %1777 = vmatpush.bf16.xpose.msra.mxu0 0
  %1778 = vmatpush.bf16.xpose.msra.mxu0 0
  %1779 = vmatpush.bf16.xpose.msra.mxu0 0
  %1780 = vmatpush.bf16.xpose.msra.mxu0 0
  %1781 = vmatpush.bf16.xpose.msra.mxu0 0
  %1782 = vmatpush.bf16.xpose.msra.mxu0 0
  %1783 = vmatpush.bf16.xpose.msra.mxu0 %v1774
  %1784 = vmatmul.bf16.gmra.mxu0 %v1771
  %v1785 = vpop.f32.mrf.mxu0
  %v1786 = vadd.f32 0.0, %v1785
  %v1787 = vpop.f32.mrf.mxu0
  %1788 = vdwg.mxu0
  %1789 = vst [vmem:[#allocation1] ss:$9 sm:$0xff] %v10
  %v1790 = vld [vmem:[#allocation1] sm:$0xff]
  %1792 = vrot.lane.b32.xlu0 %v1790, 104
  %v1793 = vpop.permute.xlu0 %1792
  %1794 = vst [vmem:[#allocation1] ss:$9 sm:$0xff] %v10
  %v1795 = vld [vmem:[#allocation1] sm:$0xff]
  %1797 = vrot.lane.b32.xlu0 %v1795, 72
  %v1798 = vpop.permute.xlu0 %1797
  %v1800 = vsel %vm23, %v1793, 0
  %v1803 = vsel %vm23, %v1798, 0
  %1805 = vmatpush.bf16.xpose.msra.mxu0 0
  %1806 = vmatpush.bf16.xpose.msra.mxu0 0
  %1807 = vmatpush.bf16.xpose.msra.mxu0 0
  %1808 = vmatpush.bf16.xpose.msra.mxu0 0
  %1809 = vmatpush.bf16.xpose.msra.mxu0 0
  %1810 = vmatpush.bf16.xpose.msra.mxu0 0
  %1811 = vmatpush.bf16.xpose.msra.mxu0 0
  %1812 = vmatpush.bf16.xpose.msra.mxu0 %v1803
  %1813 = vmatmul.bf16.gmra.mxu0 %v1800
  %v1814 = vpop.f32.mrf.mxu0
  %v1815 = vadd.f32 0.0, %v1814
  %v1816 = vpop.f32.mrf.mxu0
  %1817 = vdwg.mxu0
  %1818 = vst [vmem:[#allocation1] ss:$9 sm:$0xff] %v11
  %v1819 = vld [vmem:[#allocation1] sm:$0xff]
  %1821 = vrot.lane.b32.xlu0 %v1819, 104
  %v1822 = vpop.permute.xlu0 %1821
  %1823 = vst [vmem:[#allocation1] ss:$9 sm:$0xff] %v11
  %v1824 = vld [vmem:[#allocation1] sm:$0xff]
  %1826 = vrot.lane.b32.xlu0 %v1824, 72
  %v1827 = vpop.permute.xlu0 %1826
  %v1829 = vsel %vm23, %v1822, 0
  %v1832 = vsel %vm23, %v1827, 0
  %1834 = vmatpush.bf16.xpose.msra.mxu0 0
  %1835 = vmatpush.bf16.xpose.msra.mxu0 0
  %1836 = vmatpush.bf16.xpose.msra.mxu0 0
  %1837 = vmatpush.bf16.xpose.msra.mxu0 0
  %1838 = vmatpush.bf16.xpose.msra.mxu0 0
  %1839 = vmatpush.bf16.xpose.msra.mxu0 0
  %1840 = vmatpush.bf16.xpose.msra.mxu0 0
  %1841 = vmatpush.bf16.xpose.msra.mxu0 %v1832
  %1842 = vmatmul.bf16.gmra.mxu0 %v1829
  %v1843 = vpop.f32.mrf.mxu0
  %v1844 = vadd.f32 0.0, %v1843
  %v1845 = vpop.f32.mrf.mxu0
  %1846 = vdwg.mxu0
  %1847 = vst [vmem:[#allocation1] ss:$9 sm:$0xff] %v12
  %v1848 = vld [vmem:[#allocation1] sm:$0xff]
  %1850 = vrot.lane.b32.xlu0 %v1848, 104
  %v1851 = vpop.permute.xlu0 %1850
  %1852 = vst [vmem:[#allocation1] ss:$9 sm:$0xff] %v12
  %v1853 = vld [vmem:[#allocation1] sm:$0xff]
  %1855 = vrot.lane.b32.xlu0 %v1853, 72
  %v1856 = vpop.permute.xlu0 %1855
  %v1858 = vsel %vm23, %v1851, 0
  %v1861 = vsel %vm23, %v1856, 0
  %1863 = vmatpush.bf16.xpose.msra.mxu0 0
  %1864 = vmatpush.bf16.xpose.msra.mxu0 0
  %1865 = vmatpush.bf16.xpose.msra.mxu0 0
  %1866 = vmatpush.bf16.xpose.msra.mxu0 0
  %1867 = vmatpush.bf16.xpose.msra.mxu0 0
  %1868 = vmatpush.bf16.xpose.msra.mxu0 0
  %1869 = vmatpush.bf16.xpose.msra.mxu0 0
  %1870 = vmatpush.bf16.xpose.msra.mxu0 %v1861
  %1871 = vmatmul.bf16.gmra.mxu0 %v1858
  %v1872 = vpop.f32.mrf.mxu0
  %v1873 = vadd.f32 0.0, %v1872
  %v1874 = vpop.f32.mrf.mxu0
  %1875 = vdwg.mxu0
  %1876 = vst [vmem:[#allocation1] ss:$9 sm:$0xff] %v13
  %v1877 = vld [vmem:[#allocation1] sm:$0xff]
  %1879 = vrot.lane.b32.xlu0 %v1877, 104
  %v1880 = vpop.permute.xlu0 %1879
  %1881 = vst [vmem:[#allocation1] ss:$9 sm:$0xff] %v13
  %v1882 = vld [vmem:[#allocation1] sm:$0xff]
  %1884 = vrot.lane.b32.xlu0 %v1882, 72
  %v1885 = vpop.permute.xlu0 %1884
  %v1887 = vsel %vm23, %v1880, 0
  %v1890 = vsel %vm23, %v1885, 0
  %1892 = vmatpush.bf16.xpose.msra.mxu0 0
  %1893 = vmatpush.bf16.xpose.msra.mxu0 0
  %1894 = vmatpush.bf16.xpose.msra.mxu0 0
  %1895 = vmatpush.bf16.xpose.msra.mxu0 0
  %1896 = vmatpush.bf16.xpose.msra.mxu0 0
  %1897 = vmatpush.bf16.xpose.msra.mxu0 0
  %1898 = vmatpush.bf16.xpose.msra.mxu0 0
  %1899 = vmatpush.bf16.xpose.msra.mxu0 %v1890
  %1900 = vmatmul.bf16.gmra.mxu0 %v1887
  %v1901 = vpop.f32.mrf.mxu0
  %v1902 = vadd.f32 0.0, %v1901
  %v1903 = vpop.f32.mrf.mxu0
  %1904 = vdwg.mxu0
  %1905 = vst [vmem:[#allocation1] ss:$9 sm:$0xff] %v14
  %v1906 = vld [vmem:[#allocation1] sm:$0xff]
  %1908 = vrot.lane.b32.xlu0 %v1906, 104
  %v1909 = vpop.permute.xlu0 %1908
  %1910 = vst [vmem:[#allocation1] ss:$9 sm:$0xff] %v14
  %v1911 = vld [vmem:[#allocation1] sm:$0xff]
  %1913 = vrot.lane.b32.xlu0 %v1911, 72
  %v1914 = vpop.permute.xlu0 %1913
  %v1916 = vsel %vm23, %v1909, 0
  %v1919 = vsel %vm23, %v1914, 0
  %1921 = vmatpush.bf16.xpose.msra.mxu0 0
  %1922 = vmatpush.bf16.xpose.msra.mxu0 0
  %1923 = vmatpush.bf16.xpose.msra.mxu0 0
  %1924 = vmatpush.bf16.xpose.msra.mxu0 0
  %1925 = vmatpush.bf16.xpose.msra.mxu0 0
  %1926 = vmatpush.bf16.xpose.msra.mxu0 0
  %1927 = vmatpush.bf16.xpose.msra.mxu0 0
  %1928 = vmatpush.bf16.xpose.msra.mxu0 %v1919
  %1929 = vmatmul.bf16.gmra.mxu0 %v1916
  %v1930 = vpop.f32.mrf.mxu0
  %v1931 = vadd.f32 0.0, %v1930
  %v1932 = vpop.f32.mrf.mxu0
  %1933 = vdwg.mxu0
  %1934 = vst [vmem:[#allocation1] ss:$9 sm:$0xff] %v15
  %v1935 = vld [vmem:[#allocation1] sm:$0xff]
  %1937 = vrot.lane.b32.xlu0 %v1935, 104
  %v1938 = vpop.permute.xlu0 %1937
  %1939 = vst [vmem:[#allocation1] ss:$9 sm:$0xff] %v15
  %v1940 = vld [vmem:[#allocation1] sm:$0xff]
  %1942 = vrot.lane.b32.xlu0 %v1940, 72
  %v1943 = vpop.permute.xlu0 %1942
  %v1945 = vsel %vm23, %v1938, 0
  %v1948 = vsel %vm23, %v1943, 0
  %1950 = vmatpush.bf16.xpose.msra.mxu0 0
  %1951 = vmatpush.bf16.xpose.msra.mxu0 0
  %1952 = vmatpush.bf16.xpose.msra.mxu0 0
  %1953 = vmatpush.bf16.xpose.msra.mxu0 0
  %1954 = vmatpush.bf16.xpose.msra.mxu0 0
  %1955 = vmatpush.bf16.xpose.msra.mxu0 0
  %1956 = vmatpush.bf16.xpose.msra.mxu0 0
  %1957 = vmatpush.bf16.xpose.msra.mxu0 %v1948
  %1958 = vmatmul.bf16.gmra.mxu0 %v1945
  %v1959 = vpop.f32.mrf.mxu0
  %v1960 = vadd.f32 0.0, %v1959
  %v1961 = vpop.f32.mrf.mxu0
  %1962 = vdwg.mxu0
  %1963 = vst [vmem:[#allocation1] ss:$9 sm:$0xff] %v16
  %v1964 = vld [vmem:[#allocation1] sm:$0xff]
  %1966 = vrot.lane.b32.xlu0 %v1964, 104
  %v1967 = vpop.permute.xlu0 %1966
  %1968 = vst [vmem:[#allocation1] ss:$9 sm:$0xff] %v16
  %v1969 = vld [vmem:[#allocation1] sm:$0xff]
  %1971 = vrot.lane.b32.xlu0 %v1969, 72
  %v1972 = vpop.permute.xlu0 %1971
  %v1974 = vsel %vm23, %v1967, 0
  %v1977 = vsel %vm23, %v1972, 0
  %1979 = vmatpush.bf16.xpose.msra.mxu0 0
  %1980 = vmatpush.bf16.xpose.msra.mxu0 0
  %1981 = vmatpush.bf16.xpose.msra.mxu0 0
  %1982 = vmatpush.bf16.xpose.msra.mxu0 0
  %1983 = vmatpush.bf16.xpose.msra.mxu0 0
  %1984 = vmatpush.bf16.xpose.msra.mxu0 0
  %1985 = vmatpush.bf16.xpose.msra.mxu0 0
  %1986 = vmatpush.bf16.xpose.msra.mxu0 %v1977
  %1987 = vmatmul.bf16.gmra.mxu0 %v1974
  %v1988 = vpop.f32.mrf.mxu0
  %v1989 = vadd.f32 0.0, %v1988
  %v1990 = vpop.f32.mrf.mxu0
  %1991 = vdwg.mxu0
  %v1992 = vmul.f32 %v1786, 0.35355338
  %v1993 = vmul.f32 %v1815, 0.35355338
  %v1994 = vmul.f32 %v1844, 0.35355338
  %v1995 = vmul.f32 %v1873, 0.35355338
  %v1996 = vmul.f32 %v1902, 0.35355338
  %v1997 = vmul.f32 %v1931, 0.35355338
  %v1998 = vmul.f32 %v1960, 0.35355338
  %v1999 = vmul.f32 %v1989, 0.35355338
  %v2000 = vsel %vm218, %v1992, -inf
  %2001 = vmax.xlane.f32.xlu0 %v2000
  %v2002 = vpop.xlane.xlu0 %2001
  %v2003 = vsel %vm218, %v1993, -inf
  %2004 = vmax.xlane.f32.xlu0 %v2003
  %v2005 = vpop.xlane.xlu0 %2004
  %v2006 = vsel %vm218, %v1994, -inf
  %2007 = vmax.xlane.f32.xlu0 %v2006
  %v2008 = vpop.xlane.xlu0 %2007
  %v2009 = vsel %vm218, %v1995, -inf
  %2010 = vmax.xlane.f32.xlu0 %v2009
  %v2011 = vpop.xlane.xlu0 %2010
  %v2012 = vsel %vm218, %v1996, -inf
  %2013 = vmax.xlane.f32.xlu0 %v2012
  %v2014 = vpop.xlane.xlu0 %2013
  %v2015 = vsel %vm218, %v1997, -inf
  %2016 = vmax.xlane.f32.xlu0 %v2015
  %v2017 = vpop.xlane.xlu0 %2016
  %v2018 = vsel %vm218, %v1998, -inf
  %2019 = vmax.xlane.f32.xlu0 %v2018
  %v2020 = vpop.xlane.xlu0 %2019
  %v2021 = vsel %vm218, %v1999, -inf
  %2022 = vmax.xlane.f32.xlu0 %v2021
  %v2023 = vpop.xlane.xlu0 %2022
  %v2024 = vsub.f32 %v1992, %v2002
  %v2025 = vsub.f32 %v1993, %v2005
  %v2026 = vsub.f32 %v1994, %v2008
  %v2027 = vsub.f32 %v1995, %v2011
  %v2028 = vsub.f32 %v1996, %v2014
  %v2029 = vsub.f32 %v1997, %v2017
  %v2030 = vsub.f32 %v1998, %v2020
  %v2031 = vsub.f32 %v1999, %v2023
  %v2032 = vmul.f32 %v2024, 1.442695
  %v2033 = vpow.pop %v2032
  %v2034 = vmul.f32 %v2025, 1.442695
  %v2035 = vpow.pop %v2034
  %v2036 = vmul.f32 %v2026, 1.442695
  %v2037 = vpow.pop %v2036
  %v2038 = vmul.f32 %v2027, 1.442695
  %v2039 = vpow.pop %v2038
  %v2040 = vmul.f32 %v2028, 1.442695
  %v2041 = vpow.pop %v2040
  %v2042 = vmul.f32 %v2029, 1.442695
  %v2043 = vpow.pop %v2042
  %v2044 = vmul.f32 %v2030, 1.442695
  %v2045 = vpow.pop %v2044
  %v2046 = vmul.f32 %v2031, 1.442695
  %v2047 = vpow.pop %v2046
  %v2048 = vsel %vm218, %v2033, 0.0
  %2049 = vadd.xlane.f32.xlu0 %v2048
  %v2050 = vpop.xlane.xlu0 %2049
  %v2051 = vsel %vm218, %v2035, 0.0
  %2052 = vadd.xlane.f32.xlu0 %v2051
  %v2053 = vpop.xlane.xlu0 %2052
  %v2054 = vsel %vm218, %v2037, 0.0
  %2055 = vadd.xlane.f32.xlu0 %v2054
  %v2056 = vpop.xlane.xlu0 %2055
  %v2057 = vsel %vm218, %v2039, 0.0
  %2058 = vadd.xlane.f32.xlu0 %v2057
  %v2059 = vpop.xlane.xlu0 %2058
  %v2060 = vsel %vm218, %v2041, 0.0
  %2061 = vadd.xlane.f32.xlu0 %v2060
  %v2062 = vpop.xlane.xlu0 %2061
  %v2063 = vsel %vm218, %v2043, 0.0
  %2064 = vadd.xlane.f32.xlu0 %v2063
  %v2065 = vpop.xlane.xlu0 %2064
  %v2066 = vsel %vm218, %v2045, 0.0
  %2067 = vadd.xlane.f32.xlu0 %v2066
  %v2068 = vpop.xlane.xlu0 %2067
  %v2069 = vsel %vm218, %v2047, 0.0
  %2070 = vadd.xlane.f32.xlu0 %v2069
  %v2071 = vpop.xlane.xlu0 %2070
  %v2072 = vrcp.pop %v2050
  %v2073 = vrcp.pop %v2053
  %v2074 = vrcp.pop %v2056
  %v2075 = vrcp.pop %v2059
  %v2076 = vrcp.pop %v2062
  %v2077 = vrcp.pop %v2065
  %v2078 = vrcp.pop %v2068
  %v2079 = vrcp.pop %v2071
  %v2080 = vmul.f32 %v2033, %v2072
  %v2081 = vmul.f32 %v2035, %v2073
  %v2082 = vmul.f32 %v2037, %v2074
  %v2083 = vmul.f32 %v2039, %v2075
  %v2084 = vmul.f32 %v2041, %v2076
  %v2085 = vmul.f32 %v2043, %v2077
  %v2086 = vmul.f32 %v2045, %v2078
  %v2087 = vmul.f32 %v2047, %v2079
  %v2088 = vpack.c.bf16 %v2080, %v2080
  %v2089 = vpack.c.bf16 %v2081, %v2081
  %v2090 = vpack.c.bf16 %v2082, %v2082
  %v2091 = vpack.c.bf16 %v2083, %v2083
  %v2092 = vpack.c.bf16 %v2084, %v2084
  %v2093 = vpack.c.bf16 %v2085, %v2085
  %v2094 = vpack.c.bf16 %v2086, %v2086
  %v2095 = vpack.c.bf16 %v2087, %v2087
  %2096 = vst [vmem:[#allocation1] ss:$9 sm:$0xff] %v9
  %v2097 = vld [vmem:[#allocation1] sm:$0xff]
  %2099 = vrot.lane.b32.xlu0 %v2097, 40
  %v2100 = vpop.permute.xlu0 %2099
  %v2102 = vsel %vm320, %v2088, 0
  %v2105 = vsel %vm324, %v2100, 0
  %2107 = vmatpush.bf16.msra.mxu0 0
  %2108 = vmatpush.bf16.msra.mxu0 0
  %2109 = vmatpush.bf16.msra.mxu0 0
  %2110 = vmatpush.bf16.msra.mxu0 0
  %2111 = vmatpush.bf16.msra.mxu0 0
  %2112 = vmatpush.bf16.msra.mxu0 0
  %2113 = vmatpush.bf16.msra.mxu0 0
  %2114 = vmatpush.bf16.msra.mxu0 %v2105
  %2115 = vmatmul.bf16.gmra.mxu0 %v2102
  %v2116 = vpop.f32.mrf.mxu0
  %v2117 = vadd.f32 0.0, %v2116
  %v2118 = vpop.f32.mrf.mxu0
  %2119 = vdwg.mxu0
  %2120 = vst [vmem:[#allocation1] ss:$9 sm:$0xff] %v10
  %v2121 = vld [vmem:[#allocation1] sm:$0xff]
  %2123 = vrot.lane.b32.xlu0 %v2121, 40
  %v2124 = vpop.permute.xlu0 %2123
  %v2126 = vsel %vm320, %v2089, 0
  %v2129 = vsel %vm324, %v2124, 0
  %2131 = vmatpush.bf16.msra.mxu0 0
  %2132 = vmatpush.bf16.msra.mxu0 0
  %2133 = vmatpush.bf16.msra.mxu0 0
  %2134 = vmatpush.bf16.msra.mxu0 0
  %2135 = vmatpush.bf16.msra.mxu0 0
  %2136 = vmatpush.bf16.msra.mxu0 0
  %2137 = vmatpush.bf16.msra.mxu0 0
  %2138 = vmatpush.bf16.msra.mxu0 %v2129
  %2139 = vmatmul.bf16.gmra.mxu0 %v2126
  %v2140 = vpop.f32.mrf.mxu0
  %v2141 = vadd.f32 0.0, %v2140
  %v2142 = vpop.f32.mrf.mxu0
  %2143 = vdwg.mxu0
  %2144 = vst [vmem:[#allocation1] ss:$9 sm:$0xff] %v11
  %v2145 = vld [vmem:[#allocation1] sm:$0xff]
  %2147 = vrot.lane.b32.xlu0 %v2145, 40
  %v2148 = vpop.permute.xlu0 %2147
  %v2150 = vsel %vm320, %v2090, 0
  %v2153 = vsel %vm324, %v2148, 0
  %2155 = vmatpush.bf16.msra.mxu0 0
  %2156 = vmatpush.bf16.msra.mxu0 0
  %2157 = vmatpush.bf16.msra.mxu0 0
  %2158 = vmatpush.bf16.msra.mxu0 0
  %2159 = vmatpush.bf16.msra.mxu0 0
  %2160 = vmatpush.bf16.msra.mxu0 0
  %2161 = vmatpush.bf16.msra.mxu0 0
  %2162 = vmatpush.bf16.msra.mxu0 %v2153
  %2163 = vmatmul.bf16.gmra.mxu0 %v2150
  %v2164 = vpop.f32.mrf.mxu0
  %v2165 = vadd.f32 0.0, %v2164
  %v2166 = vpop.f32.mrf.mxu0
  %2167 = vdwg.mxu0
  %2168 = vst [vmem:[#allocation1] ss:$9 sm:$0xff] %v12
  %v2169 = vld [vmem:[#allocation1] sm:$0xff]
  %2171 = vrot.lane.b32.xlu0 %v2169, 40
  %v2172 = vpop.permute.xlu0 %2171
  %v2174 = vsel %vm320, %v2091, 0
  %v2177 = vsel %vm324, %v2172, 0
  %2179 = vmatpush.bf16.msra.mxu0 0
  %2180 = vmatpush.bf16.msra.mxu0 0
  %2181 = vmatpush.bf16.msra.mxu0 0
  %2182 = vmatpush.bf16.msra.mxu0 0
  %2183 = vmatpush.bf16.msra.mxu0 0
  %2184 = vmatpush.bf16.msra.mxu0 0
  %2185 = vmatpush.bf16.msra.mxu0 0
  %2186 = vmatpush.bf16.msra.mxu0 %v2177
  %2187 = vmatmul.bf16.gmra.mxu0 %v2174
  %v2188 = vpop.f32.mrf.mxu0
  %v2189 = vadd.f32 0.0, %v2188
  %v2190 = vpop.f32.mrf.mxu0
  %2191 = vdwg.mxu0
  %2192 = vst [vmem:[#allocation1] ss:$9 sm:$0xff] %v13
  %v2193 = vld [vmem:[#allocation1] sm:$0xff]
  %2195 = vrot.lane.b32.xlu0 %v2193, 40
  %v2196 = vpop.permute.xlu0 %2195
  %v2198 = vsel %vm320, %v2092, 0
  %v2201 = vsel %vm324, %v2196, 0
  %2203 = vmatpush.bf16.msra.mxu0 0
  %2204 = vmatpush.bf16.msra.mxu0 0
  %2205 = vmatpush.bf16.msra.mxu0 0
  %2206 = vmatpush.bf16.msra.mxu0 0
  %2207 = vmatpush.bf16.msra.mxu0 0
  %2208 = vmatpush.bf16.msra.mxu0 0
  %2209 = vmatpush.bf16.msra.mxu0 0
  %2210 = vmatpush.bf16.msra.mxu0 %v2201
  %2211 = vmatmul.bf16.gmra.mxu0 %v2198
  %v2212 = vpop.f32.mrf.mxu0
  %v2213 = vadd.f32 0.0, %v2212
  %v2214 = vpop.f32.mrf.mxu0
  %2215 = vdwg.mxu0
  %2216 = vst [vmem:[#allocation1] ss:$9 sm:$0xff] %v14
  %v2217 = vld [vmem:[#allocation1] sm:$0xff]
  %2219 = vrot.lane.b32.xlu0 %v2217, 40
  %v2220 = vpop.permute.xlu0 %2219
  %v2222 = vsel %vm320, %v2093, 0
  %v2225 = vsel %vm324, %v2220, 0
  %2227 = vmatpush.bf16.msra.mxu0 0
  %2228 = vmatpush.bf16.msra.mxu0 0
  %2229 = vmatpush.bf16.msra.mxu0 0
  %2230 = vmatpush.bf16.msra.mxu0 0
  %2231 = vmatpush.bf16.msra.mxu0 0
  %2232 = vmatpush.bf16.msra.mxu0 0
  %2233 = vmatpush.bf16.msra.mxu0 0
  %2234 = vmatpush.bf16.msra.mxu0 %v2225
  %2235 = vmatmul.bf16.gmra.mxu0 %v2222
  %v2236 = vpop.f32.mrf.mxu0
  %v2237 = vadd.f32 0.0, %v2236
  %v2238 = vpop.f32.mrf.mxu0
  %2239 = vdwg.mxu0
  %2240 = vst [vmem:[#allocation1] ss:$9 sm:$0xff] %v15
  %v2241 = vld [vmem:[#allocation1] sm:$0xff]
  %2243 = vrot.lane.b32.xlu0 %v2241, 40
  %v2244 = vpop.permute.xlu0 %2243
  %v2246 = vsel %vm320, %v2094, 0
  %v2249 = vsel %vm324, %v2244, 0
  %2251 = vmatpush.bf16.msra.mxu0 0
  %2252 = vmatpush.bf16.msra.mxu0 0
  %2253 = vmatpush.bf16.msra.mxu0 0
  %2254 = vmatpush.bf16.msra.mxu0 0
  %2255 = vmatpush.bf16.msra.mxu0 0
  %2256 = vmatpush.bf16.msra.mxu0 0
  %2257 = vmatpush.bf16.msra.mxu0 0
  %2258 = vmatpush.bf16.msra.mxu0 %v2249
  %2259 = vmatmul.bf16.gmra.mxu0 %v2246
  %v2260 = vpop.f32.mrf.mxu0
  %v2261 = vadd.f32 0.0, %v2260
  %v2262 = vpop.f32.mrf.mxu0
  %2263 = vdwg.mxu0
  %2264 = vst [vmem:[#allocation1] ss:$9 sm:$0xff] %v16
  %v2265 = vld [vmem:[#allocation1] sm:$0xff]
  %2267 = vrot.lane.b32.xlu0 %v2265, 40
  %v2268 = vpop.permute.xlu0 %2267
  %v2270 = vsel %vm320, %v2095, 0
  %v2273 = vsel %vm324, %v2268, 0
  %2275 = vmatpush.bf16.msra.mxu0 0
  %2276 = vmatpush.bf16.msra.mxu0 0
  %2277 = vmatpush.bf16.msra.mxu0 0
  %2278 = vmatpush.bf16.msra.mxu0 0
  %2279 = vmatpush.bf16.msra.mxu0 0
  %2280 = vmatpush.bf16.msra.mxu0 0
  %2281 = vmatpush.bf16.msra.mxu0 0
  %2282 = vmatpush.bf16.msra.mxu0 %v2273
  %2283 = vmatmul.bf16.gmra.mxu0 %v2270
  %v2284 = vpop.f32.mrf.mxu0
  %v2285 = vadd.f32 0.0, %v2284
  %v2286 = vpop.f32.mrf.mxu0
  %2287 = vdwg.mxu0
  %v2288 = vpack.c.bf16 %v2117, %v2117
  %v2289 = vpack.c.bf16 %v2141, %v2141
  %v2290 = vpack.c.bf16 %v2165, %v2165
  %v2291 = vpack.c.bf16 %v2189, %v2189
  %v2292 = vpack.c.bf16 %v2213, %v2213
  %v2293 = vpack.c.bf16 %v2237, %v2237
  %v2294 = vpack.c.bf16 %v2261, %v2261
  %v2295 = vpack.c.bf16 %v2285, %v2285
  %v2304 = vrot.slane %v2288, 3
  %v2305 = vrot.slane %v2289, 3
  %v2306 = vrot.slane %v2290, 3
  %v2307 = vrot.slane %v2291, 3
  %v2308 = vrot.slane %v2292, 3
  %v2309 = vrot.slane %v2293, 3
  %v2310 = vrot.slane %v2294, 3
  %v2311 = vrot.slane %v2295, 3
  %v2314 = vsel %vm324, %v2288, %v2304
  %v2318 = vsel %vm324, %v2289, %v2305
  %v2322 = vsel %vm324, %v2290, %v2306
  %v2326 = vsel %vm324, %v2291, %v2307
  %v2330 = vsel %vm324, %v2292, %v2308
  %v2334 = vsel %vm324, %v2293, %v2309
  %v2338 = vsel %vm324, %v2294, %v2310
  %v2342 = vsel %vm324, %v2295, %v2311
  %2344 = vrot.lane.b32.xlu0 %v2314, 24
  %v2345 = vpop.permute.xlu0 %2344
  %2346 = vrot.lane.b32.xlu0 %v2318, 24
  %v2347 = vpop.permute.xlu0 %2346
  %2348 = vrot.lane.b32.xlu0 %v2322, 24
  %v2349 = vpop.permute.xlu0 %2348
  %2350 = vrot.lane.b32.xlu0 %v2326, 24
  %v2351 = vpop.permute.xlu0 %2350
  %2352 = vrot.lane.b32.xlu0 %v2330, 24
  %v2353 = vpop.permute.xlu0 %2352
  %2354 = vrot.lane.b32.xlu0 %v2334, 24
  %v2355 = vpop.permute.xlu0 %2354
  %2356 = vrot.lane.b32.xlu0 %v2338, 24
  %v2357 = vpop.permute.xlu0 %2356
  %2358 = vrot.lane.b32.xlu0 %v2342, 24
  %v2359 = vpop.permute.xlu0 %2358
  %vm2368 = vcmask 254144
  %2369 = vst.msk [vmem:[%s1] sm:$0x1] %vm2368, %v2345
  %2370 = vst.msk [vmem:[%s1 + $0x1] sm:$0x1] %vm2368, %v2347
  %2371 = vst.msk [vmem:[%s1 + $0x2] sm:$0x1] %vm2368, %v2349
  %2372 = vst.msk [vmem:[%s1 + $0x3] sm:$0x1] %vm2368, %v2351
  %2373 = vst.msk [vmem:[%s1 + $0x4] sm:$0x1] %vm2368, %v2353
  %2374 = vst.msk [vmem:[%s1 + $0x5] sm:$0x1] %vm2368, %v2355
  %2375 = vst.msk [vmem:[%s1 + $0x6] sm:$0x1] %vm2368, %v2357
  %2376 = vst.msk [vmem:[%s1 + $0x7] sm:$0x1] %vm2368, %v2359
  // Predicated region
  $region6: #{vit_forward.14} parent=0 // pred_check
    _
  $region7: #{vit_forward.14} parent=0 // pred_check_branch
    %2378 = sbr.rel (0) target = $region9
  $region8: #{vit_forward.14} parent=0 // pred_region
    _
  $region9: #{vit_forward.14} parent=0 // pred_fallthru
    _
  // Predicated region
  $region10: #{vit_forward.14} parent=0 // pred_check
    _
  $region11: #{vit_forward.14} parent=0 // pred_check_branch
    %2380 = sbr.rel (0) target = $region13
  $region12: #{vit_forward.14} parent=0 // pred_region
    _
  $region13: #{vit_forward.14} parent=0 // pred_fallthru
    _

</llo_original>
